<compile_context>
chip_gen: v7x
topology: tpu7x:2x2x1
jax: 0.10.0
libtpu: 0.0.40
codegen_flags: <defaults>
</compile_context>

<pallas_src>
import functools

import jax
import jax.numpy as jnp
from jax.experimental import pallas as pl
from jax.experimental.pallas import tpu as pltpu


# ---------------------------------------------------------------------------
# Small static helpers (trace-time only)
# ---------------------------------------------------------------------------
def _round_up(x, m):
    return (x + m - 1) // m * m


@functools.lru_cache(maxsize=1)
def _num_tensorcores():
    """2 on multi-TensorCore parts (v7x, v4/v5p megacore), else 1."""
    try:
        kind = jax.devices()[0].device_kind.lower()
    except Exception:
        return 1
    if "v7" in kind or "v4" in kind or "v5p" in kind:
        return 2
    return 1


@functools.lru_cache(maxsize=1)
def _vmem_limit_bytes():
    """Per-generation scoped-VMEM limit (~100 MiB on 128 MiB parts, ~51-56 MiB on v7x)."""
    phys = None
    try:
        info = pltpu.get_tpu_info()
        phys = int(getattr(info, "vmem_capacity_bytes", 0)) or None
    except Exception:
        phys = None
    try:
        kind = jax.devices()[0].device_kind.lower()
    except Exception:
        kind = ""
    if phys is None:
        phys = 64 * 1024 * 1024 if "v7" in kind else 128 * 1024 * 1024
    limit = min(int(phys * 0.8), 100 * 1024 * 1024)
    if "v7" in kind:
        limit = min(limit, 56 * 1024 * 1024)
    return limit


def _layer_footprint(tc, tb, hp, act_bytes, w_bytes):
    """Conservative VMEM footprint of one recurrence grid step."""
    blk = tc * tb * hp * act_bytes
    gi = tc * tb * 3 * hp * 4
    weights = 2 * (hp * 3 * hp) * w_bytes * 2        # W_ih + W_hh, double-buffered
    #   2x in + 2x out (double-buffered)  + gi scratch + matmul temp
    # + reshape temp + h carry + weights
    return 2 * blk + 2 * blk + 2 * gi + blk + tb * hp * 4 + weights


def _pick_gru_tiles(T, bp, hp, sub, act_bytes, w_bytes, budget, n_cores,
                    max_batch_tile=None, max_t_chunk=None):
    """Pick (batch_tile, t_chunk): largest tiles that fit the VMEM budget.

    Single batch tile on 1-TC chips; prefer >= n_cores batch tiles on
    multi-core chips so the 'parallel' batch axis can be sharded.
    """
    tb_cands = [d for d in range(bp, 0, -1) if bp % d == 0 and d % sub == 0]
    if not tb_cands:
        tb_cands = [bp]
    if max_batch_tile is not None:
        filt = [d for d in tb_cands if d <= max_batch_tile]
        tb_cands = filt or [tb_cands[-1]]
    if n_cores >= 2:
        multi = [d for d in tb_cands if bp // d >= n_cores]
        tb_cands = multi + [d for d in tb_cands if d not in multi]

    tc_cands = [d for d in range(T, 0, -1) if T % d == 0]
    if max_t_chunk is not None:
        filt = [d for d in tc_cands if d <= max_t_chunk]
        tc_cands = filt or [1]

    min_tc = min(T, 8)
    for require_min_tc in (True, False):
        for tb in tb_cands:
            for tc in tc_cands:
                if require_min_tc and tc < min_tc:
                    continue
                if _layer_footprint(tc, tb, hp, act_bytes, w_bytes) <= budget:
                    return tb, tc
    return tb_cands[-1], tc_cands[-1]


def _pick_dense_row_tile(n, hp, in_bytes, out_bytes, w_bytes, budget):
    for c in (2048, 1024, 512, 256, 128, 64, 32, 16, 8):
        if n % c == 0:
            fp = (2 * c * hp * in_bytes + 2 * c * hp * out_bytes
                  + 2 * hp * hp * w_bytes + 2 * hp * out_bytes)
            if fp <= budget:
                return c
    return 8


# ---------------------------------------------------------------------------
# Pallas kernels
# ---------------------------------------------------------------------------
def _gru_layer_kernel(x_ref, wih_ref, whh_ref, o_ref, h_sc, gi_sc):
    """One GRU layer: fused input projection + recurrence for one
    (batch-tile, time-chunk) grid cell.

    x_ref:   (TC, TB, Hp)      layer input chunk (compute dtype)
    wih_ref: (Hp, 3*Hp)        fused input->hidden weights, columns [r | z | n]
    whh_ref: (Hp, 3*Hp)        fused hidden->hidden weights, columns [r | z | n]
    o_ref:   (TC, TB, Hp)      hidden states for this chunk
    h_sc:    (TB, Hp)   f32    carry h_{t-1}; persists across time chunks
    gi_sc:   (TC, TB, 3*Hp) f32  x @ W_ih for this chunk (never leaves VMEM)
    """
    tc, tb, hp = o_ref.shape
    op_dtype = x_ref.dtype

    # Fresh hidden state at the first time chunk of each batch tile.
    @pl.when(pl.program_id(1) == 0)
    def _():
        h_sc[...] = jnp.zeros_like(h_sc)

    # Hoisted, fused input projection: one large MXU matmul for the whole chunk.
    gi = jnp.dot(x_ref[...].reshape(tc * tb, hp), wih_ref[...],
                 preferred_element_type=jnp.float32)          # (tc*tb, 3hp) f32
    gi_sc[...] = gi.reshape(tc, tb, 3 * hp)

    def step(t, carry):
        h = h_sc[...]                                         # (tb, hp) f32
        # Single fused hidden->hidden matmul, full-width N = 3*hp on the MXU.
        gh = jnp.dot(h.astype(op_dtype), whh_ref[...],
                     preferred_element_type=jnp.float32)      # (tb, 3hp) f32
        gi_t = gi_sc[t]                                       # (tb, 3hp) f32
        # Gates via 128-aligned lane slices; elementwise math in f32 (v5e-safe).
        r = jax.nn.sigmoid(gi_t[:, 0:hp] + gh[:, 0:hp])
        z = jax.nn.sigmoid(gi_t[:, hp:2 * hp] + gh[:, hp:2 * hp])
        n = jnp.tanh(gi_t[:, 2 * hp:3 * hp] + r * gh[:, 2 * hp:3 * hp])
        h_new = (1.0 - z) * n + z * h
        h_sc[...] = h_new
        o_ref[t] = h_new.astype(o_ref.dtype)
        return carry

    # Partial unroll: full for short chunks, 4/2 otherwise (LLO visibility
    # without blowing the vreg / instruction budget).
    unroll = tc if tc <= 8 else (4 if tc % 4 == 0 else (2 if tc % 2 == 0 else 1))
    jax.lax.fori_loop(0, tc, step, 0, unroll=unroll)


def _dense_kernel(x_ref, w_ref, b_ref, o_ref):
    """o = x @ W + b for one row tile. x:(TN,Hp) w:(Hp,Hp) b:(1,Hp) o:(TN,Hp)."""
    o_ref[...] = (
        jnp.dot(x_ref[...], w_ref[...], preferred_element_type=jnp.float32)
        + b_ref[...].astype(jnp.float32)
    ).astype(o_ref.dtype)


# ---------------------------------------------------------------------------
# pallas_call wrappers
# ---------------------------------------------------------------------------
def _gru_layer(x, wih, whh, sub, max_batch_tile=None, max_t_chunk=None):
    T, bp, hp = x.shape
    act_bytes = jnp.dtype(x.dtype).itemsize
    w_bytes = jnp.dtype(wih.dtype).itemsize
    vmem_limit = _vmem_limit_bytes()
    budget = int(vmem_limit * 0.75)
    tb, tc = _pick_gru_tiles(T, bp, hp, sub, act_bytes, w_bytes, budget,
                             _num_tensorcores(), max_batch_tile, max_t_chunk)

    cost = pl.CostEstimate(
        flops=int(4 * T * bp * hp * 3 * hp + 12 * T * bp * hp),
        transcendentals=int(6 * T * bp * hp),
        bytes_accessed=int(2 * T * bp * hp * act_bytes
                           + (wih.size + whh.size) * w_bytes),
    )
    return pl.pallas_call(
        _gru_layer_kernel,
        out_shape=jax.ShapeDtypeStruct((T, bp, hp), x.dtype),
        grid_spec=pltpu.PrefetchScalarGridSpec(
            num_scalar_prefetch=0,
            grid=(bp // tb, T // tc),
            in_specs=[
                pl.BlockSpec((tc, tb, hp), lambda b, c: (c, b, 0)),
                pl.BlockSpec((hp, 3 * hp), lambda b, c: (0, 0)),
                pl.BlockSpec((hp, 3 * hp), lambda b, c: (0, 0)),
            ],
            out_specs=pl.BlockSpec((tc, tb, hp), lambda b, c: (c, b, 0)),
            scratch_shapes=[
                pltpu.VMEM((tb, hp), jnp.float32),          # h carry
                pltpu.VMEM((tc, tb, 3 * hp), jnp.float32),  # gi for this chunk
            ],
        ),
        compiler_params=pltpu.CompilerParams(
            dimension_semantics=("parallel", "arbitrary"),
            vmem_limit_bytes=vmem_limit,
        ),
        cost_estimate=cost,
    )(x, wih, whh)


def _dense(x_flat, w, b_row):
    n, hp = x_flat.shape
    vmem_limit = _vmem_limit_bytes()
    budget = int(vmem_limit * 0.75)
    in_bytes = jnp.dtype(x_flat.dtype).itemsize
    w_bytes = jnp.dtype(w.dtype).itemsize
    tn = _pick_dense_row_tile(n, hp, in_bytes, 4, w_bytes, budget)
    return pl.pallas_call(
        _dense_kernel,
        out_shape=jax.ShapeDtypeStruct((n, hp), jnp.float32),
        grid_spec=pltpu.PrefetchScalarGridSpec(
            num_scalar_prefetch=0,
            grid=(n // tn,),
            in_specs=[
                pl.BlockSpec((tn, hp), lambda r: (r, 0)),
                pl.BlockSpec((hp, hp), lambda r: (0, 0)),
                pl.BlockSpec((1, hp), lambda r: (0, 0)),
            ],
            out_specs=pl.BlockSpec((tn, hp), lambda r: (r, 0)),
        ),
        compiler_params=pltpu.CompilerParams(
            dimension_semantics=("parallel",),
            vmem_limit_bytes=vmem_limit,
        ),
    )(x_flat, w, b_row)


# ---------------------------------------------------------------------------
# Forward pass (plain-JAX glue: transpose / pad / reshape)
# ---------------------------------------------------------------------------
@functools.partial(jax.jit, static_argnames=("max_batch_tile", "max_t_chunk"))
def gru4rec_forward(seq_emb, kp, max_batch_tile=None, max_t_chunk=None):
    """seq_emb: (B, T, H) batch-first, like the PyTorch module (eval mode)."""
    B, T, H = seq_emb.shape
    hp = kp["wd"].shape[-1]            # padded hidden size (multiple of 128)
    cdt = kp["wih"][0].dtype           # matmul-operand / activation dtype
    sub = 16 if jnp.dtype(cdt).itemsize == 2 else 8
    bp = _round_up(B, sub)             # padded batch (full sublane tiles)

    # emb_dropout: identity at inference time.
    x = jnp.transpose(seq_emb, (1, 0, 2)).astype(jnp.float32)        # (T, B, H)
    x = jnp.pad(x, ((0, 0), (0, bp - B), (0, hp - H))).astype(cdt)   # (T, Bp, Hp)

    for wih, whh in zip(kp["wih"], kp["whh"]):
        # Fused input-projection + recurrence; gi never touches HBM.
        x = _gru_layer(x, wih, whh, sub, max_batch_tile, max_t_chunk)

    y = _dense(x.reshape(T * bp, hp), kp["wd"], kp["bd"])            # (T*Bp, Hp) f32
    y = y.reshape(T, bp, hp)[:, :B, :H]
    return jnp.transpose(y, (1, 0, 2))                               # (B, T, H)


# ---------------------------------------------------------------------------
# Parameters: PyTorch-layout init + kernel-layout preparation
# ---------------------------------------------------------------------------
def init_params(key, hidden, num_layers):
    """PyTorch-layout params (weight_ih/hh_l{k}: (3H, H), gate order [r,z,n])."""
    params = {"wih": [], "whh": []}
    bound = (6.0 / (hidden + 3 * hidden)) ** 0.5        # xavier_uniform_ on (3H, H)
    for _ in range(num_layers):
        key, k1, k2 = jax.random.split(key, 3)
        params["wih"].append(
            jax.random.uniform(k1, (3 * hidden, hidden), jnp.float32, -bound, bound))
        params["whh"].append(
            jax.random.uniform(k2, (3 * hidden, hidden), jnp.float32, -bound, bound))
    key, k3, k4 = jax.random.split(key, 3)
    lb = (1.0 / hidden) ** 0.5                          # nn.Linear default init range
    params["wd"] = jax.random.uniform(k3, (hidden, hidden), jnp.float32, -lb, lb)
    params["bd"] = jax.random.uniform(k4, (hidden,), jnp.float32, -lb, lb)
    return params


def _fuse_pad_gates(w, h, hp):
    """(3H, H) PyTorch layout (used as x @ w_g.T) -> fused (hp, 3*hp) used as
    x @ W with columns [r | z | n]; each gate block zero-padded to (hp, hp)."""
    w3 = jnp.transpose(w.reshape(3, h, h), (0, 2, 1))            # (3, h, h) (in,out)
    w3p = jnp.zeros((3, hp, hp), w.dtype).at[:, :h, :h].set(w3)  # (3, hp, hp)
    return jnp.concatenate([w3p[0], w3p[1], w3p[2]], axis=1)     # (hp, 3*hp)


def prepare_params(params, compute_dtype=jnp.bfloat16):
    """Pad hidden to a multiple of 128 lanes, fuse the 3 gates into one
    (hp, 3*hp) matrix per weight, cast matmul operands to `compute_dtype`
    (bias stays f32)."""
    h = params["wd"].shape[0]
    hp = _round_up(h, 128)
    kp = {"wih": [], "whh": []}
    for wih, whh in zip(params["wih"], params["whh"]):
        kp["wih"].append(_fuse_pad_gates(wih, h, hp).astype(compute_dtype))
        kp["whh"].append(_fuse_pad_gates(whh, h, hp).astype(compute_dtype))
    kp["wd"] = (jnp.zeros((hp, hp), jnp.float32)
                .at[:h, :h].set(params["wd"].T).astype(compute_dtype))
    kp["bd"] = jnp.zeros((1, hp), jnp.float32).at[0, :h].set(params["bd"])
    return kp


# ---------------------------------------------------------------------------
# Pure-JAX reference (f32, PyTorch semantics) for correctness checks
# ---------------------------------------------------------------------------
def gru4rec_reference(seq_emb, params):
    x = jnp.transpose(seq_emb, (1, 0, 2)).astype(jnp.float32)  # (T, B, H)
    H = x.shape[-1]
    for wih, whh in zip(params["wih"], params["whh"]):
        def step(h, x_t, wih=wih, whh=whh):
            gi = x_t @ wih.T
            gh = h @ whh.T
            r = jax.nn.sigmoid(gi[:, :H] + gh[:, :H])
            z = jax.nn.sigmoid(gi[:, H:2 * H] + gh[:, H:2 * H])
            n = jnp.tanh(gi[:, 2 * H:] + r * gh[:, 2 * H:])
            h_new = (1.0 - z) * n + z * h
            return h_new, h_new
        h0 = jnp.zeros((x.shape[1], H), jnp.float32)
        _, x = jax.lax.scan(step, h0, x)
    y = x @ params["wd"].T + params["bd"]
    return jnp.transpose(y, (1, 0, 2))


if __name__ == "__main__":
    B, T, H, L = 16, 8, 32, 2          # batch, seq len, hidden_units, num_blocks
    key = jax.random.PRNGKey(0)
    key, k_in = jax.random.split(key)
    seq_emb = jax.random.normal(k_in, (B, T, H), jnp.float32)
    params = init_params(key, H, L)

    ref = gru4rec_reference(seq_emb, params)
    kp32 = prepare_params(params, jnp.float32)

    # 1) f32 MXU operands, auto tiles: checks the kernel math (tight tolerance).
    out_f32 = gru4rec_forward(seq_emb, kp32)
    jax.block_until_ready(out_f32)
    assert out_f32.shape == (B, T, H)
    assert jnp.allclose(out_f32, ref, atol=1e-3, rtol=1e-3), "f32 mismatch vs reference"

    # 2) f32, forced batch tiling + T-chunking: validates the hidden-state carry
    #    across the 'arbitrary' T-chunk grid axis and the pl.when re-init.
    out_chunk = gru4rec_forward(seq_emb, kp32, max_batch_tile=8, max_t_chunk=2)
    jax.block_until_ready(out_chunk)
    assert jnp.allclose(out_chunk, ref, atol=1e-3, rtol=1e-3), "chunked mismatch vs reference"

    # 3) bf16 MXU operands + f32 accumulation / f32 gate math (production config).
    out_bf16 = gru4rec_forward(seq_emb, prepare_params(params, jnp.bfloat16))
    jax.block_until_ready(out_bf16)
    assert out_bf16.shape == (B, T, H)
    assert jnp.allclose(out_bf16, ref, atol=1e-1, rtol=1e-1), "bf16 mismatch vs reference"

    print("KERNEL_OK")
</pallas_src>

<mosaic_0001>
module attributes {stable_mosaic.version = 11 : i64} {
  func.func @_dense_kernel(%arg0: i32, %arg1: memref<128x128xf32, #tpu.memory_space<vmem>>, %arg2: memref<128x128xf32, #tpu.memory_space<vmem>>, %arg3: memref<1x128xf32, #tpu.memory_space<vmem>>, %arg4: memref<128x128xf32, #tpu.memory_space<vmem>>) attributes {dimension_semantics = [#tpu.dimension_semantics<parallel>], iteration_bounds = array<i64: 1>, scalar_prefetch = 0 : i64, scratch_operands = 0 : i64, tpu.core_type = #tpu.core_type<tc>, window_params = [{transform_indices = @transform_0, window_bounds = array<i64: 128, 128>}, {pipeline_mode = #tpu.pipeline_mode<synchronous>, transform_indices = @transform_1, window_bounds = array<i64: 128, 128>}, {pipeline_mode = #tpu.pipeline_mode<synchronous>, transform_indices = @transform_2, window_bounds = array<i64: 1, 128>}, {transform_indices = @transform_3, window_bounds = array<i64: 128, 128>}]} {
    %c0 = arith.constant 0 : index
    %c0_0 = arith.constant 0 : index
    %0 = vector.load %arg1[%c0, %c0_0] : memref<128x128xf32, #tpu.memory_space<vmem>>, vector<128x128xf32>
    %c0_1 = arith.constant 0 : index
    %c0_2 = arith.constant 0 : index
    %1 = vector.load %arg2[%c0_1, %c0_2] : memref<128x128xf32, #tpu.memory_space<vmem>>, vector<128x128xf32>
    %cst = arith.constant dense<0.000000e+00> : vector<128x128xf32>
    %2 = tpu.matmul %0, %1, %cst {dimension_numbers = #tpu.dot_dimension_numbers<[1], [0], [0], [1], [0, 0, 1, 1], [], []>} : vector<128x128xf32>, vector<128x128xf32>, vector<128x128xf32> -> vector<128x128xf32>
    %c0_3 = arith.constant 0 : index
    %c0_4 = arith.constant 0 : index
    %3 = vector.load %arg3[%c0_3, %c0_4] : memref<1x128xf32, #tpu.memory_space<vmem>>, vector<1x128xf32>
    %4 = vector.broadcast %3 : vector<1x128xf32> to vector<128x128xf32>
    %5 = arith.addf %2, %4 : vector<128x128xf32>
    %c0_5 = arith.constant 0 : index
    %c0_6 = arith.constant 0 : index
    %6 = vector.load %arg4[%c0_5, %c0_6] : memref<128x128xf32, #tpu.memory_space<vmem>>, vector<128x128xf32>
    tpu.vector_store %arg4[%c0_5, %c0_6], %5 {strides = array<i32>} : memref<128x128xf32, #tpu.memory_space<vmem>>, vector<128x128xf32>,
    return
  }
  func.func @transform_0(%arg0: i32) -> (i32, i32) {
    %c0_i32 = arith.constant 0 : i32
    %c0_i32_0 = arith.constant 0 : i32
    return %arg0, %c0_i32 : i32, i32
  }
  func.func @transform_1(%arg0: i32) -> (i32, i32) {
    %c0_i32 = arith.constant 0 : i32
    %c0_i32_0 = arith.constant 0 : i32
    %c0_i32_1 = arith.constant 0 : i32
    return %c0_i32, %c0_i32_0 : i32, i32
  }
  func.func @transform_2(%arg0: i32) -> (i32, i32) {
    %c0_i32 = arith.constant 0 : i32
    %c0_i32_0 = arith.constant 0 : i32
    %c0_i32_1 = arith.constant 0 : i32
    return %c0_i32, %c0_i32_0 : i32, i32
  }
  func.func @transform_3(%arg0: i32) -> (i32, i32) {
    %c0_i32 = arith.constant 0 : i32
    %c0_i32_0 = arith.constant 0 : i32
    return %arg0, %c0_i32 : i32, i32
  }
}

module attributes {stable_mosaic.version = 11 : i64} {
  func.func @_gru_layer_kernel(%arg0: i32, %arg1: i32, %arg2: memref<8x16x128xf32, #tpu.memory_space<vmem>>, %arg3: memref<128x384xf32, #tpu.memory_space<vmem>>, %arg4: memref<128x384xf32, #tpu.memory_space<vmem>>, %arg5: memref<8x16x128xf32, #tpu.memory_space<vmem>>, %arg6: memref<16x128xf32, #tpu.memory_space<vmem>>, %arg7: memref<8x16x384xf32, #tpu.memory_space<vmem>>) attributes {dimension_semantics = [#tpu.dimension_semantics<parallel>, #tpu.dimension_semantics<arbitrary>], iteration_bounds = array<i64: 1, 1>, scalar_prefetch = 0 : i64, scratch_operands = 2 : i64, tpu.core_type = #tpu.core_type<tc>, window_params = [{transform_indices = @transform_0, window_bounds = array<i64: 8, 16, 128>}, {pipeline_mode = #tpu.pipeline_mode<synchronous>, transform_indices = @transform_1, window_bounds = array<i64: 128, 384>}, {pipeline_mode = #tpu.pipeline_mode<synchronous>, transform_indices = @transform_2, window_bounds = array<i64: 128, 384>}, {transform_indices = @transform_3, window_bounds = array<i64: 8, 16, 128>}]} {
    %c0_i32 = arith.constant 0 : i32
    %0 = arith.cmpi eq, %arg1, %c0_i32 : i32
    %1 = arith.extui %0 : i1 to i32
    %c0_i32_0 = arith.constant 0 : i32
    %2 = arith.cmpi ne, %1, %c0_i32_0 : i32
    scf.if %2 {
      %cst_121 = arith.constant 0.000000e+00 : f32
      %305 = vector.broadcast %cst_121 : f32 to vector<16x128xf32>
      %c0_122 = arith.constant 0 : index
      %c0_123 = arith.constant 0 : index
      %306 = vector.load %arg6[%c0_122, %c0_123] : memref<16x128xf32, #tpu.memory_space<vmem>>, vector<16x128xf32>
      tpu.vector_store %arg6[%c0_122, %c0_123], %305 {strides = array<i32>} : memref<16x128xf32, #tpu.memory_space<vmem>>, vector<16x128xf32>,
    } else {
    }
    %c0 = arith.constant 0 : index
    %c0_1 = arith.constant 0 : index
    %c0_2 = arith.constant 0 : index
    %3 = vector.load %arg2[%c0, %c0_1, %c0_2] : memref<8x16x128xf32, #tpu.memory_space<vmem>>, vector<8x16x128xf32>
    %4 = vector.shape_cast %3 : vector<8x16x128xf32> to vector<128x128xf32>
    %c0_3 = arith.constant 0 : index
    %c0_4 = arith.constant 0 : index
    %5 = vector.load %arg3[%c0_3, %c0_4] : memref<128x384xf32, #tpu.memory_space<vmem>>, vector<128x384xf32>
    %cst = arith.constant dense<0.000000e+00> : vector<128x384xf32>
    %6 = tpu.matmul %4, %5, %cst {dimension_numbers = #tpu.dot_dimension_numbers<[1], [0], [0], [1], [0, 0, 1, 1], [], []>} : vector<128x128xf32>, vector<128x384xf32>, vector<128x384xf32> -> vector<128x384xf32>
    %7 = vector.shape_cast %6 : vector<128x384xf32> to vector<8x16x384xf32>
    %c0_5 = arith.constant 0 : index
    %c0_6 = arith.constant 0 : index
    %c0_7 = arith.constant 0 : index
    %8 = vector.load %arg7[%c0_5, %c0_6, %c0_7] : memref<8x16x384xf32, #tpu.memory_space<vmem>>, vector<8x16x384xf32>
    tpu.vector_store %arg7[%c0_5, %c0_6, %c0_7], %7 {strides = array<i32>} : memref<8x16x384xf32, #tpu.memory_space<vmem>>, vector<8x16x384xf32>,
    %c0_i32_8 = arith.constant 0 : i32
    %c0_9 = arith.constant 0 : index
    %c0_10 = arith.constant 0 : index
    %9 = vector.load %arg6[%c0_9, %c0_10] : memref<16x128xf32, #tpu.memory_space<vmem>>, vector<16x128xf32>
    %c0_11 = arith.constant 0 : index
    %c0_12 = arith.constant 0 : index
    %10 = vector.load %arg4[%c0_11, %c0_12] : memref<128x384xf32, #tpu.memory_space<vmem>>, vector<128x384xf32>
    %cst_13 = arith.constant dense<0.000000e+00> : vector<16x384xf32>
    %11 = tpu.matmul %9, %10, %cst_13 {dimension_numbers = #tpu.dot_dimension_numbers<[1], [0], [0], [1], [0, 0, 1, 1], [], []>} : vector<16x128xf32>, vector<128x384xf32>, vector<16x384xf32> -> vector<16x384xf32>
    %12 = arith.index_cast %c0_i32_8 : i32 to index
    %c0_14 = arith.constant 0 : index
    %c0_15 = arith.constant 0 : index
    %13 = vector.load %arg7[%12, %c0_14, %c0_15] : memref<8x16x384xf32, #tpu.memory_space<vmem>>, vector<1x16x384xf32>
    %14 = vector.shape_cast %13 : vector<1x16x384xf32> to vector<16x384xf32>
    %15 = vector.extract_strided_slice %14 {offsets = [0, 0], sizes = [16, 128], strides = [1, 1]} : vector<16x384xf32> to vector<16x128xf32>
    %16 = vector.extract_strided_slice %11 {offsets = [0, 0], sizes = [16, 128], strides = [1, 1]} : vector<16x384xf32> to vector<16x128xf32>
    %17 = arith.addf %15, %16 : vector<16x128xf32>
    %18 = arith.negf %17 : vector<16x128xf32>
    %19 = math.exp %18 : vector<16x128xf32>
    %cst_16 = arith.constant 1.000000e+00 : f32
    %20 = vector.broadcast %cst_16 : f32 to vector<16x128xf32>
    %21 = arith.addf %20, %19 : vector<16x128xf32>
    %22 = arith.divf %20, %21 : vector<16x128xf32>
    %23 = vector.extract_strided_slice %14 {offsets = [0, 128], sizes = [16, 128], strides = [1, 1]} : vector<16x384xf32> to vector<16x128xf32>
    %24 = vector.extract_strided_slice %11 {offsets = [0, 128], sizes = [16, 128], strides = [1, 1]} : vector<16x384xf32> to vector<16x128xf32>
    %25 = arith.addf %23, %24 : vector<16x128xf32>
    %26 = arith.negf %25 : vector<16x128xf32>
    %27 = math.exp %26 : vector<16x128xf32>
    %cst_17 = arith.constant 1.000000e+00 : f32
    %28 = vector.broadcast %cst_17 : f32 to vector<16x128xf32>
    %29 = arith.addf %28, %27 : vector<16x128xf32>
    %30 = arith.divf %28, %29 : vector<16x128xf32>
    %31 = vector.extract_strided_slice %14 {offsets = [0, 256], sizes = [16, 128], strides = [1, 1]} : vector<16x384xf32> to vector<16x128xf32>
    %32 = vector.extract_strided_slice %11 {offsets = [0, 256], sizes = [16, 128], strides = [1, 1]} : vector<16x384xf32> to vector<16x128xf32>
    %33 = arith.mulf %22, %32 : vector<16x128xf32>
    %34 = arith.addf %31, %33 : vector<16x128xf32>
    %35 = math.tanh %34 : vector<16x128xf32>
    %cst_18 = arith.constant 1.000000e+00 : f32
    %36 = vector.broadcast %cst_18 : f32 to vector<16x128xf32>
    %37 = arith.subf %36, %30 : vector<16x128xf32>
    %38 = arith.mulf %37, %35 : vector<16x128xf32>
    %39 = arith.mulf %30, %9 : vector<16x128xf32>
    %40 = arith.addf %38, %39 : vector<16x128xf32>
    %c0_19 = arith.constant 0 : index
    %c0_20 = arith.constant 0 : index
    %41 = vector.load %arg6[%c0_19, %c0_20] : memref<16x128xf32, #tpu.memory_space<vmem>>, vector<16x128xf32>
    tpu.vector_store %arg6[%c0_19, %c0_20], %40 {strides = array<i32>} : memref<16x128xf32, #tpu.memory_space<vmem>>, vector<16x128xf32>,
    %42 = arith.index_cast %c0_i32_8 : i32 to index
    %c0_21 = arith.constant 0 : index
    %c0_22 = arith.constant 0 : index
    %43 = vector.load %arg5[%42, %c0_21, %c0_22] : memref<8x16x128xf32, #tpu.memory_space<vmem>>, vector<1x16x128xf32>
    %44 = vector.shape_cast %43 : vector<1x16x128xf32> to vector<16x128xf32>
    %45 = vector.shape_cast %40 : vector<16x128xf32> to vector<1x16x128xf32>
    tpu.vector_store %arg5[%42, %c0_21, %c0_22], %45 {strides = array<i32>} : memref<8x16x128xf32, #tpu.memory_space<vmem>>, vector<1x16x128xf32>,
    %c1_i32 = arith.constant 1 : i32
    %c0_23 = arith.constant 0 : index
    %c0_24 = arith.constant 0 : index
    %46 = vector.load %arg6[%c0_23, %c0_24] : memref<16x128xf32, #tpu.memory_space<vmem>>, vector<16x128xf32>
    %c0_25 = arith.constant 0 : index
    %c0_26 = arith.constant 0 : index
    %47 = vector.load %arg4[%c0_25, %c0_26] : memref<128x384xf32, #tpu.memory_space<vmem>>, vector<128x384xf32>
    %cst_27 = arith.constant dense<0.000000e+00> : vector<16x384xf32>
    %48 = tpu.matmul %46, %47, %cst_27 {dimension_numbers = #tpu.dot_dimension_numbers<[1], [0], [0], [1], [0, 0, 1, 1], [], []>} : vector<16x128xf32>, vector<128x384xf32>, vector<16x384xf32> -> vector<16x384xf32>
    %49 = arith.index_cast %c1_i32 : i32 to index
    %c0_28 = arith.constant 0 : index
    %c0_29 = arith.constant 0 : index
    %50 = vector.load %arg7[%49, %c0_28, %c0_29] : memref<8x16x384xf32, #tpu.memory_space<vmem>>, vector<1x16x384xf32>
    %51 = vector.shape_cast %50 : vector<1x16x384xf32> to vector<16x384xf32>
    %52 = vector.extract_strided_slice %51 {offsets = [0, 0], sizes = [16, 128], strides = [1, 1]} : vector<16x384xf32> to vector<16x128xf32>
    %53 = vector.extract_strided_slice %48 {offsets = [0, 0], sizes = [16, 128], strides = [1, 1]} : vector<16x384xf32> to vector<16x128xf32>
    %54 = arith.addf %52, %53 : vector<16x128xf32>
    %55 = arith.negf %54 : vector<16x128xf32>
    %56 = math.exp %55 : vector<16x128xf32>
    %cst_30 = arith.constant 1.000000e+00 : f32
    %57 = vector.broadcast %cst_30 : f32 to vector<16x128xf32>
    %58 = arith.addf %57, %56 : vector<16x128xf32>
    %59 = arith.divf %57, %58 : vector<16x128xf32>
    %60 = vector.extract_strided_slice %51 {offsets = [0, 128], sizes = [16, 128], strides = [1, 1]} : vector<16x384xf32> to vector<16x128xf32>
    %61 = vector.extract_strided_slice %48 {offsets = [0, 128], sizes = [16, 128], strides = [1, 1]} : vector<16x384xf32> to vector<16x128xf32>
    %62 = arith.addf %60, %61 : vector<16x128xf32>
    %63 = arith.negf %62 : vector<16x128xf32>
    %64 = math.exp %63 : vector<16x128xf32>
    %cst_31 = arith.constant 1.000000e+00 : f32
    %65 = vector.broadcast %cst_31 : f32 to vector<16x128xf32>
    %66 = arith.addf %65, %64 : vector<16x128xf32>
    %67 = arith.divf %65, %66 : vector<16x128xf32>
    %68 = vector.extract_strided_slice %51 {offsets = [0, 256], sizes = [16, 128], strides = [1, 1]} : vector<16x384xf32> to vector<16x128xf32>
    %69 = vector.extract_strided_slice %48 {offsets = [0, 256], sizes = [16, 128], strides = [1, 1]} : vector<16x384xf32> to vector<16x128xf32>
    %70 = arith.mulf %59, %69 : vector<16x128xf32>
    %71 = arith.addf %68, %70 : vector<16x128xf32>
    %72 = math.tanh %71 : vector<16x128xf32>
    %cst_32 = arith.constant 1.000000e+00 : f32
    %73 = vector.broadcast %cst_32 : f32 to vector<16x128xf32>
    %74 = arith.subf %73, %67 : vector<16x128xf32>
    %75 = arith.mulf %74, %72 : vector<16x128xf32>
    %76 = arith.mulf %67, %46 : vector<16x128xf32>
    %77 = arith.addf %75, %76 : vector<16x128xf32>
    %c0_33 = arith.constant 0 : index
    %c0_34 = arith.constant 0 : index
    %78 = vector.load %arg6[%c0_33, %c0_34] : memref<16x128xf32, #tpu.memory_space<vmem>>, vector<16x128xf32>
    tpu.vector_store %arg6[%c0_33, %c0_34], %77 {strides = array<i32>} : memref<16x128xf32, #tpu.memory_space<vmem>>, vector<16x128xf32>,
    %79 = arith.index_cast %c1_i32 : i32 to index
    %c0_35 = arith.constant 0 : index
    %c0_36 = arith.constant 0 : index
    %80 = vector.load %arg5[%79, %c0_35, %c0_36] : memref<8x16x128xf32, #tpu.memory_space<vmem>>, vector<1x16x128xf32>
    %81 = vector.shape_cast %80 : vector<1x16x128xf32> to vector<16x128xf32>
    %82 = vector.shape_cast %77 : vector<16x128xf32> to vector<1x16x128xf32>
    tpu.vector_store %arg5[%79, %c0_35, %c0_36], %82 {strides = array<i32>} : memref<8x16x128xf32, #tpu.memory_space<vmem>>, vector<1x16x128xf32>,
    %c2_i32 = arith.constant 2 : i32
    %c0_37 = arith.constant 0 : index
    %c0_38 = arith.constant 0 : index
    %83 = vector.load %arg6[%c0_37, %c0_38] : memref<16x128xf32, #tpu.memory_space<vmem>>, vector<16x128xf32>
    %c0_39 = arith.constant 0 : index
    %c0_40 = arith.constant 0 : index
    %84 = vector.load %arg4[%c0_39, %c0_40] : memref<128x384xf32, #tpu.memory_space<vmem>>, vector<128x384xf32>
    %cst_41 = arith.constant dense<0.000000e+00> : vector<16x384xf32>
    %85 = tpu.matmul %83, %84, %cst_41 {dimension_numbers = #tpu.dot_dimension_numbers<[1], [0], [0], [1], [0, 0, 1, 1], [], []>} : vector<16x128xf32>, vector<128x384xf32>, vector<16x384xf32> -> vector<16x384xf32>
    %86 = arith.index_cast %c2_i32 : i32 to index
    %c0_42 = arith.constant 0 : index
    %c0_43 = arith.constant 0 : index
    %87 = vector.load %arg7[%86, %c0_42, %c0_43] : memref<8x16x384xf32, #tpu.memory_space<vmem>>, vector<1x16x384xf32>
    %88 = vector.shape_cast %87 : vector<1x16x384xf32> to vector<16x384xf32>
    %89 = vector.extract_strided_slice %88 {offsets = [0, 0], sizes = [16, 128], strides = [1, 1]} : vector<16x384xf32> to vector<16x128xf32>
    %90 = vector.extract_strided_slice %85 {offsets = [0, 0], sizes = [16, 128], strides = [1, 1]} : vector<16x384xf32> to vector<16x128xf32>
    %91 = arith.addf %89, %90 : vector<16x128xf32>
    %92 = arith.negf %91 : vector<16x128xf32>
    %93 = math.exp %92 : vector<16x128xf32>
    %cst_44 = arith.constant 1.000000e+00 : f32
    %94 = vector.broadcast %cst_44 : f32 to vector<16x128xf32>
    %95 = arith.addf %94, %93 : vector<16x128xf32>
    %96 = arith.divf %94, %95 : vector<16x128xf32>
    %97 = vector.extract_strided_slice %88 {offsets = [0, 128], sizes = [16, 128], strides = [1, 1]} : vector<16x384xf32> to vector<16x128xf32>
    %98 = vector.extract_strided_slice %85 {offsets = [0, 128], sizes = [16, 128], strides = [1, 1]} : vector<16x384xf32> to vector<16x128xf32>
    %99 = arith.addf %97, %98 : vector<16x128xf32>
    %100 = arith.negf %99 : vector<16x128xf32>
    %101 = math.exp %100 : vector<16x128xf32>
    %cst_45 = arith.constant 1.000000e+00 : f32
    %102 = vector.broadcast %cst_45 : f32 to vector<16x128xf32>
    %103 = arith.addf %102, %101 : vector<16x128xf32>
    %104 = arith.divf %102, %103 : vector<16x128xf32>
    %105 = vector.extract_strided_slice %88 {offsets = [0, 256], sizes = [16, 128], strides = [1, 1]} : vector<16x384xf32> to vector<16x128xf32>
    %106 = vector.extract_strided_slice %85 {offsets = [0, 256], sizes = [16, 128], strides = [1, 1]} : vector<16x384xf32> to vector<16x128xf32>
    %107 = arith.mulf %96, %106 : vector<16x128xf32>
    %108 = arith.addf %105, %107 : vector<16x128xf32>
    %109 = math.tanh %108 : vector<16x128xf32>
    %cst_46 = arith.constant 1.000000e+00 : f32
    %110 = vector.broadcast %cst_46 : f32 to vector<16x128xf32>
    %111 = arith.subf %110, %104 : vector<16x128xf32>
    %112 = arith.mulf %111, %109 : vector<16x128xf32>
    %113 = arith.mulf %104, %83 : vector<16x128xf32>
    %114 = arith.addf %112, %113 : vector<16x128xf32>
    %c0_47 = arith.constant 0 : index
    %c0_48 = arith.constant 0 : index
    %115 = vector.load %arg6[%c0_47, %c0_48] : memref<16x128xf32, #tpu.memory_space<vmem>>, vector<16x128xf32>
    tpu.vector_store %arg6[%c0_47, %c0_48], %114 {strides = array<i32>} : memref<16x128xf32, #tpu.memory_space<vmem>>, vector<16x128xf32>,
    %116 = arith.index_cast %c2_i32 : i32 to index
    %c0_49 = arith.constant 0 : index
    %c0_50 = arith.constant 0 : index
    %117 = vector.load %arg5[%116, %c0_49, %c0_50] : memref<8x16x128xf32, #tpu.memory_space<vmem>>, vector<1x16x128xf32>
    %118 = vector.shape_cast %117 : vector<1x16x128xf32> to vector<16x128xf32>
    %119 = vector.shape_cast %114 : vector<16x128xf32> to vector<1x16x128xf32>
    tpu.vector_store %arg5[%116, %c0_49, %c0_50], %119 {strides = array<i32>} : memref<8x16x128xf32, #tpu.memory_space<vmem>>, vector<1x16x128xf32>,
    %c3_i32 = arith.constant 3 : i32
    %c0_51 = arith.constant 0 : index
    %c0_52 = arith.constant 0 : index
    %120 = vector.load %arg6[%c0_51, %c0_52] : memref<16x128xf32, #tpu.memory_space<vmem>>, vector<16x128xf32>
    %c0_53 = arith.constant 0 : index
    %c0_54 = arith.constant 0 : index
    %121 = vector.load %arg4[%c0_53, %c0_54] : memref<128x384xf32, #tpu.memory_space<vmem>>, vector<128x384xf32>
    %cst_55 = arith.constant dense<0.000000e+00> : vector<16x384xf32>
    %122 = tpu.matmul %120, %121, %cst_55 {dimension_numbers = #tpu.dot_dimension_numbers<[1], [0], [0], [1], [0, 0, 1, 1], [], []>} : vector<16x128xf32>, vector<128x384xf32>, vector<16x384xf32> -> vector<16x384xf32>
    %123 = arith.index_cast %c3_i32 : i32 to index
    %c0_56 = arith.constant 0 : index
    %c0_57 = arith.constant 0 : index
    %124 = vector.load %arg7[%123, %c0_56, %c0_57] : memref<8x16x384xf32, #tpu.memory_space<vmem>>, vector<1x16x384xf32>
    %125 = vector.shape_cast %124 : vector<1x16x384xf32> to vector<16x384xf32>
    %126 = vector.extract_strided_slice %125 {offsets = [0, 0], sizes = [16, 128], strides = [1, 1]} : vector<16x384xf32> to vector<16x128xf32>
    %127 = vector.extract_strided_slice %122 {offsets = [0, 0], sizes = [16, 128], strides = [1, 1]} : vector<16x384xf32> to vector<16x128xf32>
    %128 = arith.addf %126, %127 : vector<16x128xf32>
    %129 = arith.negf %128 : vector<16x128xf32>
    %130 = math.exp %129 : vector<16x128xf32>
    %cst_58 = arith.constant 1.000000e+00 : f32
    %131 = vector.broadcast %cst_58 : f32 to vector<16x128xf32>
    %132 = arith.addf %131, %130 : vector<16x128xf32>
    %133 = arith.divf %131, %132 : vector<16x128xf32>
    %134 = vector.extract_strided_slice %125 {offsets = [0, 128], sizes = [16, 128], strides = [1, 1]} : vector<16x384xf32> to vector<16x128xf32>
    %135 = vector.extract_strided_slice %122 {offsets = [0, 128], sizes = [16, 128], strides = [1, 1]} : vector<16x384xf32> to vector<16x128xf32>
    %136 = arith.addf %134, %135 : vector<16x128xf32>
    %137 = arith.negf %136 : vector<16x128xf32>
    %138 = math.exp %137 : vector<16x128xf32>
    %cst_59 = arith.constant 1.000000e+00 : f32
    %139 = vector.broadcast %cst_59 : f32 to vector<16x128xf32>
    %140 = arith.addf %139, %138 : vector<16x128xf32>
    %141 = arith.divf %139, %140 : vector<16x128xf32>
    %142 = vector.extract_strided_slice %125 {offsets = [0, 256], sizes = [16, 128], strides = [1, 1]} : vector<16x384xf32> to vector<16x128xf32>
    %143 = vector.extract_strided_slice %122 {offsets = [0, 256], sizes = [16, 128], strides = [1, 1]} : vector<16x384xf32> to vector<16x128xf32>
    %144 = arith.mulf %133, %143 : vector<16x128xf32>
    %145 = arith.addf %142, %144 : vector<16x128xf32>
    %146 = math.tanh %145 : vector<16x128xf32>
    %cst_60 = arith.constant 1.000000e+00 : f32
    %147 = vector.broadcast %cst_60 : f32 to vector<16x128xf32>
    %148 = arith.subf %147, %141 : vector<16x128xf32>
    %149 = arith.mulf %148, %146 : vector<16x128xf32>
    %150 = arith.mulf %141, %120 : vector<16x128xf32>
    %151 = arith.addf %149, %150 : vector<16x128xf32>
    %c0_61 = arith.constant 0 : index
    %c0_62 = arith.constant 0 : index
    %152 = vector.load %arg6[%c0_61, %c0_62] : memref<16x128xf32, #tpu.memory_space<vmem>>, vector<16x128xf32>
    tpu.vector_store %arg6[%c0_61, %c0_62], %151 {strides = array<i32>} : memref<16x128xf32, #tpu.memory_space<vmem>>, vector<16x128xf32>,
    %153 = arith.index_cast %c3_i32 : i32 to index
    %c0_63 = arith.constant 0 : index
    %c0_64 = arith.constant 0 : index
    %154 = vector.load %arg5[%153, %c0_63, %c0_64] : memref<8x16x128xf32, #tpu.memory_space<vmem>>, vector<1x16x128xf32>
    %155 = vector.shape_cast %154 : vector<1x16x128xf32> to vector<16x128xf32>
    %156 = vector.shape_cast %151 : vector<16x128xf32> to vector<1x16x128xf32>
    tpu.vector_store %arg5[%153, %c0_63, %c0_64], %156 {strides = array<i32>} : memref<8x16x128xf32, #tpu.memory_space<vmem>>, vector<1x16x128xf32>,
    %c4_i32 = arith.constant 4 : i32
    %c0_65 = arith.constant 0 : index
    %c0_66 = arith.constant 0 : index
    %157 = vector.load %arg6[%c0_65, %c0_66] : memref<16x128xf32, #tpu.memory_space<vmem>>, vector<16x128xf32>
    %c0_67 = arith.constant 0 : index
    %c0_68 = arith.constant 0 : index
    %158 = vector.load %arg4[%c0_67, %c0_68] : memref<128x384xf32, #tpu.memory_space<vmem>>, vector<128x384xf32>
    %cst_69 = arith.constant dense<0.000000e+00> : vector<16x384xf32>
    %159 = tpu.matmul %157, %158, %cst_69 {dimension_numbers = #tpu.dot_dimension_numbers<[1], [0], [0], [1], [0, 0, 1, 1], [], []>} : vector<16x128xf32>, vector<128x384xf32>, vector<16x384xf32> -> vector<16x384xf32>
    %160 = arith.index_cast %c4_i32 : i32 to index
    %c0_70 = arith.constant 0 : index
    %c0_71 = arith.constant 0 : index
    %161 = vector.load %arg7[%160, %c0_70, %c0_71] : memref<8x16x384xf32, #tpu.memory_space<vmem>>, vector<1x16x384xf32>
    %162 = vector.shape_cast %161 : vector<1x16x384xf32> to vector<16x384xf32>
    %163 = vector.extract_strided_slice %162 {offsets = [0, 0], sizes = [16, 128], strides = [1, 1]} : vector<16x384xf32> to vector<16x128xf32>
    %164 = vector.extract_strided_slice %159 {offsets = [0, 0], sizes = [16, 128], strides = [1, 1]} : vector<16x384xf32> to vector<16x128xf32>
    %165 = arith.addf %163, %164 : vector<16x128xf32>
    %166 = arith.negf %165 : vector<16x128xf32>
    %167 = math.exp %166 : vector<16x128xf32>
    %cst_72 = arith.constant 1.000000e+00 : f32
    %168 = vector.broadcast %cst_72 : f32 to vector<16x128xf32>
    %169 = arith.addf %168, %167 : vector<16x128xf32>
    %170 = arith.divf %168, %169 : vector<16x128xf32>
    %171 = vector.extract_strided_slice %162 {offsets = [0, 128], sizes = [16, 128], strides = [1, 1]} : vector<16x384xf32> to vector<16x128xf32>
    %172 = vector.extract_strided_slice %159 {offsets = [0, 128], sizes = [16, 128], strides = [1, 1]} : vector<16x384xf32> to vector<16x128xf32>
    %173 = arith.addf %171, %172 : vector<16x128xf32>
    %174 = arith.negf %173 : vector<16x128xf32>
    %175 = math.exp %174 : vector<16x128xf32>
    %cst_73 = arith.constant 1.000000e+00 : f32
    %176 = vector.broadcast %cst_73 : f32 to vector<16x128xf32>
    %177 = arith.addf %176, %175 : vector<16x128xf32>
    %178 = arith.divf %176, %177 : vector<16x128xf32>
    %179 = vector.extract_strided_slice %162 {offsets = [0, 256], sizes = [16, 128], strides = [1, 1]} : vector<16x384xf32> to vector<16x128xf32>
    %180 = vector.extract_strided_slice %159 {offsets = [0, 256], sizes = [16, 128], strides = [1, 1]} : vector<16x384xf32> to vector<16x128xf32>
    %181 = arith.mulf %170, %180 : vector<16x128xf32>
    %182 = arith.addf %179, %181 : vector<16x128xf32>
    %183 = math.tanh %182 : vector<16x128xf32>
    %cst_74 = arith.constant 1.000000e+00 : f32
    %184 = vector.broadcast %cst_74 : f32 to vector<16x128xf32>
    %185 = arith.subf %184, %178 : vector<16x128xf32>
    %186 = arith.mulf %185, %183 : vector<16x128xf32>
    %187 = arith.mulf %178, %157 : vector<16x128xf32>
    %188 = arith.addf %186, %187 : vector<16x128xf32>
    %c0_75 = arith.constant 0 : index
    %c0_76 = arith.constant 0 : index
    %189 = vector.load %arg6[%c0_75, %c0_76] : memref<16x128xf32, #tpu.memory_space<vmem>>, vector<16x128xf32>
    tpu.vector_store %arg6[%c0_75, %c0_76], %188 {strides = array<i32>} : memref<16x128xf32, #tpu.memory_space<vmem>>, vector<16x128xf32>,
    %190 = arith.index_cast %c4_i32 : i32 to index
    %c0_77 = arith.constant 0 : index
    %c0_78 = arith.constant 0 : index
    %191 = vector.load %arg5[%190, %c0_77, %c0_78] : memref<8x16x128xf32, #tpu.memory_space<vmem>>, vector<1x16x128xf32>
    %192 = vector.shape_cast %191 : vector<1x16x128xf32> to vector<16x128xf32>
    %193 = vector.shape_cast %188 : vector<16x128xf32> to vector<1x16x128xf32>
    tpu.vector_store %arg5[%190, %c0_77, %c0_78], %193 {strides = array<i32>} : memref<8x16x128xf32, #tpu.memory_space<vmem>>, vector<1x16x128xf32>,
    %c5_i32 = arith.constant 5 : i32
    %c0_79 = arith.constant 0 : index
    %c0_80 = arith.constant 0 : index
    %194 = vector.load %arg6[%c0_79, %c0_80] : memref<16x128xf32, #tpu.memory_space<vmem>>, vector<16x128xf32>
    %c0_81 = arith.constant 0 : index
    %c0_82 = arith.constant 0 : index
    %195 = vector.load %arg4[%c0_81, %c0_82] : memref<128x384xf32, #tpu.memory_space<vmem>>, vector<128x384xf32>
    %cst_83 = arith.constant dense<0.000000e+00> : vector<16x384xf32>
    %196 = tpu.matmul %194, %195, %cst_83 {dimension_numbers = #tpu.dot_dimension_numbers<[1], [0], [0], [1], [0, 0, 1, 1], [], []>} : vector<16x128xf32>, vector<128x384xf32>, vector<16x384xf32> -> vector<16x384xf32>
    %197 = arith.index_cast %c5_i32 : i32 to index
    %c0_84 = arith.constant 0 : index
    %c0_85 = arith.constant 0 : index
    %198 = vector.load %arg7[%197, %c0_84, %c0_85] : memref<8x16x384xf32, #tpu.memory_space<vmem>>, vector<1x16x384xf32>
    %199 = vector.shape_cast %198 : vector<1x16x384xf32> to vector<16x384xf32>
    %200 = vector.extract_strided_slice %199 {offsets = [0, 0], sizes = [16, 128], strides = [1, 1]} : vector<16x384xf32> to vector<16x128xf32>
    %201 = vector.extract_strided_slice %196 {offsets = [0, 0], sizes = [16, 128], strides = [1, 1]} : vector<16x384xf32> to vector<16x128xf32>
    %202 = arith.addf %200, %201 : vector<16x128xf32>
    %203 = arith.negf %202 : vector<16x128xf32>
    %204 = math.exp %203 : vector<16x128xf32>
    %cst_86 = arith.constant 1.000000e+00 : f32
    %205 = vector.broadcast %cst_86 : f32 to vector<16x128xf32>
    %206 = arith.addf %205, %204 : vector<16x128xf32>
    %207 = arith.divf %205, %206 : vector<16x128xf32>
    %208 = vector.extract_strided_slice %199 {offsets = [0, 128], sizes = [16, 128], strides = [1, 1]} : vector<16x384xf32> to vector<16x128xf32>
    %209 = vector.extract_strided_slice %196 {offsets = [0, 128], sizes = [16, 128], strides = [1, 1]} : vector<16x384xf32> to vector<16x128xf32>
    %210 = arith.addf %208, %209 : vector<16x128xf32>
    %211 = arith.negf %210 : vector<16x128xf32>
    %212 = math.exp %211 : vector<16x128xf32>
    %cst_87 = arith.constant 1.000000e+00 : f32
    %213 = vector.broadcast %cst_87 : f32 to vector<16x128xf32>
    %214 = arith.addf %213, %212 : vector<16x128xf32>
    %215 = arith.divf %213, %214 : vector<16x128xf32>
    %216 = vector.extract_strided_slice %199 {offsets = [0, 256], sizes = [16, 128], strides = [1, 1]} : vector<16x384xf32> to vector<16x128xf32>
    %217 = vector.extract_strided_slice %196 {offsets = [0, 256], sizes = [16, 128], strides = [1, 1]} : vector<16x384xf32> to vector<16x128xf32>
    %218 = arith.mulf %207, %217 : vector<16x128xf32>
    %219 = arith.addf %216, %218 : vector<16x128xf32>
    %220 = math.tanh %219 : vector<16x128xf32>
    %cst_88 = arith.constant 1.000000e+00 : f32
    %221 = vector.broadcast %cst_88 : f32 to vector<16x128xf32>
    %222 = arith.subf %221, %215 : vector<16x128xf32>
    %223 = arith.mulf %222, %220 : vector<16x128xf32>
    %224 = arith.mulf %215, %194 : vector<16x128xf32>
    %225 = arith.addf %223, %224 : vector<16x128xf32>
    %c0_89 = arith.constant 0 : index
    %c0_90 = arith.constant 0 : index
    %226 = vector.load %arg6[%c0_89, %c0_90] : memref<16x128xf32, #tpu.memory_space<vmem>>, vector<16x128xf32>
    tpu.vector_store %arg6[%c0_89, %c0_90], %225 {strides = array<i32>} : memref<16x128xf32, #tpu.memory_space<vmem>>, vector<16x128xf32>,
    %227 = arith.index_cast %c5_i32 : i32 to index
    %c0_91 = arith.constant 0 : index
    %c0_92 = arith.constant 0 : index
    %228 = vector.load %arg5[%227, %c0_91, %c0_92] : memref<8x16x128xf32, #tpu.memory_space<vmem>>, vector<1x16x128xf32>
    %229 = vector.shape_cast %228 : vector<1x16x128xf32> to vector<16x128xf32>
    %230 = vector.shape_cast %225 : vector<16x128xf32> to vector<1x16x128xf32>
    tpu.vector_store %arg5[%227, %c0_91, %c0_92], %230 {strides = array<i32>} : memref<8x16x128xf32, #tpu.memory_space<vmem>>, vector<1x16x128xf32>,
    %c6_i32 = arith.constant 6 : i32
    %c0_93 = arith.constant 0 : index
    %c0_94 = arith.constant 0 : index
    %231 = vector.load %arg6[%c0_93, %c0_94] : memref<16x128xf32, #tpu.memory_space<vmem>>, vector<16x128xf32>
    %c0_95 = arith.constant 0 : index
    %c0_96 = arith.constant 0 : index
    %232 = vector.load %arg4[%c0_95, %c0_96] : memref<128x384xf32, #tpu.memory_space<vmem>>, vector<128x384xf32>
    %cst_97 = arith.constant dense<0.000000e+00> : vector<16x384xf32>
    %233 = tpu.matmul %231, %232, %cst_97 {dimension_numbers = #tpu.dot_dimension_numbers<[1], [0], [0], [1], [0, 0, 1, 1], [], []>} : vector<16x128xf32>, vector<128x384xf32>, vector<16x384xf32> -> vector<16x384xf32>
    %234 = arith.index_cast %c6_i32 : i32 to index
    %c0_98 = arith.constant 0 : index
    %c0_99 = arith.constant 0 : index
    %235 = vector.load %arg7[%234, %c0_98, %c0_99] : memref<8x16x384xf32, #tpu.memory_space<vmem>>, vector<1x16x384xf32>
    %236 = vector.shape_cast %235 : vector<1x16x384xf32> to vector<16x384xf32>
    %237 = vector.extract_strided_slice %236 {offsets = [0, 0], sizes = [16, 128], strides = [1, 1]} : vector<16x384xf32> to vector<16x128xf32>
    %238 = vector.extract_strided_slice %233 {offsets = [0, 0], sizes = [16, 128], strides = [1, 1]} : vector<16x384xf32> to vector<16x128xf32>
    %239 = arith.addf %237, %238 : vector<16x128xf32>
    %240 = arith.negf %239 : vector<16x128xf32>
    %241 = math.exp %240 : vector<16x128xf32>
    %cst_100 = arith.constant 1.000000e+00 : f32
    %242 = vector.broadcast %cst_100 : f32 to vector<16x128xf32>
    %243 = arith.addf %242, %241 : vector<16x128xf32>
    %244 = arith.divf %242, %243 : vector<16x128xf32>
    %245 = vector.extract_strided_slice %236 {offsets = [0, 128], sizes = [16, 128], strides = [1, 1]} : vector<16x384xf32> to vector<16x128xf32>
    %246 = vector.extract_strided_slice %233 {offsets = [0, 128], sizes = [16, 128], strides = [1, 1]} : vector<16x384xf32> to vector<16x128xf32>
    %247 = arith.addf %245, %246 : vector<16x128xf32>
    %248 = arith.negf %247 : vector<16x128xf32>
    %249 = math.exp %248 : vector<16x128xf32>
    %cst_101 = arith.constant 1.000000e+00 : f32
    %250 = vector.broadcast %cst_101 : f32 to vector<16x128xf32>
    %251 = arith.addf %250, %249 : vector<16x128xf32>
    %252 = arith.divf %250, %251 : vector<16x128xf32>
    %253 = vector.extract_strided_slice %236 {offsets = [0, 256], sizes = [16, 128], strides = [1, 1]} : vector<16x384xf32> to vector<16x128xf32>
    %254 = vector.extract_strided_slice %233 {offsets = [0, 256], sizes = [16, 128], strides = [1, 1]} : vector<16x384xf32> to vector<16x128xf32>
    %255 = arith.mulf %244, %254 : vector<16x128xf32>
    %256 = arith.addf %253, %255 : vector<16x128xf32>
    %257 = math.tanh %256 : vector<16x128xf32>
    %cst_102 = arith.constant 1.000000e+00 : f32
    %258 = vector.broadcast %cst_102 : f32 to vector<16x128xf32>
    %259 = arith.subf %258, %252 : vector<16x128xf32>
    %260 = arith.mulf %259, %257 : vector<16x128xf32>
    %261 = arith.mulf %252, %231 : vector<16x128xf32>
    %262 = arith.addf %260, %261 : vector<16x128xf32>
    %c0_103 = arith.constant 0 : index
    %c0_104 = arith.constant 0 : index
    %263 = vector.load %arg6[%c0_103, %c0_104] : memref<16x128xf32, #tpu.memory_space<vmem>>, vector<16x128xf32>
    tpu.vector_store %arg6[%c0_103, %c0_104], %262 {strides = array<i32>} : memref<16x128xf32, #tpu.memory_space<vmem>>, vector<16x128xf32>,
    %264 = arith.index_cast %c6_i32 : i32 to index
    %c0_105 = arith.constant 0 : index
    %c0_106 = arith.constant 0 : index
    %265 = vector.load %arg5[%264, %c0_105, %c0_106] : memref<8x16x128xf32, #tpu.memory_space<vmem>>, vector<1x16x128xf32>
    %266 = vector.shape_cast %265 : vector<1x16x128xf32> to vector<16x128xf32>
    %267 = vector.shape_cast %262 : vector<16x128xf32> to vector<1x16x128xf32>
    tpu.vector_store %arg5[%264, %c0_105, %c0_106], %267 {strides = array<i32>} : memref<8x16x128xf32, #tpu.memory_space<vmem>>, vector<1x16x128xf32>,
    %c7_i32 = arith.constant 7 : i32
    %c0_107 = arith.constant 0 : index
    %c0_108 = arith.constant 0 : index
    %268 = vector.load %arg6[%c0_107, %c0_108] : memref<16x128xf32, #tpu.memory_space<vmem>>, vector<16x128xf32>
    %c0_109 = arith.constant 0 : index
    %c0_110 = arith.constant 0 : index
    %269 = vector.load %arg4[%c0_109, %c0_110] : memref<128x384xf32, #tpu.memory_space<vmem>>, vector<128x384xf32>
    %cst_111 = arith.constant dense<0.000000e+00> : vector<16x384xf32>
    %270 = tpu.matmul %268, %269, %cst_111 {dimension_numbers = #tpu.dot_dimension_numbers<[1], [0], [0], [1], [0, 0, 1, 1], [], []>} : vector<16x128xf32>, vector<128x384xf32>, vector<16x384xf32> -> vector<16x384xf32>
    %271 = arith.index_cast %c7_i32 : i32 to index
    %c0_112 = arith.constant 0 : index
    %c0_113 = arith.constant 0 : index
    %272 = vector.load %arg7[%271, %c0_112, %c0_113] : memref<8x16x384xf32, #tpu.memory_space<vmem>>, vector<1x16x384xf32>
    %273 = vector.shape_cast %272 : vector<1x16x384xf32> to vector<16x384xf32>
    %274 = vector.extract_strided_slice %273 {offsets = [0, 0], sizes = [16, 128], strides = [1, 1]} : vector<16x384xf32> to vector<16x128xf32>
    %275 = vector.extract_strided_slice %270 {offsets = [0, 0], sizes = [16, 128], strides = [1, 1]} : vector<16x384xf32> to vector<16x128xf32>
    %276 = arith.addf %274, %275 : vector<16x128xf32>
    %277 = arith.negf %276 : vector<16x128xf32>
    %278 = math.exp %277 : vector<16x128xf32>
    %cst_114 = arith.constant 1.000000e+00 : f32
    %279 = vector.broadcast %cst_114 : f32 to vector<16x128xf32>
    %280 = arith.addf %279, %278 : vector<16x128xf32>
    %281 = arith.divf %279, %280 : vector<16x128xf32>
    %282 = vector.extract_strided_slice %273 {offsets = [0, 128], sizes = [16, 128], strides = [1, 1]} : vector<16x384xf32> to vector<16x128xf32>
    %283 = vector.extract_strided_slice %270 {offsets = [0, 128], sizes = [16, 128], strides = [1, 1]} : vector<16x384xf32> to vector<16x128xf32>
    %284 = arith.addf %282, %283 : vector<16x128xf32>
    %285 = arith.negf %284 : vector<16x128xf32>
    %286 = math.exp %285 : vector<16x128xf32>
    %cst_115 = arith.constant 1.000000e+00 : f32
    %287 = vector.broadcast %cst_115 : f32 to vector<16x128xf32>
    %288 = arith.addf %287, %286 : vector<16x128xf32>
    %289 = arith.divf %287, %288 : vector<16x128xf32>
    %290 = vector.extract_strided_slice %273 {offsets = [0, 256], sizes = [16, 128], strides = [1, 1]} : vector<16x384xf32> to vector<16x128xf32>
    %291 = vector.extract_strided_slice %270 {offsets = [0, 256], sizes = [16, 128], strides = [1, 1]} : vector<16x384xf32> to vector<16x128xf32>
    %292 = arith.mulf %281, %291 : vector<16x128xf32>
    %293 = arith.addf %290, %292 : vector<16x128xf32>
    %294 = math.tanh %293 : vector<16x128xf32>
    %cst_116 = arith.constant 1.000000e+00 : f32
    %295 = vector.broadcast %cst_116 : f32 to vector<16x128xf32>
    %296 = arith.subf %295, %289 : vector<16x128xf32>
    %297 = arith.mulf %296, %294 : vector<16x128xf32>
    %298 = arith.mulf %289, %268 : vector<16x128xf32>
    %299 = arith.addf %297, %298 : vector<16x128xf32>
    %c0_117 = arith.constant 0 : index
    %c0_118 = arith.constant 0 : index
    %300 = vector.load %arg6[%c0_117, %c0_118] : memref<16x128xf32, #tpu.memory_space<vmem>>, vector<16x128xf32>
    tpu.vector_store %arg6[%c0_117, %c0_118], %299 {strides = array<i32>} : memref<16x128xf32, #tpu.memory_space<vmem>>, vector<16x128xf32>,
    %301 = arith.index_cast %c7_i32 : i32 to index
    %c0_119 = arith.constant 0 : index
    %c0_120 = arith.constant 0 : index
    %302 = vector.load %arg5[%301, %c0_119, %c0_120] : memref<8x16x128xf32, #tpu.memory_space<vmem>>, vector<1x16x128xf32>
    %303 = vector.shape_cast %302 : vector<1x16x128xf32> to vector<16x128xf32>
    %304 = vector.shape_cast %299 : vector<16x128xf32> to vector<1x16x128xf32>
    tpu.vector_store %arg5[%301, %c0_119, %c0_120], %304 {strides = array<i32>} : memref<8x16x128xf32, #tpu.memory_space<vmem>>, vector<1x16x128xf32>,
    %c8_i32 = arith.constant 8 : i32
    return
  }
  func.func @transform_0(%arg0: i32, %arg1: i32) -> (i32, i32, i32) {
    %c0_i32 = arith.constant 0 : i32
    %c0_i32_0 = arith.constant 0 : i32
    return %arg1, %arg0, %c0_i32 : i32, i32, i32
  }
  func.func @transform_1(%arg0: i32, %arg1: i32) -> (i32, i32) {
    %c0_i32 = arith.constant 0 : i32
    %c0_i32_0 = arith.constant 0 : i32
    %c0_i32_1 = arith.constant 0 : i32
    return %c0_i32, %c0_i32_0 : i32, i32
  }
  func.func @transform_2(%arg0: i32, %arg1: i32) -> (i32, i32) {
    %c0_i32 = arith.constant 0 : i32
    %c0_i32_0 = arith.constant 0 : i32
    %c0_i32_1 = arith.constant 0 : i32
    return %c0_i32, %c0_i32_0 : i32, i32
  }
  func.func @transform_3(%arg0: i32, %arg1: i32) -> (i32, i32, i32) {
    %c0_i32 = arith.constant 0 : i32
    %c0_i32_0 = arith.constant 0 : i32
    return %arg1, %arg0, %c0_i32 : i32, i32, i32
  }
}

</mosaic_0001>

<llo_original>
// kernel: gru4rec_forward.5
$region0: #{gru4rec_forward.5}
  #allocation0 [shape = 'u32[]', space=smem, size = 0x4, offset = 0x4, fixed_abs, tag = 'smem constant byte address 0x4 - core index']
  #allocation1 [shape = 'u32[144,128]{1,0:T(1,128)}', space=vmem, size = 0x12000, scoped, tag = 'internal scratch']
  %s0 = inlined_call_operand.hbm [shape: f32[128,128], index: 0, kind: input, shape index: {}]
  %s1 = inlined_call_operand.hbm [shape: f32[128,128], index: 1, kind: input, shape index: {}]
  %s2 = inlined_call_operand.hbm [shape: f32[1,128], index: 2, kind: input, shape index: {}]
  %s3 = inlined_call_operand.hbm [shape: f32[128,128], index: 3, kind: output, shape index: {}]
  %s4 = sld [smem:[#allocation0]]
  $region34: #{gru4rec_forward.5} parent=0
    _
  %s6 = ssub.s32 1, %s4
  %s7 = scalar_select 0, %s6, %s4
  $region1: #{gru4rec_forward.5} parent=0
    #allocation2 [shape = 'u8[65536]{0}', space=vmem, size = 0x10000, scoped, tag = 'input window, operand 0, single buffered']
    #allocation3 [shape = 's32[1]{0}', space=sflag, size = 0x4, scoped, tag = 'scoped memory for gru4rec_forward.5']
    #allocation4 [shape = 's32[1]{0}', space=sflag, size = 0x4, scoped, tag = 'scoped memory for gru4rec_forward.5']
    #allocation5 [shape = 'u8[65536]{0}', space=vmem, size = 0x10000, scoped, tag = 'input window, operand 1, single buffered']
    #allocation6 [shape = 's32[1]{0}', space=sflag, size = 0x4, scoped, tag = 'scoped memory for gru4rec_forward.5']
    #allocation7 [shape = 'u8[512]{0}', space=vmem, size = 0x400, scoped, tag = 'input window, operand 2, single buffered']
    #allocation8 [shape = 'u8[65536]{0}', space=vmem, size = 0x10000, scoped, tag = 'output window, operand 0, single buffered']
    %8 = vsyncpa [#allocation3], 0
    %9 = vsyncpa [#allocation6], 0
    %10 = vsyncpa [#allocation4], 0
    // Predicated region
    $region2: #{gru4rec_forward.5} parent=1 // pred_check
      _
    $region3: #{gru4rec_forward.5} parent=1 // pred_check_branch
      %12 = sbr.rel (0) target = $region5
    $region4: #{gru4rec_forward.5} parent=1 // pred_region
      %s14 = ssub.s32 2048, 2048
      %15 = vsyncadd [#allocation3], %s14
      %s16 = sshll.u32 [#allocation2], 4
      %s17 = int_to_ptr.vmem [resolvable:$true] %s16
      %22 = dma.hbm_to_vmem [thread:$0]  %s0, 2048, %s17, [#allocation3], 128, 128, 8
    $region5: #{gru4rec_forward.5} parent=1 // pred_fallthru
      _
    // Predicated region
    $region6: #{gru4rec_forward.5} parent=1 // pred_check
      _
    $region7: #{gru4rec_forward.5} parent=1 // pred_check_branch
      %24 = sbr.rel (0) target = $region9
    $region8: #{gru4rec_forward.5} parent=1 // pred_region
      %s26 = ssub.s32 2048, 2048
      %27 = vsyncadd [#allocation6], %s26
      %s28 = sshll.u32 [#allocation5], 4
      %s29 = int_to_ptr.vmem [resolvable:$true] %s28
      %34 = dma.hbm_to_vmem [thread:$0]  %s1, 2048, %s29, [#allocation6], 128, 128, 8
    $region9: #{gru4rec_forward.5} parent=1 // pred_fallthru
      _
    // Predicated region
    $region10: #{gru4rec_forward.5} parent=1 // pred_check
      _
    $region11: #{gru4rec_forward.5} parent=1 // pred_check_branch
      %36 = sbr.rel (0) target = $region13
    $region12: #{gru4rec_forward.5} parent=1 // pred_region
      %s38 = ssub.s32 16, 16
      %39 = vsyncadd [#allocation6], %s38
      %s41 = sshll.u32 [#allocation7], 4
      %s42 = int_to_ptr.vmem [resolvable:$true] %s41
      %44 = dma.hbm_to_vmem [thread:$0]  %s2, 16, %s42, [#allocation6]
    $region13: #{gru4rec_forward.5} parent=1 // pred_fallthru
      _
    // Predicated region
    $region14: #{gru4rec_forward.5} parent=1 // pred_check
      _
    $region15: #{gru4rec_forward.5} parent=1 // pred_check_branch
      %46 = sbr.rel (0) target = $region17
    $region16: #{gru4rec_forward.5} parent=1 // pred_region
      %47 = dma.done [#allocation3], 2048
    $region17: #{gru4rec_forward.5} parent=1 // pred_fallthru
      _
    // Predicated region
    $region18: #{gru4rec_forward.5} parent=1 // pred_check
      _
    $region19: #{gru4rec_forward.5} parent=1 // pred_check_branch
      %49 = sbr.rel (0) target = $region21
    $region20: #{gru4rec_forward.5} parent=1 // pred_region
      %50 = dma.done [#allocation6], 2048
    $region21: #{gru4rec_forward.5} parent=1 // pred_fallthru
      _
    // Predicated region
    $region22: #{gru4rec_forward.5} parent=1 // pred_check
      _
    $region23: #{gru4rec_forward.5} parent=1 // pred_check_branch
      %52 = sbr.rel (0) target = $region25
    $region24: #{gru4rec_forward.5} parent=1 // pred_region
      %53 = dma.done [#allocation6], 16
    $region25: #{gru4rec_forward.5} parent=1 // pred_fallthru
      _
    %v54 = vld [vmem:[#allocation2] sm:$0xff]
    %v55 = vld [vmem:[#allocation2 + $0x8] sm:$0xff]
    %v56 = vld [vmem:[#allocation2 + $0x10] sm:$0xff]
    %v57 = vld [vmem:[#allocation2 + $0x18] sm:$0xff]
    %v58 = vld [vmem:[#allocation2 + $0x20] sm:$0xff]
    %v59 = vld [vmem:[#allocation2 + $0x28] sm:$0xff]
    %v60 = vld [vmem:[#allocation2 + $0x30] sm:$0xff]
    %v61 = vld [vmem:[#allocation2 + $0x38] sm:$0xff]
    %v62 = vld [vmem:[#allocation2 + $0x40] sm:$0xff]
    %v63 = vld [vmem:[#allocation2 + $0x48] sm:$0xff]
    %v64 = vld [vmem:[#allocation2 + $0x50] sm:$0xff]
    %v65 = vld [vmem:[#allocation2 + $0x58] sm:$0xff]
    %v66 = vld [vmem:[#allocation2 + $0x60] sm:$0xff]
    %v67 = vld [vmem:[#allocation2 + $0x68] sm:$0xff]
    %v68 = vld [vmem:[#allocation2 + $0x70] sm:$0xff]
    %v69 = vld [vmem:[#allocation2 + $0x78] sm:$0xff]
    %v70 = vld [vmem:[#allocation5] sm:$0xff]
    %v71 = vld [vmem:[#allocation5 + $0x8] sm:$0xff]
    %v72 = vld [vmem:[#allocation5 + $0x10] sm:$0xff]
    %v73 = vld [vmem:[#allocation5 + $0x18] sm:$0xff]
    %v74 = vld [vmem:[#allocation5 + $0x20] sm:$0xff]
    %v75 = vld [vmem:[#allocation5 + $0x28] sm:$0xff]
    %v76 = vld [vmem:[#allocation5 + $0x30] sm:$0xff]
    %v77 = vld [vmem:[#allocation5 + $0x38] sm:$0xff]
    %v78 = vld [vmem:[#allocation5 + $0x40] sm:$0xff]
    %v79 = vld [vmem:[#allocation5 + $0x48] sm:$0xff]
    %v80 = vld [vmem:[#allocation5 + $0x50] sm:$0xff]
    %v81 = vld [vmem:[#allocation5 + $0x58] sm:$0xff]
    %v82 = vld [vmem:[#allocation5 + $0x60] sm:$0xff]
    %v83 = vld [vmem:[#allocation5 + $0x68] sm:$0xff]
    %v84 = vld [vmem:[#allocation5 + $0x70] sm:$0xff]
    %v85 = vld [vmem:[#allocation5 + $0x78] sm:$0xff]
    %v86 = vld [vmem:[#allocation7] sm:$0x1]
    %v88 = vlaneseq
    %v89 = vshrl.u32 %v88, 7
    %v90 = vsub.s32 0, %v89
    %v91 = vrot.slane %v86, %v90
    %93 = vmatprep.subr.mxu0 0.0
    %94 = vmatpush1.msra.mxu0 %v70
    %95 = vmatprep.subr.mxu0 0.0
    %96 = vmatpush1.msra.mxu0 %v71
    %97 = vmatprep.subr.mxu0 0.0
    %98 = vmatpush1.msra.mxu0 %v72
    %99 = vmatprep.subr.mxu0 0.0
    %100 = vmatpush1.msra.mxu0 %v73
    %101 = vmatprep.subr.mxu0 0.0
    %102 = vmatpush1.msra.mxu0 %v74
    %103 = vmatprep.subr.mxu0 0.0
    %104 = vmatpush1.msra.mxu0 %v75
    %105 = vmatprep.subr.mxu0 0.0
    %106 = vmatpush1.msra.mxu0 %v76
    %107 = vmatprep.subr.mxu0 0.0
    %108 = vmatpush1.msra.mxu0 %v77
    %109 = vmatprep.subr.mxu0 0.0
    %110 = vmatpush1.msra.mxu0 %v78
    %111 = vmatprep.subr.mxu0 0.0
    %112 = vmatpush1.msra.mxu0 %v79
    %113 = vmatprep.subr.mxu0 0.0
    %114 = vmatpush1.msra.mxu0 %v80
    %115 = vmatprep.subr.mxu0 0.0
    %116 = vmatpush1.msra.mxu0 %v81
    %117 = vmatprep.subr.mxu0 0.0
    %118 = vmatpush1.msra.mxu0 %v82
    %119 = vmatprep.subr.mxu0 0.0
    %120 = vmatpush1.msra.mxu0 %v83
    %121 = vmatprep.subr.mxu0 0.0
    %122 = vmatpush1.msra.mxu0 %v84
    %123 = vmatprep.subr.mxu0 0.0
    %124 = vmatpush1.msra.mxu0 %v85
    %125 = vmatprep.subr.mxu0 0.0
    %126 = vmatpush1.msra.mxu0 0.0
    %127 = vmatprep.subr.mxu0 0.0
    %128 = vmatpush1.msra.mxu0 0.0
    %129 = vmatprep.subr.mxu0 0.0
    %130 = vmatpush1.msra.mxu0 0.0
    %131 = vmatprep.subr.mxu0 0.0
    %132 = vmatpush1.msra.mxu0 0.0
    %133 = vmatprep.subr.mxu0 0.0
    %134 = vmatpush1.msra.mxu0 0.0
    %135 = vmatprep.subr.mxu0 0.0
    %136 = vmatpush1.msra.mxu0 0.0
    %137 = vmatprep.subr.mxu0 0.0
    %138 = vmatpush1.msra.mxu0 0.0
    %139 = vmatprep.subr.mxu0 0.0
    %140 = vmatpush1.msra.mxu0 0.0
    %141 = vmatprep.subr.mxu0 0.0
    %142 = vmatpush1.msra.mxu0 0.0
    %143 = vmatprep.subr.mxu0 0.0
    %144 = vmatpush1.msra.mxu0 0.0
    %145 = vmatprep.subr.mxu0 0.0
    %146 = vmatpush1.msra.mxu0 0.0
    %147 = vmatprep.subr.mxu0 0.0
    %148 = vmatpush1.msra.mxu0 0.0
    %149 = vmatprep.subr.mxu0 0.0
    %150 = vmatpush1.msra.mxu0 0.0
    %151 = vmatprep.subr.mxu0 0.0
    %152 = vmatpush1.msra.mxu0 0.0
    %153 = vmatprep.subr.mxu0 0.0
    %154 = vmatpush1.msra.mxu0 0.0
    %155 = vmatprep.subr.mxu0 0.0
    %156 = vmatpush1.msra.mxu0 0.0
    %157 = vmatprep.mubr.f32.mxu0 0.0
    %158 = vmatmul.mubr.f32.gmra.mrb[0].mxu0 %v54
    %v159 = vpop.f32.mrb[0].mxu0
    %v160 = vadd.f32 %v91, %v159
    %v161 = vpop.f32.mrb[0].mxu0
    %162 = vmatprep.mubr.f32.mxu0 0.0
    %163 = vmatmul.mubr.f32.gmra.mrb[0].mxu0 %v55
    %v164 = vpop.f32.mrb[0].mxu0
    %v165 = vadd.f32 %v91, %v164
    %v166 = vpop.f32.mrb[0].mxu0
    %167 = vmatprep.mubr.f32.mxu0 0.0
    %168 = vmatmul.mubr.f32.gmra.mrb[0].mxu0 %v56
    %v169 = vpop.f32.mrb[0].mxu0
    %v170 = vadd.f32 %v91, %v169
    %v171 = vpop.f32.mrb[0].mxu0
    %172 = vmatprep.mubr.f32.mxu0 0.0
    %173 = vmatmul.mubr.f32.gmra.mrb[0].mxu0 %v57
    %v174 = vpop.f32.mrb[0].mxu0
    %v175 = vadd.f32 %v91, %v174
    %v176 = vpop.f32.mrb[0].mxu0
    %177 = vmatprep.mubr.f32.mxu0 0.0
    %178 = vmatmul.mubr.f32.gmra.mrb[0].mxu0 %v58
    %v179 = vpop.f32.mrb[0].mxu0
    %v180 = vadd.f32 %v91, %v179
    %v181 = vpop.f32.mrb[0].mxu0
    %182 = vmatprep.mubr.f32.mxu0 0.0
    %183 = vmatmul.mubr.f32.gmra.mrb[0].mxu0 %v59
    %v184 = vpop.f32.mrb[0].mxu0
    %v185 = vadd.f32 %v91, %v184
    %v186 = vpop.f32.mrb[0].mxu0
    %187 = vmatprep.mubr.f32.mxu0 0.0
    %188 = vmatmul.mubr.f32.gmra.mrb[0].mxu0 %v60
    %v189 = vpop.f32.mrb[0].mxu0
    %v190 = vadd.f32 %v91, %v189
    %v191 = vpop.f32.mrb[0].mxu0
    %192 = vmatprep.mubr.f32.mxu0 0.0
    %193 = vmatmul.mubr.f32.gmra.mrb[0].mxu0 %v61
    %v194 = vpop.f32.mrb[0].mxu0
    %v195 = vadd.f32 %v91, %v194
    %v196 = vpop.f32.mrb[0].mxu0
    %197 = vmatprep.mubr.f32.mxu0 0.0
    %198 = vmatmul.mubr.f32.gmra.mrb[0].mxu0 %v62
    %v199 = vpop.f32.mrb[0].mxu0
    %v200 = vadd.f32 %v91, %v199
    %v201 = vpop.f32.mrb[0].mxu0
    %202 = vmatprep.mubr.f32.mxu0 0.0
    %203 = vmatmul.mubr.f32.gmra.mrb[0].mxu0 %v63
    %v204 = vpop.f32.mrb[0].mxu0
    %v205 = vadd.f32 %v91, %v204
    %v206 = vpop.f32.mrb[0].mxu0
    %207 = vmatprep.mubr.f32.mxu0 0.0
    %208 = vmatmul.mubr.f32.gmra.mrb[0].mxu0 %v64
    %v209 = vpop.f32.mrb[0].mxu0
    %v210 = vadd.f32 %v91, %v209
    %v211 = vpop.f32.mrb[0].mxu0
    %212 = vmatprep.mubr.f32.mxu0 0.0
    %213 = vmatmul.mubr.f32.gmra.mrb[0].mxu0 %v65
    %v214 = vpop.f32.mrb[0].mxu0
    %v215 = vadd.f32 %v91, %v214
    %v216 = vpop.f32.mrb[0].mxu0
    %217 = vmatprep.mubr.f32.mxu0 0.0
    %218 = vmatmul.mubr.f32.gmra.mrb[0].mxu0 %v66
    %v219 = vpop.f32.mrb[0].mxu0
    %v220 = vadd.f32 %v91, %v219
    %v221 = vpop.f32.mrb[0].mxu0
    %222 = vmatprep.mubr.f32.mxu0 0.0
    %223 = vmatmul.mubr.f32.gmra.mrb[0].mxu0 %v67
    %v224 = vpop.f32.mrb[0].mxu0
    %v225 = vadd.f32 %v91, %v224
    %v226 = vpop.f32.mrb[0].mxu0
    %227 = vmatprep.mubr.f32.mxu0 0.0
    %228 = vmatmul.mubr.f32.gmra.mrb[0].mxu0 %v68
    %v229 = vpop.f32.mrb[0].mxu0
    %v230 = vadd.f32 %v91, %v229
    %v231 = vpop.f32.mrb[0].mxu0
    %232 = vmatprep.mubr.f32.mxu0 0.0
    %233 = vmatmul.mubr.f32.gmra.mrb[0].mxu0 %v69
    %v234 = vpop.f32.mrb[0].mxu0
    %v235 = vadd.f32 %v91, %v234
    %v236 = vpop.f32.mrb[0].mxu0
    %237 = vdwg.mxu0
    %238 = vst [vmem:[#allocation8] sm:$0xff] %v160
    %239 = vst [vmem:[#allocation8 + $0x8] sm:$0xff] %v165
    %240 = vst [vmem:[#allocation8 + $0x10] sm:$0xff] %v170
    %241 = vst [vmem:[#allocation8 + $0x18] sm:$0xff] %v175
    %242 = vst [vmem:[#allocation8 + $0x20] sm:$0xff] %v180
    %243 = vst [vmem:[#allocation8 + $0x28] sm:$0xff] %v185
    %244 = vst [vmem:[#allocation8 + $0x30] sm:$0xff] %v190
    %245 = vst [vmem:[#allocation8 + $0x38] sm:$0xff] %v195
    %246 = vst [vmem:[#allocation8 + $0x40] sm:$0xff] %v200
    %247 = vst [vmem:[#allocation8 + $0x48] sm:$0xff] %v205
    %248 = vst [vmem:[#allocation8 + $0x50] sm:$0xff] %v210
    %249 = vst [vmem:[#allocation8 + $0x58] sm:$0xff] %v215
    %250 = vst [vmem:[#allocation8 + $0x60] sm:$0xff] %v220
    %251 = vst [vmem:[#allocation8 + $0x68] sm:$0xff] %v225
    %252 = vst [vmem:[#allocation8 + $0x70] sm:$0xff] %v230
    %253 = vst [vmem:[#allocation8 + $0x78] sm:$0xff] %v235
    // Predicated region
    $region26: #{gru4rec_forward.5} parent=1 // pred_check
      _
    $region27: #{gru4rec_forward.5} parent=1 // pred_check_branch
      %255 = sbr.rel (0) target = $region29
    $region28: #{gru4rec_forward.5} parent=1 // pred_region
      %s257 = ssub.s32 2048, 2048
      %258 = vsyncadd [#allocation4], %s257
      %s259 = sshll.u32 [#allocation8], 4
      %s260 = int_to_ptr.vmem [resolvable:$true] %s259
      %265 = dma.vmem_to_hbm [thread:$0]  %s260, 2048, %s3, [#allocation4], 128, 128, 8
    $region29: #{gru4rec_forward.5} parent=1 // pred_fallthru
      _
    // Predicated region
    $region30: #{gru4rec_forward.5} parent=1 // pred_check
      _
    $region31: #{gru4rec_forward.5} parent=1 // pred_check_branch
      %267 = sbr.rel (0) target = $region33
    $region32: #{gru4rec_forward.5} parent=1 // pred_region
      %268 = dma.done [#allocation4], 2048
    $region33: #{gru4rec_forward.5} parent=1 // pred_fallthru
      _
    %269 = vsyncpa [#allocation3], 1
    %270 = vsyncpa [#allocation6], 1
    %271 = vsyncpa [#allocation4], 1

// kernel: gru4rec_forward.3
$region0: #{gru4rec_forward.3}
  #allocation0 [shape = 'u32[]', space=smem, size = 0x4, offset = 0x4, fixed_abs, tag = 'smem constant byte address 0x4 - core index']
  #allocation1 [shape = 'u32[144,128]{1,0:T(1,128)}', space=vmem, size = 0x12000, scoped, tag = 'internal scratch']
  #allocation2 [shape = 'f32[16,128]{1,0:T(8,128)}', space=vmem, size = 0x2000, scoped, tag = 'scratch operand']
  #allocation3 [shape = 'f32[8,16,384]{2,1,0:T(8,128)}', space=vmem, size = 0x30000, scoped, tag = 'scratch operand']
  %s0 = inlined_call_operand.hbm [shape: f32[8,16,128], index: 0, kind: input, shape index: {}]
  %s1 = inlined_call_operand.hbm [shape: f32[128,384], index: 1, kind: input, shape index: {}]
  %s2 = inlined_call_operand.hbm [shape: f32[128,384], index: 2, kind: input, shape index: {}]
  %s3 = inlined_call_operand.hbm [shape: f32[8,16,128], index: 3, kind: output, shape index: {}]
  %s4 = sld [smem:[#allocation0]]
  $region38: #{gru4rec_forward.3} parent=0
    _
  %s6 = ssub.s32 1, %s4
  %s7 = scalar_select 0, %s6, %s4
  $region1: #{gru4rec_forward.3} parent=0
    #allocation4 [shape = 'u8[65536]{0}', space=vmem, size = 0x10000, scoped, tag = 'input window, operand 0, single buffered']
    #allocation5 [shape = 's32[1]{0}', space=sflag, size = 0x4, scoped, tag = 'scoped memory for gru4rec_forward.3']
    #allocation6 [shape = 's32[1]{0}', space=sflag, size = 0x4, scoped, tag = 'scoped memory for gru4rec_forward.3']
    #allocation7 [shape = 'u8[196608]{0}', space=vmem, size = 0x30000, scoped, tag = 'input window, operand 1, single buffered']
    #allocation8 [shape = 's32[1]{0}', space=sflag, size = 0x4, scoped, tag = 'scoped memory for gru4rec_forward.3']
    #allocation9 [shape = 'u8[196608]{0}', space=vmem, size = 0x30000, scoped, tag = 'input window, operand 2, single buffered']
    #allocation10 [shape = 'u8[65536]{0}', space=vmem, size = 0x10000, scoped, tag = 'output window, operand 0, single buffered']
    %8 = vsyncpa [#allocation5], 0
    %9 = vsyncpa [#allocation8], 0
    %10 = vsyncpa [#allocation6], 0
    // Predicated region
    $region2: #{gru4rec_forward.3} parent=1 // pred_check
      _
    $region3: #{gru4rec_forward.3} parent=1 // pred_check_branch
      %12 = sbr.rel (0) target = $region5
    $region4: #{gru4rec_forward.3} parent=1 // pred_region
      %s14 = ssub.s32 2048, 2048
      %15 = vsyncadd [#allocation5], %s14
      %s16 = sshll.u32 [#allocation4], 4
      %s17 = int_to_ptr.vmem [resolvable:$true] %s16
      %22 = dma.hbm_to_vmem [thread:$0]  %s0, 2048, %s17, [#allocation5], 128, 128, 8
    $region5: #{gru4rec_forward.3} parent=1 // pred_fallthru
      _
    // Predicated region
    $region6: #{gru4rec_forward.3} parent=1 // pred_check
      _
    $region7: #{gru4rec_forward.3} parent=1 // pred_check_branch
      %24 = sbr.rel (0) target = $region9
    $region8: #{gru4rec_forward.3} parent=1 // pred_region
      %s26 = ssub.s32 6144, 6144
      %27 = vsyncadd [#allocation8], %s26
      %s28 = sshll.u32 [#allocation7], 4
      %s29 = int_to_ptr.vmem [resolvable:$true] %s28
      %34 = dma.hbm_to_vmem [thread:$0]  %s1, 6144, %s29, [#allocation8], 384, 384, 24
    $region9: #{gru4rec_forward.3} parent=1 // pred_fallthru
      _
    // Predicated region
    $region10: #{gru4rec_forward.3} parent=1 // pred_check
      _
    $region11: #{gru4rec_forward.3} parent=1 // pred_check_branch
      %36 = sbr.rel (0) target = $region13
    $region12: #{gru4rec_forward.3} parent=1 // pred_region
      %s38 = ssub.s32 6144, 6144
      %39 = vsyncadd [#allocation8], %s38
      %s40 = sshll.u32 [#allocation9], 4
      %s41 = int_to_ptr.vmem [resolvable:$true] %s40
      %46 = dma.hbm_to_vmem [thread:$0]  %s2, 6144, %s41, [#allocation8], 384, 384, 24
    $region13: #{gru4rec_forward.3} parent=1 // pred_fallthru
      _
    // Predicated region
    $region14: #{gru4rec_forward.3} parent=1 // pred_check
      _
    $region15: #{gru4rec_forward.3} parent=1 // pred_check_branch
      %48 = sbr.rel (0) target = $region17
    $region16: #{gru4rec_forward.3} parent=1 // pred_region
      %49 = dma.done [#allocation5], 2048
    $region17: #{gru4rec_forward.3} parent=1 // pred_fallthru
      _
    // Predicated region
    $region18: #{gru4rec_forward.3} parent=1 // pred_check
      _
    $region19: #{gru4rec_forward.3} parent=1 // pred_check_branch
      %51 = sbr.rel (0) target = $region21
    $region20: #{gru4rec_forward.3} parent=1 // pred_region
      %52 = dma.done [#allocation8], 6144
    $region21: #{gru4rec_forward.3} parent=1 // pred_fallthru
      _
    // Predicated region
    $region22: #{gru4rec_forward.3} parent=1 // pred_check
      _
    $region23: #{gru4rec_forward.3} parent=1 // pred_check_branch
      %54 = sbr.rel (0) target = $region25
    $region24: #{gru4rec_forward.3} parent=1 // pred_region
      %55 = dma.done [#allocation8], 6144
    $region25: #{gru4rec_forward.3} parent=1 // pred_fallthru
      _
    %p56 = scmp.eq.s32.totalorder 0, 0
    // Predicated region
    $region26: #{gru4rec_forward.3} parent=1 // pred_check
      %p57 = pneg %p56
    $region27: #{gru4rec_forward.3} parent=1 // pred_check_branch
      %59 = sbr.rel (%p57) target = $region29
    $region28: #{gru4rec_forward.3} parent=1 // pred_region
      %60 = vst [vmem:[#allocation2] sm:$0xff] 0.0
      %61 = vst [vmem:[#allocation2 + $0x8] sm:$0xff] 0.0
    $region29: #{gru4rec_forward.3} parent=1 // pred_fallthru
      _
    %v62 = vld [vmem:[#allocation4] sm:$0xff]
    %v63 = vld [vmem:[#allocation4 + $0x8] sm:$0xff]
    %v64 = vld [vmem:[#allocation4 + $0x10] sm:$0xff]
    %v65 = vld [vmem:[#allocation4 + $0x18] sm:$0xff]
    %v66 = vld [vmem:[#allocation4 + $0x20] sm:$0xff]
    %v67 = vld [vmem:[#allocation4 + $0x28] sm:$0xff]
    %v68 = vld [vmem:[#allocation4 + $0x30] sm:$0xff]
    %v69 = vld [vmem:[#allocation4 + $0x38] sm:$0xff]
    %v70 = vld [vmem:[#allocation4 + $0x40] sm:$0xff]
    %v71 = vld [vmem:[#allocation4 + $0x48] sm:$0xff]
    %v72 = vld [vmem:[#allocation4 + $0x50] sm:$0xff]
    %v73 = vld [vmem:[#allocation4 + $0x58] sm:$0xff]
    %v74 = vld [vmem:[#allocation4 + $0x60] sm:$0xff]
    %v75 = vld [vmem:[#allocation4 + $0x68] sm:$0xff]
    %v76 = vld [vmem:[#allocation4 + $0x70] sm:$0xff]
    %v77 = vld [vmem:[#allocation4 + $0x78] sm:$0xff]
    %v78 = vld [vmem:[#allocation7] sm:$0xff]
    %v79 = vld [vmem:[#allocation7 + $0x8] sm:$0xff]
    %v80 = vld [vmem:[#allocation7 + $0x10] sm:$0xff]
    %v81 = vld [vmem:[#allocation7 + $0x18] sm:$0xff]
    %v82 = vld [vmem:[#allocation7 + $0x20] sm:$0xff]
    %v83 = vld [vmem:[#allocation7 + $0x28] sm:$0xff]
    %v84 = vld [vmem:[#allocation7 + $0x30] sm:$0xff]
    %v85 = vld [vmem:[#allocation7 + $0x38] sm:$0xff]
    %v86 = vld [vmem:[#allocation7 + $0x40] sm:$0xff]
    %v87 = vld [vmem:[#allocation7 + $0x48] sm:$0xff]
    %v88 = vld [vmem:[#allocation7 + $0x50] sm:$0xff]
    %v89 = vld [vmem:[#allocation7 + $0x58] sm:$0xff]
    %v90 = vld [vmem:[#allocation7 + $0x60] sm:$0xff]
    %v91 = vld [vmem:[#allocation7 + $0x68] sm:$0xff]
    %v92 = vld [vmem:[#allocation7 + $0x70] sm:$0xff]
    %v93 = vld [vmem:[#allocation7 + $0x78] sm:$0xff]
    %v94 = vld [vmem:[#allocation7 + $0x80] sm:$0xff]
    %v95 = vld [vmem:[#allocation7 + $0x88] sm:$0xff]
    %v96 = vld [vmem:[#allocation7 + $0x90] sm:$0xff]
    %v97 = vld [vmem:[#allocation7 + $0x98] sm:$0xff]
    %v98 = vld [vmem:[#allocation7 + $0xa0] sm:$0xff]
    %v99 = vld [vmem:[#allocation7 + $0xa8] sm:$0xff]
    %v100 = vld [vmem:[#allocation7 + $0xb0] sm:$0xff]
    %v101 = vld [vmem:[#allocation7 + $0xb8] sm:$0xff]
    %v102 = vld [vmem:[#allocation7 + $0xc0] sm:$0xff]
    %v103 = vld [vmem:[#allocation7 + $0xc8] sm:$0xff]
    %v104 = vld [vmem:[#allocation7 + $0xd0] sm:$0xff]
    %v105 = vld [vmem:[#allocation7 + $0xd8] sm:$0xff]
    %v106 = vld [vmem:[#allocation7 + $0xe0] sm:$0xff]
    %v107 = vld [vmem:[#allocation7 + $0xe8] sm:$0xff]
    %v108 = vld [vmem:[#allocation7 + $0xf0] sm:$0xff]
    %v109 = vld [vmem:[#allocation7 + $0xf8] sm:$0xff]
    %v110 = vld [vmem:[#allocation7 + $0x100] sm:$0xff]
    %v111 = vld [vmem:[#allocation7 + $0x108] sm:$0xff]
    %v112 = vld [vmem:[#allocation7 + $0x110] sm:$0xff]
    %v113 = vld [vmem:[#allocation7 + $0x118] sm:$0xff]
    %v114 = vld [vmem:[#allocation7 + $0x120] sm:$0xff]
    %v115 = vld [vmem:[#allocation7 + $0x128] sm:$0xff]
    %v116 = vld [vmem:[#allocation7 + $0x130] sm:$0xff]
    %v117 = vld [vmem:[#allocation7 + $0x138] sm:$0xff]
    %v118 = vld [vmem:[#allocation7 + $0x140] sm:$0xff]
    %v119 = vld [vmem:[#allocation7 + $0x148] sm:$0xff]
    %v120 = vld [vmem:[#allocation7 + $0x150] sm:$0xff]
    %v121 = vld [vmem:[#allocation7 + $0x158] sm:$0xff]
    %v122 = vld [vmem:[#allocation7 + $0x160] sm:$0xff]
    %v123 = vld [vmem:[#allocation7 + $0x168] sm:$0xff]
    %v124 = vld [vmem:[#allocation7 + $0x170] sm:$0xff]
    %v125 = vld [vmem:[#allocation7 + $0x178] sm:$0xff]
    %126 = vmatprep.subr.mxu0 %v79
    %127 = vmatpush1.msra.mxu0 %v78
    %128 = vmatprep.subr.mxu0 %v82
    %129 = vmatpush1.msra.mxu0 %v81
    %130 = vmatprep.subr.mxu0 %v85
    %131 = vmatpush1.msra.mxu0 %v84
    %132 = vmatprep.subr.mxu0 %v88
    %133 = vmatpush1.msra.mxu0 %v87
    %134 = vmatprep.subr.mxu0 %v91
    %135 = vmatpush1.msra.mxu0 %v90
    %136 = vmatprep.subr.mxu0 %v94
    %137 = vmatpush1.msra.mxu0 %v93
    %138 = vmatprep.subr.mxu0 %v97
    %139 = vmatpush1.msra.mxu0 %v96
    %140 = vmatprep.subr.mxu0 %v100
    %141 = vmatpush1.msra.mxu0 %v99
    %142 = vmatprep.subr.mxu0 %v103
    %143 = vmatpush1.msra.mxu0 %v102
    %144 = vmatprep.subr.mxu0 %v106
    %145 = vmatpush1.msra.mxu0 %v105
    %146 = vmatprep.subr.mxu0 %v109
    %147 = vmatpush1.msra.mxu0 %v108
    %148 = vmatprep.subr.mxu0 %v112
    %149 = vmatpush1.msra.mxu0 %v111
    %150 = vmatprep.subr.mxu0 %v115
    %151 = vmatpush1.msra.mxu0 %v114
    %152 = vmatprep.subr.mxu0 %v118
    %153 = vmatpush1.msra.mxu0 %v117
    %154 = vmatprep.subr.mxu0 %v121
    %155 = vmatpush1.msra.mxu0 %v120
    %156 = vmatprep.subr.mxu0 %v124
    %157 = vmatpush1.msra.mxu0 %v123
    %158 = vmatprep.subr.mxu0 0.0
    %159 = vmatpush1.msra.mxu0 0.0
    %160 = vmatprep.subr.mxu0 0.0
    %161 = vmatpush1.msra.mxu0 0.0
    %162 = vmatprep.subr.mxu0 0.0
    %163 = vmatpush1.msra.mxu0 0.0
    %164 = vmatprep.subr.mxu0 0.0
    %165 = vmatpush1.msra.mxu0 0.0
    %166 = vmatprep.subr.mxu0 0.0
    %167 = vmatpush1.msra.mxu0 0.0
    %168 = vmatprep.subr.mxu0 0.0
    %169 = vmatpush1.msra.mxu0 0.0
    %170 = vmatprep.subr.mxu0 0.0
    %171 = vmatpush1.msra.mxu0 0.0
    %172 = vmatprep.subr.mxu0 0.0
    %173 = vmatpush1.msra.mxu0 0.0
    %174 = vmatprep.subr.mxu0 0.0
    %175 = vmatpush1.msra.mxu0 0.0
    %176 = vmatprep.subr.mxu0 0.0
    %177 = vmatpush1.msra.mxu0 0.0
    %178 = vmatprep.subr.mxu0 0.0
    %179 = vmatpush1.msra.mxu0 0.0
    %180 = vmatprep.subr.mxu0 0.0
    %181 = vmatpush1.msra.mxu0 0.0
    %182 = vmatprep.subr.mxu0 0.0
    %183 = vmatpush1.msra.mxu0 0.0
    %184 = vmatprep.subr.mxu0 0.0
    %185 = vmatpush1.msra.mxu0 0.0
    %186 = vmatprep.subr.mxu0 0.0
    %187 = vmatpush1.msra.mxu0 0.0
    %188 = vmatprep.subr.mxu0 0.0
    %189 = vmatpush1.msra.mxu0 0.0
    %190 = vmatprep.mubr.f32.mxu0 0.0
    %191 = vmatmul.mubr.f32.gmra.mrb[0].mxu0 %v62
    %v192 = vpop.f32.mrb[0].mxu0
    %v193 = vadd.f32 0.0, %v192
    %v194 = vpop.f32.mrb[0].mxu0
    %v195 = vadd.f32 0.0, %v194
    %196 = vmatprep.mubr.f32.mxu0 0.0
    %197 = vmatmul.mubr.f32.gmra.mrb[0].mxu0 %v63
    %v198 = vpop.f32.mrb[0].mxu0
    %v199 = vadd.f32 0.0, %v198
    %v200 = vpop.f32.mrb[0].mxu0
    %v201 = vadd.f32 0.0, %v200
    %202 = vmatprep.mubr.f32.mxu0 0.0
    %203 = vmatmul.mubr.f32.gmra.mrb[0].mxu0 %v64
    %v204 = vpop.f32.mrb[0].mxu0
    %v205 = vadd.f32 0.0, %v204
    %v206 = vpop.f32.mrb[0].mxu0
    %v207 = vadd.f32 0.0, %v206
    %208 = vmatprep.mubr.f32.mxu0 0.0
    %209 = vmatmul.mubr.f32.gmra.mrb[0].mxu0 %v65
    %v210 = vpop.f32.mrb[0].mxu0
    %v211 = vadd.f32 0.0, %v210
    %v212 = vpop.f32.mrb[0].mxu0
    %v213 = vadd.f32 0.0, %v212
    %214 = vmatprep.mubr.f32.mxu0 0.0
    %215 = vmatmul.mubr.f32.gmra.mrb[0].mxu0 %v66
    %v216 = vpop.f32.mrb[0].mxu0
    %v217 = vadd.f32 0.0, %v216
    %v218 = vpop.f32.mrb[0].mxu0
    %v219 = vadd.f32 0.0, %v218
    %220 = vmatprep.mubr.f32.mxu0 0.0
    %221 = vmatmul.mubr.f32.gmra.mrb[0].mxu0 %v67
    %v222 = vpop.f32.mrb[0].mxu0
    %v223 = vadd.f32 0.0, %v222
    %v224 = vpop.f32.mrb[0].mxu0
    %v225 = vadd.f32 0.0, %v224
    %226 = vmatprep.mubr.f32.mxu0 0.0
    %227 = vmatmul.mubr.f32.gmra.mrb[0].mxu0 %v68
    %v228 = vpop.f32.mrb[0].mxu0
    %v229 = vadd.f32 0.0, %v228
    %v230 = vpop.f32.mrb[0].mxu0
    %v231 = vadd.f32 0.0, %v230
    %232 = vmatprep.mubr.f32.mxu0 0.0
    %233 = vmatmul.mubr.f32.gmra.mrb[0].mxu0 %v69
    %v234 = vpop.f32.mrb[0].mxu0
    %v235 = vadd.f32 0.0, %v234
    %v236 = vpop.f32.mrb[0].mxu0
    %v237 = vadd.f32 0.0, %v236
    %238 = vmatprep.mubr.f32.mxu0 0.0
    %239 = vmatmul.mubr.f32.gmra.mrb[0].mxu0 %v70
    %v240 = vpop.f32.mrb[0].mxu0
    %v241 = vadd.f32 0.0, %v240
    %v242 = vpop.f32.mrb[0].mxu0
    %v243 = vadd.f32 0.0, %v242
    %244 = vmatprep.mubr.f32.mxu0 0.0
    %245 = vmatmul.mubr.f32.gmra.mrb[0].mxu0 %v71
    %v246 = vpop.f32.mrb[0].mxu0
    %v247 = vadd.f32 0.0, %v246
    %v248 = vpop.f32.mrb[0].mxu0
    %v249 = vadd.f32 0.0, %v248
    %250 = vmatprep.mubr.f32.mxu0 0.0
    %251 = vmatmul.mubr.f32.gmra.mrb[0].mxu0 %v72
    %v252 = vpop.f32.mrb[0].mxu0
    %v253 = vadd.f32 0.0, %v252
    %v254 = vpop.f32.mrb[0].mxu0
    %v255 = vadd.f32 0.0, %v254
    %256 = vmatprep.mubr.f32.mxu0 0.0
    %257 = vmatmul.mubr.f32.gmra.mrb[0].mxu0 %v73
    %v258 = vpop.f32.mrb[0].mxu0
    %v259 = vadd.f32 0.0, %v258
    %v260 = vpop.f32.mrb[0].mxu0
    %v261 = vadd.f32 0.0, %v260
    %262 = vmatprep.mubr.f32.mxu0 0.0
    %263 = vmatmul.mubr.f32.gmra.mrb[0].mxu0 %v74
    %v264 = vpop.f32.mrb[0].mxu0
    %v265 = vadd.f32 0.0, %v264
    %v266 = vpop.f32.mrb[0].mxu0
    %v267 = vadd.f32 0.0, %v266
    %268 = vmatprep.mubr.f32.mxu0 0.0
    %269 = vmatmul.mubr.f32.gmra.mrb[0].mxu0 %v75
    %v270 = vpop.f32.mrb[0].mxu0
    %v271 = vadd.f32 0.0, %v270
    %v272 = vpop.f32.mrb[0].mxu0
    %v273 = vadd.f32 0.0, %v272
    %274 = vmatprep.mubr.f32.mxu0 0.0
    %275 = vmatmul.mubr.f32.gmra.mrb[0].mxu0 %v76
    %v276 = vpop.f32.mrb[0].mxu0
    %v277 = vadd.f32 0.0, %v276
    %v278 = vpop.f32.mrb[0].mxu0
    %v279 = vadd.f32 0.0, %v278
    %280 = vmatprep.mubr.f32.mxu0 0.0
    %281 = vmatmul.mubr.f32.gmra.mrb[0].mxu0 %v77
    %v282 = vpop.f32.mrb[0].mxu0
    %v283 = vadd.f32 0.0, %v282
    %v284 = vpop.f32.mrb[0].mxu0
    %v285 = vadd.f32 0.0, %v284
    %286 = vdwg.mxu0
    %287 = vmatprep.subr.mxu0 0.0
    %288 = vmatpush1.msra.mxu0 %v80
    %289 = vmatprep.subr.mxu0 0.0
    %290 = vmatpush1.msra.mxu0 %v83
    %291 = vmatprep.subr.mxu0 0.0
    %292 = vmatpush1.msra.mxu0 %v86
    %293 = vmatprep.subr.mxu0 0.0
    %294 = vmatpush1.msra.mxu0 %v89
    %295 = vmatprep.subr.mxu0 0.0
    %296 = vmatpush1.msra.mxu0 %v92
    %297 = vmatprep.subr.mxu0 0.0
    %298 = vmatpush1.msra.mxu0 %v95
    %299 = vmatprep.subr.mxu0 0.0
    %300 = vmatpush1.msra.mxu0 %v98
    %301 = vmatprep.subr.mxu0 0.0
    %302 = vmatpush1.msra.mxu0 %v101
    %303 = vmatprep.subr.mxu0 0.0
    %304 = vmatpush1.msra.mxu0 %v104
    %305 = vmatprep.subr.mxu0 0.0
    %306 = vmatpush1.msra.mxu0 %v107
    %307 = vmatprep.subr.mxu0 0.0
    %308 = vmatpush1.msra.mxu0 %v110
    %309 = vmatprep.subr.mxu0 0.0
    %310 = vmatpush1.msra.mxu0 %v113
    %311 = vmatprep.subr.mxu0 0.0
    %312 = vmatpush1.msra.mxu0 %v116
    %313 = vmatprep.subr.mxu0 0.0
    %314 = vmatpush1.msra.mxu0 %v119
    %315 = vmatprep.subr.mxu0 0.0
    %316 = vmatpush1.msra.mxu0 %v122
    %317 = vmatprep.subr.mxu0 0.0
    %318 = vmatpush1.msra.mxu0 %v125
    %319 = vmatprep.subr.mxu0 0.0
    %320 = vmatpush1.msra.mxu0 0.0
    %321 = vmatprep.subr.mxu0 0.0
    %322 = vmatpush1.msra.mxu0 0.0
    %323 = vmatprep.subr.mxu0 0.0
    %324 = vmatpush1.msra.mxu0 0.0
    %325 = vmatprep.subr.mxu0 0.0
    %326 = vmatpush1.msra.mxu0 0.0
    %327 = vmatprep.subr.mxu0 0.0
    %328 = vmatpush1.msra.mxu0 0.0
    %329 = vmatprep.subr.mxu0 0.0
    %330 = vmatpush1.msra.mxu0 0.0
    %331 = vmatprep.subr.mxu0 0.0
    %332 = vmatpush1.msra.mxu0 0.0
    %333 = vmatprep.subr.mxu0 0.0
    %334 = vmatpush1.msra.mxu0 0.0
    %335 = vmatprep.subr.mxu0 0.0
    %336 = vmatpush1.msra.mxu0 0.0
    %337 = vmatprep.subr.mxu0 0.0
    %338 = vmatpush1.msra.mxu0 0.0
    %339 = vmatprep.subr.mxu0 0.0
    %340 = vmatpush1.msra.mxu0 0.0
    %341 = vmatprep.subr.mxu0 0.0
    %342 = vmatpush1.msra.mxu0 0.0
    %343 = vmatprep.subr.mxu0 0.0
    %344 = vmatpush1.msra.mxu0 0.0
    %345 = vmatprep.subr.mxu0 0.0
    %346 = vmatpush1.msra.mxu0 0.0
    %347 = vmatprep.subr.mxu0 0.0
    %348 = vmatpush1.msra.mxu0 0.0
    %349 = vmatprep.subr.mxu0 0.0
    %350 = vmatpush1.msra.mxu0 0.0
    %351 = vmatprep.mubr.f32.mxu0 0.0
    %352 = vmatmul.mubr.f32.gmra.mrb[0].mxu0 %v62
    %v353 = vpop.f32.mrb[0].mxu0
    %v354 = vadd.f32 0.0, %v353
    %v355 = vpop.f32.mrb[0].mxu0
    %356 = vmatprep.mubr.f32.mxu0 0.0
    %357 = vmatmul.mubr.f32.gmra.mrb[0].mxu0 %v63
    %v358 = vpop.f32.mrb[0].mxu0
    %v359 = vadd.f32 0.0, %v358
    %v360 = vpop.f32.mrb[0].mxu0
    %361 = vmatprep.mubr.f32.mxu0 0.0
    %362 = vmatmul.mubr.f32.gmra.mrb[0].mxu0 %v64
    %v363 = vpop.f32.mrb[0].mxu0
    %v364 = vadd.f32 0.0, %v363
    %v365 = vpop.f32.mrb[0].mxu0
    %366 = vmatprep.mubr.f32.mxu0 0.0
    %367 = vmatmul.mubr.f32.gmra.mrb[0].mxu0 %v65
    %v368 = vpop.f32.mrb[0].mxu0
    %v369 = vadd.f32 0.0, %v368
    %v370 = vpop.f32.mrb[0].mxu0
    %371 = vmatprep.mubr.f32.mxu0 0.0
    %372 = vmatmul.mubr.f32.gmra.mrb[0].mxu0 %v66
    %v373 = vpop.f32.mrb[0].mxu0
    %v374 = vadd.f32 0.0, %v373
    %v375 = vpop.f32.mrb[0].mxu0
    %376 = vmatprep.mubr.f32.mxu0 0.0
    %377 = vmatmul.mubr.f32.gmra.mrb[0].mxu0 %v67
    %v378 = vpop.f32.mrb[0].mxu0
    %v379 = vadd.f32 0.0, %v378
    %v380 = vpop.f32.mrb[0].mxu0
    %381 = vmatprep.mubr.f32.mxu0 0.0
    %382 = vmatmul.mubr.f32.gmra.mrb[0].mxu0 %v68
    %v383 = vpop.f32.mrb[0].mxu0
    %v384 = vadd.f32 0.0, %v383
    %v385 = vpop.f32.mrb[0].mxu0
    %386 = vmatprep.mubr.f32.mxu0 0.0
    %387 = vmatmul.mubr.f32.gmra.mrb[0].mxu0 %v69
    %v388 = vpop.f32.mrb[0].mxu0
    %v389 = vadd.f32 0.0, %v388
    %v390 = vpop.f32.mrb[0].mxu0
    %391 = vmatprep.mubr.f32.mxu0 0.0
    %392 = vmatmul.mubr.f32.gmra.mrb[0].mxu0 %v70
    %v393 = vpop.f32.mrb[0].mxu0
    %v394 = vadd.f32 0.0, %v393
    %v395 = vpop.f32.mrb[0].mxu0
    %396 = vmatprep.mubr.f32.mxu0 0.0
    %397 = vmatmul.mubr.f32.gmra.mrb[0].mxu0 %v71
    %v398 = vpop.f32.mrb[0].mxu0
    %v399 = vadd.f32 0.0, %v398
    %v400 = vpop.f32.mrb[0].mxu0
    %401 = vmatprep.mubr.f32.mxu0 0.0
    %402 = vmatmul.mubr.f32.gmra.mrb[0].mxu0 %v72
    %v403 = vpop.f32.mrb[0].mxu0
    %v404 = vadd.f32 0.0, %v403
    %v405 = vpop.f32.mrb[0].mxu0
    %406 = vmatprep.mubr.f32.mxu0 0.0
    %407 = vmatmul.mubr.f32.gmra.mrb[0].mxu0 %v73
    %v408 = vpop.f32.mrb[0].mxu0
    %v409 = vadd.f32 0.0, %v408
    %v410 = vpop.f32.mrb[0].mxu0
    %411 = vmatprep.mubr.f32.mxu0 0.0
    %412 = vmatmul.mubr.f32.gmra.mrb[0].mxu0 %v74
    %v413 = vpop.f32.mrb[0].mxu0
    %v414 = vadd.f32 0.0, %v413
    %v415 = vpop.f32.mrb[0].mxu0
    %416 = vmatprep.mubr.f32.mxu0 0.0
    %417 = vmatmul.mubr.f32.gmra.mrb[0].mxu0 %v75
    %v418 = vpop.f32.mrb[0].mxu0
    %v419 = vadd.f32 0.0, %v418
    %v420 = vpop.f32.mrb[0].mxu0
    %421 = vmatprep.mubr.f32.mxu0 0.0
    %422 = vmatmul.mubr.f32.gmra.mrb[0].mxu0 %v76
    %v423 = vpop.f32.mrb[0].mxu0
    %v424 = vadd.f32 0.0, %v423
    %v425 = vpop.f32.mrb[0].mxu0
    %426 = vmatprep.mubr.f32.mxu0 0.0
    %427 = vmatmul.mubr.f32.gmra.mrb[0].mxu0 %v77
    %v428 = vpop.f32.mrb[0].mxu0
    %v429 = vadd.f32 0.0, %v428
    %v430 = vpop.f32.mrb[0].mxu0
    %431 = vdwg.mxu0
    %432 = vst [vmem:[#allocation3] sm:$0xff] %v193
    %433 = vst [vmem:[#allocation3 + $0x8] sm:$0xff] %v195
    %434 = vst [vmem:[#allocation3 + $0x10] sm:$0xff] %v354
    %435 = vst [vmem:[#allocation3 + $0x18] sm:$0xff] %v199
    %436 = vst [vmem:[#allocation3 + $0x20] sm:$0xff] %v201
    %437 = vst [vmem:[#allocation3 + $0x28] sm:$0xff] %v359
    %438 = vst [vmem:[#allocation3 + $0x30] sm:$0xff] %v205
    %439 = vst [vmem:[#allocation3 + $0x38] sm:$0xff] %v207
    %440 = vst [vmem:[#allocation3 + $0x40] sm:$0xff] %v364
    %441 = vst [vmem:[#allocation3 + $0x48] sm:$0xff] %v211
    %442 = vst [vmem:[#allocation3 + $0x50] sm:$0xff] %v213
    %443 = vst [vmem:[#allocation3 + $0x58] sm:$0xff] %v369
    %444 = vst [vmem:[#allocation3 + $0x60] sm:$0xff] %v217
    %445 = vst [vmem:[#allocation3 + $0x68] sm:$0xff] %v219
    %446 = vst [vmem:[#allocation3 + $0x70] sm:$0xff] %v374
    %447 = vst [vmem:[#allocation3 + $0x78] sm:$0xff] %v223
    %448 = vst [vmem:[#allocation3 + $0x80] sm:$0xff] %v225
    %449 = vst [vmem:[#allocation3 + $0x88] sm:$0xff] %v379
    %450 = vst [vmem:[#allocation3 + $0x90] sm:$0xff] %v229
    %451 = vst [vmem:[#allocation3 + $0x98] sm:$0xff] %v231
    %452 = vst [vmem:[#allocation3 + $0xa0] sm:$0xff] %v384
    %453 = vst [vmem:[#allocation3 + $0xa8] sm:$0xff] %v235
    %454 = vst [vmem:[#allocation3 + $0xb0] sm:$0xff] %v237
    %455 = vst [vmem:[#allocation3 + $0xb8] sm:$0xff] %v389
    %456 = vst [vmem:[#allocation3 + $0xc0] sm:$0xff] %v241
    %457 = vst [vmem:[#allocation3 + $0xc8] sm:$0xff] %v243
    %458 = vst [vmem:[#allocation3 + $0xd0] sm:$0xff] %v394
    %459 = vst [vmem:[#allocation3 + $0xd8] sm:$0xff] %v247
    %460 = vst [vmem:[#allocation3 + $0xe0] sm:$0xff] %v249
    %461 = vst [vmem:[#allocation3 + $0xe8] sm:$0xff] %v399
    %462 = vst [vmem:[#allocation3 + $0xf0] sm:$0xff] %v253
    %463 = vst [vmem:[#allocation3 + $0xf8] sm:$0xff] %v255
    %464 = vst [vmem:[#allocation3 + $0x100] sm:$0xff] %v404
    %465 = vst [vmem:[#allocation3 + $0x108] sm:$0xff] %v259
    %466 = vst [vmem:[#allocation3 + $0x110] sm:$0xff] %v261
    %467 = vst [vmem:[#allocation3 + $0x118] sm:$0xff] %v409
    %468 = vst [vmem:[#allocation3 + $0x120] sm:$0xff] %v265
    %469 = vst [vmem:[#allocation3 + $0x128] sm:$0xff] %v267
    %470 = vst [vmem:[#allocation3 + $0x130] sm:$0xff] %v414
    %471 = vst [vmem:[#allocation3 + $0x138] sm:$0xff] %v271
    %472 = vst [vmem:[#allocation3 + $0x140] sm:$0xff] %v273
    %473 = vst [vmem:[#allocation3 + $0x148] sm:$0xff] %v419
    %474 = vst [vmem:[#allocation3 + $0x150] sm:$0xff] %v277
    %475 = vst [vmem:[#allocation3 + $0x158] sm:$0xff] %v279
    %476 = vst [vmem:[#allocation3 + $0x160] sm:$0xff] %v424
    %477 = vst [vmem:[#allocation3 + $0x168] sm:$0xff] %v283
    %478 = vst [vmem:[#allocation3 + $0x170] sm:$0xff] %v285
    %479 = vst [vmem:[#allocation3 + $0x178] sm:$0xff] %v429
    %v480 = vld [vmem:[#allocation2] sm:$0xff]
    %v481 = vld [vmem:[#allocation2 + $0x8] sm:$0xff]
    %v482 = vld [vmem:[#allocation9] sm:$0xff]
    %v483 = vld [vmem:[#allocation9 + $0x8] sm:$0xff]
    %v484 = vld [vmem:[#allocation9 + $0x10] sm:$0xff]
    %v485 = vld [vmem:[#allocation9 + $0x18] sm:$0xff]
    %v486 = vld [vmem:[#allocation9 + $0x20] sm:$0xff]
    %v487 = vld [vmem:[#allocation9 + $0x28] sm:$0xff]
    %v488 = vld [vmem:[#allocation9 + $0x30] sm:$0xff]
    %v489 = vld [vmem:[#allocation9 + $0x38] sm:$0xff]
    %v490 = vld [vmem:[#allocation9 + $0x40] sm:$0xff]
    %v491 = vld [vmem:[#allocation9 + $0x48] sm:$0xff]
    %v492 = vld [vmem:[#allocation9 + $0x50] sm:$0xff]
    %v493 = vld [vmem:[#allocation9 + $0x58] sm:$0xff]
    %v494 = vld [vmem:[#allocation9 + $0x60] sm:$0xff]
    %v495 = vld [vmem:[#allocation9 + $0x68] sm:$0xff]
    %v496 = vld [vmem:[#allocation9 + $0x70] sm:$0xff]
    %v497 = vld [vmem:[#allocation9 + $0x78] sm:$0xff]
    %v498 = vld [vmem:[#allocation9 + $0x80] sm:$0xff]
    %v499 = vld [vmem:[#allocation9 + $0x88] sm:$0xff]
    %v500 = vld [vmem:[#allocation9 + $0x90] sm:$0xff]
    %v501 = vld [vmem:[#allocation9 + $0x98] sm:$0xff]
    %v502 = vld [vmem:[#allocation9 + $0xa0] sm:$0xff]
    %v503 = vld [vmem:[#allocation9 + $0xa8] sm:$0xff]
    %v504 = vld [vmem:[#allocation9 + $0xb0] sm:$0xff]
    %v505 = vld [vmem:[#allocation9 + $0xb8] sm:$0xff]
    %v506 = vld [vmem:[#allocation9 + $0xc0] sm:$0xff]
    %v507 = vld [vmem:[#allocation9 + $0xc8] sm:$0xff]
    %v508 = vld [vmem:[#allocation9 + $0xd0] sm:$0xff]
    %v509 = vld [vmem:[#allocation9 + $0xd8] sm:$0xff]
    %v510 = vld [vmem:[#allocation9 + $0xe0] sm:$0xff]
    %v511 = vld [vmem:[#allocation9 + $0xe8] sm:$0xff]
    %v512 = vld [vmem:[#allocation9 + $0xf0] sm:$0xff]
    %v513 = vld [vmem:[#allocation9 + $0xf8] sm:$0xff]
    %v514 = vld [vmem:[#allocation9 + $0x100] sm:$0xff]
    %v515 = vld [vmem:[#allocation9 + $0x108] sm:$0xff]
    %v516 = vld [vmem:[#allocation9 + $0x110] sm:$0xff]
    %v517 = vld [vmem:[#allocation9 + $0x118] sm:$0xff]
    %v518 = vld [vmem:[#allocation9 + $0x120] sm:$0xff]
    %v519 = vld [vmem:[#allocation9 + $0x128] sm:$0xff]
    %v520 = vld [vmem:[#allocation9 + $0x130] sm:$0xff]
    %v521 = vld [vmem:[#allocation9 + $0x138] sm:$0xff]
    %v522 = vld [vmem:[#allocation9 + $0x140] sm:$0xff]
    %v523 = vld [vmem:[#allocation9 + $0x148] sm:$0xff]
    %v524 = vld [vmem:[#allocation9 + $0x150] sm:$0xff]
    %v525 = vld [vmem:[#allocation9 + $0x158] sm:$0xff]
    %v526 = vld [vmem:[#allocation9 + $0x160] sm:$0xff]
    %v527 = vld [vmem:[#allocation9 + $0x168] sm:$0xff]
    %v528 = vld [vmem:[#allocation9 + $0x170] sm:$0xff]
    %v529 = vld [vmem:[#allocation9 + $0x178] sm:$0xff]
    %530 = vmatprep.subr.mxu0 %v483
    %531 = vmatpush1.msra.mxu0 %v482
    %532 = vmatprep.subr.mxu0 %v486
    %533 = vmatpush1.msra.mxu0 %v485
    %534 = vmatprep.subr.mxu0 %v489
    %535 = vmatpush1.msra.mxu0 %v488
    %536 = vmatprep.subr.mxu0 %v492
    %537 = vmatpush1.msra.mxu0 %v491
    %538 = vmatprep.subr.mxu0 %v495
    %539 = vmatpush1.msra.mxu0 %v494
    %540 = vmatprep.subr.mxu0 %v498
    %541 = vmatpush1.msra.mxu0 %v497
    %542 = vmatprep.subr.mxu0 %v501
    %543 = vmatpush1.msra.mxu0 %v500
    %544 = vmatprep.subr.mxu0 %v504
    %545 = vmatpush1.msra.mxu0 %v503
    %546 = vmatprep.subr.mxu0 %v507
    %547 = vmatpush1.msra.mxu0 %v506
    %548 = vmatprep.subr.mxu0 %v510
    %549 = vmatpush1.msra.mxu0 %v509
    %550 = vmatprep.subr.mxu0 %v513
    %551 = vmatpush1.msra.mxu0 %v512
    %552 = vmatprep.subr.mxu0 %v516
    %553 = vmatpush1.msra.mxu0 %v515
    %554 = vmatprep.subr.mxu0 %v519
    %555 = vmatpush1.msra.mxu0 %v518
    %556 = vmatprep.subr.mxu0 %v522
    %557 = vmatpush1.msra.mxu0 %v521
    %558 = vmatprep.subr.mxu0 %v525
    %559 = vmatpush1.msra.mxu0 %v524
    %560 = vmatprep.subr.mxu0 %v528
    %561 = vmatpush1.msra.mxu0 %v527
    %562 = vmatprep.subr.mxu0 0.0
    %563 = vmatpush1.msra.mxu0 0.0
    %564 = vmatprep.subr.mxu0 0.0
    %565 = vmatpush1.msra.mxu0 0.0
    %566 = vmatprep.subr.mxu0 0.0
    %567 = vmatpush1.msra.mxu0 0.0
    %568 = vmatprep.subr.mxu0 0.0
    %569 = vmatpush1.msra.mxu0 0.0
    %570 = vmatprep.subr.mxu0 0.0
    %571 = vmatpush1.msra.mxu0 0.0
    %572 = vmatprep.subr.mxu0 0.0
    %573 = vmatpush1.msra.mxu0 0.0
    %574 = vmatprep.subr.mxu0 0.0
    %575 = vmatpush1.msra.mxu0 0.0
    %576 = vmatprep.subr.mxu0 0.0
    %577 = vmatpush1.msra.mxu0 0.0
    %578 = vmatprep.subr.mxu0 0.0
    %579 = vmatpush1.msra.mxu0 0.0
    %580 = vmatprep.subr.mxu0 0.0
    %581 = vmatpush1.msra.mxu0 0.0
    %582 = vmatprep.subr.mxu0 0.0
    %583 = vmatpush1.msra.mxu0 0.0
    %584 = vmatprep.subr.mxu0 0.0
    %585 = vmatpush1.msra.mxu0 0.0
    %586 = vmatprep.subr.mxu0 0.0
    %587 = vmatpush1.msra.mxu0 0.0
    %588 = vmatprep.subr.mxu0 0.0
    %589 = vmatpush1.msra.mxu0 0.0
    %590 = vmatprep.subr.mxu0 0.0
    %591 = vmatpush1.msra.mxu0 0.0
    %592 = vmatprep.subr.mxu0 0.0
    %593 = vmatpush1.msra.mxu0 0.0
    %594 = vmatprep.mubr.f32.mxu0 0.0
    %595 = vmatmul.mubr.f32.gmra.mrb[0].mxu0 %v480
    %v596 = vpop.f32.mrb[0].mxu0
    %v597 = vadd.f32 0.0, %v596
    %v598 = vpop.f32.mrb[0].mxu0
    %v599 = vadd.f32 0.0, %v598
    %600 = vmatprep.mubr.f32.mxu0 0.0
    %601 = vmatmul.mubr.f32.gmra.mrb[0].mxu0 %v481
    %v602 = vpop.f32.mrb[0].mxu0
    %v603 = vadd.f32 0.0, %v602
    %v604 = vpop.f32.mrb[0].mxu0
    %v605 = vadd.f32 0.0, %v604
    %606 = vdwg.mxu0
    %607 = vmatprep.subr.mxu0 0.0
    %608 = vmatpush1.msra.mxu0 %v484
    %609 = vmatprep.subr.mxu0 0.0
    %610 = vmatpush1.msra.mxu0 %v487
    %611 = vmatprep.subr.mxu0 0.0
    %612 = vmatpush1.msra.mxu0 %v490
    %613 = vmatprep.subr.mxu0 0.0
    %614 = vmatpush1.msra.mxu0 %v493
    %615 = vmatprep.subr.mxu0 0.0
    %616 = vmatpush1.msra.mxu0 %v496
    %617 = vmatprep.subr.mxu0 0.0
    %618 = vmatpush1.msra.mxu0 %v499
    %619 = vmatprep.subr.mxu0 0.0
    %620 = vmatpush1.msra.mxu0 %v502
    %621 = vmatprep.subr.mxu0 0.0
    %622 = vmatpush1.msra.mxu0 %v505
    %623 = vmatprep.subr.mxu0 0.0
    %624 = vmatpush1.msra.mxu0 %v508
    %625 = vmatprep.subr.mxu0 0.0
    %626 = vmatpush1.msra.mxu0 %v511
    %627 = vmatprep.subr.mxu0 0.0
    %628 = vmatpush1.msra.mxu0 %v514
    %629 = vmatprep.subr.mxu0 0.0
    %630 = vmatpush1.msra.mxu0 %v517
    %631 = vmatprep.subr.mxu0 0.0
    %632 = vmatpush1.msra.mxu0 %v520
    %633 = vmatprep.subr.mxu0 0.0
    %634 = vmatpush1.msra.mxu0 %v523
    %635 = vmatprep.subr.mxu0 0.0
    %636 = vmatpush1.msra.mxu0 %v526
    %637 = vmatprep.subr.mxu0 0.0
    %638 = vmatpush1.msra.mxu0 %v529
    %639 = vmatprep.subr.mxu0 0.0
    %640 = vmatpush1.msra.mxu0 0.0
    %641 = vmatprep.subr.mxu0 0.0
    %642 = vmatpush1.msra.mxu0 0.0
    %643 = vmatprep.subr.mxu0 0.0
    %644 = vmatpush1.msra.mxu0 0.0
    %645 = vmatprep.subr.mxu0 0.0
    %646 = vmatpush1.msra.mxu0 0.0
    %647 = vmatprep.subr.mxu0 0.0
    %648 = vmatpush1.msra.mxu0 0.0
    %649 = vmatprep.subr.mxu0 0.0
    %650 = vmatpush1.msra.mxu0 0.0
    %651 = vmatprep.subr.mxu0 0.0
    %652 = vmatpush1.msra.mxu0 0.0
    %653 = vmatprep.subr.mxu0 0.0
    %654 = vmatpush1.msra.mxu0 0.0
    %655 = vmatprep.subr.mxu0 0.0
    %656 = vmatpush1.msra.mxu0 0.0
    %657 = vmatprep.subr.mxu0 0.0
    %658 = vmatpush1.msra.mxu0 0.0
    %659 = vmatprep.subr.mxu0 0.0
    %660 = vmatpush1.msra.mxu0 0.0
    %661 = vmatprep.subr.mxu0 0.0
    %662 = vmatpush1.msra.mxu0 0.0
    %663 = vmatprep.subr.mxu0 0.0
    %664 = vmatpush1.msra.mxu0 0.0
    %665 = vmatprep.subr.mxu0 0.0
    %666 = vmatpush1.msra.mxu0 0.0
    %667 = vmatprep.subr.mxu0 0.0
    %668 = vmatpush1.msra.mxu0 0.0
    %669 = vmatprep.subr.mxu0 0.0
    %670 = vmatpush1.msra.mxu0 0.0
    %671 = vmatprep.mubr.f32.mxu0 0.0
    %672 = vmatmul.mubr.f32.gmra.mrb[0].mxu0 %v480
    %v673 = vpop.f32.mrb[0].mxu0
    %v674 = vadd.f32 0.0, %v673
    %v675 = vpop.f32.mrb[0].mxu0
    %676 = vmatprep.mubr.f32.mxu0 0.0
    %677 = vmatmul.mubr.f32.gmra.mrb[0].mxu0 %v481
    %v678 = vpop.f32.mrb[0].mxu0
    %v679 = vadd.f32 0.0, %v678
    %v680 = vpop.f32.mrb[0].mxu0
    %681 = vdwg.mxu0
    %v682 = vld [vmem:[#allocation3] sm:$0xff]
    %v683 = vld [vmem:[#allocation3 + $0x8] sm:$0xff]
    %v684 = vld [vmem:[#allocation3 + $0x10] sm:$0xff]
    %v685 = vld [vmem:[#allocation3 + $0x18] sm:$0xff]
    %v686 = vld [vmem:[#allocation3 + $0x20] sm:$0xff]
    %v687 = vld [vmem:[#allocation3 + $0x28] sm:$0xff]
    %v688 = vadd.f32 %v682, %v597
    %v689 = vadd.f32 %v685, %v603
    %v690 = vxor.u32 %v688, 2147483648
    %v691 = vxor.u32 %v689, 2147483648
    %v692 = vmul.f32 %v690, 1.442695
    %v693 = vpow.pop %v692
    %v694 = vmul.f32 %v691, 1.442695
    %v695 = vpow.pop %v694
    %v696 = vadd.f32 %v693, 1.0
    %v697 = vadd.f32 %v695, 1.0
    %v698 = vrcp.pop %v696
    %v699 = vmul.f32 1.0, %v698
    %v700 = vrcp.pop %v697
    %v701 = vmul.f32 1.0, %v700
    %v702 = vadd.f32 %v683, %v599
    %v703 = vadd.f32 %v686, %v605
    %v704 = vxor.u32 %v702, 2147483648
    %v705 = vxor.u32 %v703, 2147483648
    %v706 = vmul.f32 %v704, 1.442695
    %v707 = vpow.pop %v706
    %v708 = vmul.f32 %v705, 1.442695
    %v709 = vpow.pop %v708
    %v710 = vadd.f32 %v707, 1.0
    %v711 = vadd.f32 %v709, 1.0
    %v712 = vrcp.pop %v710
    %v713 = vmul.f32 1.0, %v712
    %v714 = vrcp.pop %v711
    %v715 = vmul.f32 1.0, %v714
    %v716 = vmul.f32 %v699, %v674
    %v717 = vmul.f32 %v701, %v679
    %v718 = vadd.f32 %v684, %v716
    %v719 = vadd.f32 %v687, %v717
    %v720 = vtanh.pop %v718
    %v721 = vtanh.pop %v719
    %v722 = vsub.f32 1.0, %v713
    %v723 = vsub.f32 1.0, %v715
    %v724 = vmul.f32 %v722, %v720
    %v725 = vmul.f32 %v723, %v721
    %v726 = vmul.f32 %v713, %v480
    %v727 = vmul.f32 %v715, %v481
    %v728 = vadd.f32 %v724, %v726
    %v729 = vadd.f32 %v725, %v727
    %730 = vst [vmem:[#allocation2] sm:$0xff] %v728
    %731 = vst [vmem:[#allocation2 + $0x8] sm:$0xff] %v729
    %732 = vst [vmem:[#allocation10] sm:$0xff] %v728
    %733 = vst [vmem:[#allocation10 + $0x8] sm:$0xff] %v729
    %v734 = vld [vmem:[#allocation2] sm:$0xff]
    %v735 = vld [vmem:[#allocation2 + $0x8] sm:$0xff]
    %v736 = vld [vmem:[#allocation9] sm:$0xff]
    %v737 = vld [vmem:[#allocation9 + $0x8] sm:$0xff]
    %v738 = vld [vmem:[#allocation9 + $0x10] sm:$0xff]
    %v739 = vld [vmem:[#allocation9 + $0x18] sm:$0xff]
    %v740 = vld [vmem:[#allocation9 + $0x20] sm:$0xff]
    %v741 = vld [vmem:[#allocation9 + $0x28] sm:$0xff]
    %v742 = vld [vmem:[#allocation9 + $0x30] sm:$0xff]
    %v743 = vld [vmem:[#allocation9 + $0x38] sm:$0xff]
    %v744 = vld [vmem:[#allocation9 + $0x40] sm:$0xff]
    %v745 = vld [vmem:[#allocation9 + $0x48] sm:$0xff]
    %v746 = vld [vmem:[#allocation9 + $0x50] sm:$0xff]
    %v747 = vld [vmem:[#allocation9 + $0x58] sm:$0xff]
    %v748 = vld [vmem:[#allocation9 + $0x60] sm:$0xff]
    %v749 = vld [vmem:[#allocation9 + $0x68] sm:$0xff]
    %v750 = vld [vmem:[#allocation9 + $0x70] sm:$0xff]
    %v751 = vld [vmem:[#allocation9 + $0x78] sm:$0xff]
    %v752 = vld [vmem:[#allocation9 + $0x80] sm:$0xff]
    %v753 = vld [vmem:[#allocation9 + $0x88] sm:$0xff]
    %v754 = vld [vmem:[#allocation9 + $0x90] sm:$0xff]
    %v755 = vld [vmem:[#allocation9 + $0x98] sm:$0xff]
    %v756 = vld [vmem:[#allocation9 + $0xa0] sm:$0xff]
    %v757 = vld [vmem:[#allocation9 + $0xa8] sm:$0xff]
    %v758 = vld [vmem:[#allocation9 + $0xb0] sm:$0xff]
    %v759 = vld [vmem:[#allocation9 + $0xb8] sm:$0xff]
    %v760 = vld [vmem:[#allocation9 + $0xc0] sm:$0xff]
    %v761 = vld [vmem:[#allocation9 + $0xc8] sm:$0xff]
    %v762 = vld [vmem:[#allocation9 + $0xd0] sm:$0xff]
    %v763 = vld [vmem:[#allocation9 + $0xd8] sm:$0xff]
    %v764 = vld [vmem:[#allocation9 + $0xe0] sm:$0xff]
    %v765 = vld [vmem:[#allocation9 + $0xe8] sm:$0xff]
    %v766 = vld [vmem:[#allocation9 + $0xf0] sm:$0xff]
    %v767 = vld [vmem:[#allocation9 + $0xf8] sm:$0xff]
    %v768 = vld [vmem:[#allocation9 + $0x100] sm:$0xff]
    %v769 = vld [vmem:[#allocation9 + $0x108] sm:$0xff]
    %v770 = vld [vmem:[#allocation9 + $0x110] sm:$0xff]
    %v771 = vld [vmem:[#allocation9 + $0x118] sm:$0xff]
    %v772 = vld [vmem:[#allocation9 + $0x120] sm:$0xff]
    %v773 = vld [vmem:[#allocation9 + $0x128] sm:$0xff]
    %v774 = vld [vmem:[#allocation9 + $0x130] sm:$0xff]
    %v775 = vld [vmem:[#allocation9 + $0x138] sm:$0xff]
    %v776 = vld [vmem:[#allocation9 + $0x140] sm:$0xff]
    %v777 = vld [vmem:[#allocation9 + $0x148] sm:$0xff]
    %v778 = vld [vmem:[#allocation9 + $0x150] sm:$0xff]
    %v779 = vld [vmem:[#allocation9 + $0x158] sm:$0xff]
    %v780 = vld [vmem:[#allocation9 + $0x160] sm:$0xff]
    %v781 = vld [vmem:[#allocation9 + $0x168] sm:$0xff]
    %v782 = vld [vmem:[#allocation9 + $0x170] sm:$0xff]
    %v783 = vld [vmem:[#allocation9 + $0x178] sm:$0xff]
    %784 = vmatprep.subr.mxu0 %v737
    %785 = vmatpush1.msra.mxu0 %v736
    %786 = vmatprep.subr.mxu0 %v740
    %787 = vmatpush1.msra.mxu0 %v739
    %788 = vmatprep.subr.mxu0 %v743
    %789 = vmatpush1.msra.mxu0 %v742
    %790 = vmatprep.subr.mxu0 %v746
    %791 = vmatpush1.msra.mxu0 %v745
    %792 = vmatprep.subr.mxu0 %v749
    %793 = vmatpush1.msra.mxu0 %v748
    %794 = vmatprep.subr.mxu0 %v752
    %795 = vmatpush1.msra.mxu0 %v751
    %796 = vmatprep.subr.mxu0 %v755
    %797 = vmatpush1.msra.mxu0 %v754
    %798 = vmatprep.subr.mxu0 %v758
    %799 = vmatpush1.msra.mxu0 %v757
    %800 = vmatprep.subr.mxu0 %v761
    %801 = vmatpush1.msra.mxu0 %v760
    %802 = vmatprep.subr.mxu0 %v764
    %803 = vmatpush1.msra.mxu0 %v763
    %804 = vmatprep.subr.mxu0 %v767
    %805 = vmatpush1.msra.mxu0 %v766
    %806 = vmatprep.subr.mxu0 %v770
    %807 = vmatpush1.msra.mxu0 %v769
    %808 = vmatprep.subr.mxu0 %v773
    %809 = vmatpush1.msra.mxu0 %v772
    %810 = vmatprep.subr.mxu0 %v776
    %811 = vmatpush1.msra.mxu0 %v775
    %812 = vmatprep.subr.mxu0 %v779
    %813 = vmatpush1.msra.mxu0 %v778
    %814 = vmatprep.subr.mxu0 %v782
    %815 = vmatpush1.msra.mxu0 %v781
    %816 = vmatprep.subr.mxu0 0.0
    %817 = vmatpush1.msra.mxu0 0.0
    %818 = vmatprep.subr.mxu0 0.0
    %819 = vmatpush1.msra.mxu0 0.0
    %820 = vmatprep.subr.mxu0 0.0
    %821 = vmatpush1.msra.mxu0 0.0
    %822 = vmatprep.subr.mxu0 0.0
    %823 = vmatpush1.msra.mxu0 0.0
    %824 = vmatprep.subr.mxu0 0.0
    %825 = vmatpush1.msra.mxu0 0.0
    %826 = vmatprep.subr.mxu0 0.0
    %827 = vmatpush1.msra.mxu0 0.0
    %828 = vmatprep.subr.mxu0 0.0
    %829 = vmatpush1.msra.mxu0 0.0
    %830 = vmatprep.subr.mxu0 0.0
    %831 = vmatpush1.msra.mxu0 0.0
    %832 = vmatprep.subr.mxu0 0.0
    %833 = vmatpush1.msra.mxu0 0.0
    %834 = vmatprep.subr.mxu0 0.0
    %835 = vmatpush1.msra.mxu0 0.0
    %836 = vmatprep.subr.mxu0 0.0
    %837 = vmatpush1.msra.mxu0 0.0
    %838 = vmatprep.subr.mxu0 0.0
    %839 = vmatpush1.msra.mxu0 0.0
    %840 = vmatprep.subr.mxu0 0.0
    %841 = vmatpush1.msra.mxu0 0.0
    %842 = vmatprep.subr.mxu0 0.0
    %843 = vmatpush1.msra.mxu0 0.0
    %844 = vmatprep.subr.mxu0 0.0
    %845 = vmatpush1.msra.mxu0 0.0
    %846 = vmatprep.subr.mxu0 0.0
    %847 = vmatpush1.msra.mxu0 0.0
    %848 = vmatprep.mubr.f32.mxu0 0.0
    %849 = vmatmul.mubr.f32.gmra.mrb[0].mxu0 %v734
    %v850 = vpop.f32.mrb[0].mxu0
    %v851 = vadd.f32 0.0, %v850
    %v852 = vpop.f32.mrb[0].mxu0
    %v853 = vadd.f32 0.0, %v852
    %854 = vmatprep.mubr.f32.mxu0 0.0
    %855 = vmatmul.mubr.f32.gmra.mrb[0].mxu0 %v735
    %v856 = vpop.f32.mrb[0].mxu0
    %v857 = vadd.f32 0.0, %v856
    %v858 = vpop.f32.mrb[0].mxu0
    %v859 = vadd.f32 0.0, %v858
    %860 = vdwg.mxu0
    %861 = vmatprep.subr.mxu0 0.0
    %862 = vmatpush1.msra.mxu0 %v738
    %863 = vmatprep.subr.mxu0 0.0
    %864 = vmatpush1.msra.mxu0 %v741
    %865 = vmatprep.subr.mxu0 0.0
    %866 = vmatpush1.msra.mxu0 %v744
    %867 = vmatprep.subr.mxu0 0.0
    %868 = vmatpush1.msra.mxu0 %v747
    %869 = vmatprep.subr.mxu0 0.0
    %870 = vmatpush1.msra.mxu0 %v750
    %871 = vmatprep.subr.mxu0 0.0
    %872 = vmatpush1.msra.mxu0 %v753
    %873 = vmatprep.subr.mxu0 0.0
    %874 = vmatpush1.msra.mxu0 %v756
    %875 = vmatprep.subr.mxu0 0.0
    %876 = vmatpush1.msra.mxu0 %v759
    %877 = vmatprep.subr.mxu0 0.0
    %878 = vmatpush1.msra.mxu0 %v762
    %879 = vmatprep.subr.mxu0 0.0
    %880 = vmatpush1.msra.mxu0 %v765
    %881 = vmatprep.subr.mxu0 0.0
    %882 = vmatpush1.msra.mxu0 %v768
    %883 = vmatprep.subr.mxu0 0.0
    %884 = vmatpush1.msra.mxu0 %v771
    %885 = vmatprep.subr.mxu0 0.0
    %886 = vmatpush1.msra.mxu0 %v774
    %887 = vmatprep.subr.mxu0 0.0
    %888 = vmatpush1.msra.mxu0 %v777
    %889 = vmatprep.subr.mxu0 0.0
    %890 = vmatpush1.msra.mxu0 %v780
    %891 = vmatprep.subr.mxu0 0.0
    %892 = vmatpush1.msra.mxu0 %v783
    %893 = vmatprep.subr.mxu0 0.0
    %894 = vmatpush1.msra.mxu0 0.0
    %895 = vmatprep.subr.mxu0 0.0
    %896 = vmatpush1.msra.mxu0 0.0
    %897 = vmatprep.subr.mxu0 0.0
    %898 = vmatpush1.msra.mxu0 0.0
    %899 = vmatprep.subr.mxu0 0.0
    %900 = vmatpush1.msra.mxu0 0.0
    %901 = vmatprep.subr.mxu0 0.0
    %902 = vmatpush1.msra.mxu0 0.0
    %903 = vmatprep.subr.mxu0 0.0
    %904 = vmatpush1.msra.mxu0 0.0
    %905 = vmatprep.subr.mxu0 0.0
    %906 = vmatpush1.msra.mxu0 0.0
    %907 = vmatprep.subr.mxu0 0.0
    %908 = vmatpush1.msra.mxu0 0.0
    %909 = vmatprep.subr.mxu0 0.0
    %910 = vmatpush1.msra.mxu0 0.0
    %911 = vmatprep.subr.mxu0 0.0
    %912 = vmatpush1.msra.mxu0 0.0
    %913 = vmatprep.subr.mxu0 0.0
    %914 = vmatpush1.msra.mxu0 0.0
    %915 = vmatprep.subr.mxu0 0.0
    %916 = vmatpush1.msra.mxu0 0.0
    %917 = vmatprep.subr.mxu0 0.0
    %918 = vmatpush1.msra.mxu0 0.0
    %919 = vmatprep.subr.mxu0 0.0
    %920 = vmatpush1.msra.mxu0 0.0
    %921 = vmatprep.subr.mxu0 0.0
    %922 = vmatpush1.msra.mxu0 0.0
    %923 = vmatprep.subr.mxu0 0.0
    %924 = vmatpush1.msra.mxu0 0.0
    %925 = vmatprep.mubr.f32.mxu0 0.0
    %926 = vmatmul.mubr.f32.gmra.mrb[0].mxu0 %v734
    %v927 = vpop.f32.mrb[0].mxu0
    %v928 = vadd.f32 0.0, %v927
    %v929 = vpop.f32.mrb[0].mxu0
    %930 = vmatprep.mubr.f32.mxu0 0.0
    %931 = vmatmul.mubr.f32.gmra.mrb[0].mxu0 %v735
    %v932 = vpop.f32.mrb[0].mxu0
    %v933 = vadd.f32 0.0, %v932
    %v934 = vpop.f32.mrb[0].mxu0
    %935 = vdwg.mxu0
    %s936 = scalar_lea.vmem [#allocation3], 48
    %v937 = vld [vmem:[%s936] sm:$0xff]
    %v938 = vld [vmem:[%s936 + $0x8] sm:$0xff]
    %v939 = vld [vmem:[%s936 + $0x10] sm:$0xff]
    %v940 = vld [vmem:[%s936 + $0x18] sm:$0xff]
    %v941 = vld [vmem:[%s936 + $0x20] sm:$0xff]
    %v942 = vld [vmem:[%s936 + $0x28] sm:$0xff]
    %v943 = vadd.f32 %v937, %v851
    %v944 = vadd.f32 %v940, %v857
    %v945 = vxor.u32 %v943, 2147483648
    %v946 = vxor.u32 %v944, 2147483648
    %v947 = vmul.f32 %v945, 1.442695
    %v948 = vpow.pop %v947
    %v949 = vmul.f32 %v946, 1.442695
    %v950 = vpow.pop %v949
    %v951 = vadd.f32 %v948, 1.0
    %v952 = vadd.f32 %v950, 1.0
    %v953 = vrcp.pop %v951
    %v954 = vmul.f32 1.0, %v953
    %v955 = vrcp.pop %v952
    %v956 = vmul.f32 1.0, %v955
    %v957 = vadd.f32 %v938, %v853
    %v958 = vadd.f32 %v941, %v859
    %v959 = vxor.u32 %v957, 2147483648
    %v960 = vxor.u32 %v958, 2147483648
    %v961 = vmul.f32 %v959, 1.442695
    %v962 = vpow.pop %v961
    %v963 = vmul.f32 %v960, 1.442695
    %v964 = vpow.pop %v963
    %v965 = vadd.f32 %v962, 1.0
    %v966 = vadd.f32 %v964, 1.0
    %v967 = vrcp.pop %v965
    %v968 = vmul.f32 1.0, %v967
    %v969 = vrcp.pop %v966
    %v970 = vmul.f32 1.0, %v969
    %v971 = vmul.f32 %v954, %v928
    %v972 = vmul.f32 %v956, %v933
    %v973 = vadd.f32 %v939, %v971
    %v974 = vadd.f32 %v942, %v972
    %v975 = vtanh.pop %v973
    %v976 = vtanh.pop %v974
    %v977 = vsub.f32 1.0, %v968
    %v978 = vsub.f32 1.0, %v970
    %v979 = vmul.f32 %v977, %v975
    %v980 = vmul.f32 %v978, %v976
    %v981 = vmul.f32 %v968, %v734
    %v982 = vmul.f32 %v970, %v735
    %v983 = vadd.f32 %v979, %v981
    %v984 = vadd.f32 %v980, %v982
    %985 = vst [vmem:[#allocation2] sm:$0xff] %v983
    %986 = vst [vmem:[#allocation2 + $0x8] sm:$0xff] %v984
    %s987 = scalar_lea.vmem [#allocation10], 16
    %988 = vst [vmem:[%s987] sm:$0xff] %v983
    %989 = vst [vmem:[%s987 + $0x8] sm:$0xff] %v984
    %v990 = vld [vmem:[#allocation2] sm:$0xff]
    %v991 = vld [vmem:[#allocation2 + $0x8] sm:$0xff]
    %v992 = vld [vmem:[#allocation9] sm:$0xff]
    %v993 = vld [vmem:[#allocation9 + $0x8] sm:$0xff]
    %v994 = vld [vmem:[#allocation9 + $0x10] sm:$0xff]
    %v995 = vld [vmem:[#allocation9 + $0x18] sm:$0xff]
    %v996 = vld [vmem:[#allocation9 + $0x20] sm:$0xff]
    %v997 = vld [vmem:[#allocation9 + $0x28] sm:$0xff]
    %v998 = vld [vmem:[#allocation9 + $0x30] sm:$0xff]
    %v999 = vld [vmem:[#allocation9 + $0x38] sm:$0xff]
    %v1000 = vld [vmem:[#allocation9 + $0x40] sm:$0xff]
    %v1001 = vld [vmem:[#allocation9 + $0x48] sm:$0xff]
    %v1002 = vld [vmem:[#allocation9 + $0x50] sm:$0xff]
    %v1003 = vld [vmem:[#allocation9 + $0x58] sm:$0xff]
    %v1004 = vld [vmem:[#allocation9 + $0x60] sm:$0xff]
    %v1005 = vld [vmem:[#allocation9 + $0x68] sm:$0xff]
    %v1006 = vld [vmem:[#allocation9 + $0x70] sm:$0xff]
    %v1007 = vld [vmem:[#allocation9 + $0x78] sm:$0xff]
    %v1008 = vld [vmem:[#allocation9 + $0x80] sm:$0xff]
    %v1009 = vld [vmem:[#allocation9 + $0x88] sm:$0xff]
    %v1010 = vld [vmem:[#allocation9 + $0x90] sm:$0xff]
    %v1011 = vld [vmem:[#allocation9 + $0x98] sm:$0xff]
    %v1012 = vld [vmem:[#allocation9 + $0xa0] sm:$0xff]
    %v1013 = vld [vmem:[#allocation9 + $0xa8] sm:$0xff]
    %v1014 = vld [vmem:[#allocation9 + $0xb0] sm:$0xff]
    %v1015 = vld [vmem:[#allocation9 + $0xb8] sm:$0xff]
    %v1016 = vld [vmem:[#allocation9 + $0xc0] sm:$0xff]
    %v1017 = vld [vmem:[#allocation9 + $0xc8] sm:$0xff]
    %v1018 = vld [vmem:[#allocation9 + $0xd0] sm:$0xff]
    %v1019 = vld [vmem:[#allocation9 + $0xd8] sm:$0xff]
    %v1020 = vld [vmem:[#allocation9 + $0xe0] sm:$0xff]
    %v1021 = vld [vmem:[#allocation9 + $0xe8] sm:$0xff]
    %v1022 = vld [vmem:[#allocation9 + $0xf0] sm:$0xff]
    %v1023 = vld [vmem:[#allocation9 + $0xf8] sm:$0xff]
    %v1024 = vld [vmem:[#allocation9 + $0x100] sm:$0xff]
    %v1025 = vld [vmem:[#allocation9 + $0x108] sm:$0xff]
    %v1026 = vld [vmem:[#allocation9 + $0x110] sm:$0xff]
    %v1027 = vld [vmem:[#allocation9 + $0x118] sm:$0xff]
    %v1028 = vld [vmem:[#allocation9 + $0x120] sm:$0xff]
    %v1029 = vld [vmem:[#allocation9 + $0x128] sm:$0xff]
    %v1030 = vld [vmem:[#allocation9 + $0x130] sm:$0xff]
    %v1031 = vld [vmem:[#allocation9 + $0x138] sm:$0xff]
    %v1032 = vld [vmem:[#allocation9 + $0x140] sm:$0xff]
    %v1033 = vld [vmem:[#allocation9 + $0x148] sm:$0xff]
    %v1034 = vld [vmem:[#allocation9 + $0x150] sm:$0xff]
    %v1035 = vld [vmem:[#allocation9 + $0x158] sm:$0xff]
    %v1036 = vld [vmem:[#allocation9 + $0x160] sm:$0xff]
    %v1037 = vld [vmem:[#allocation9 + $0x168] sm:$0xff]
    %v1038 = vld [vmem:[#allocation9 + $0x170] sm:$0xff]
    %v1039 = vld [vmem:[#allocation9 + $0x178] sm:$0xff]
    %1040 = vmatprep.subr.mxu0 %v993
    %1041 = vmatpush1.msra.mxu0 %v992
    %1042 = vmatprep.subr.mxu0 %v996
    %1043 = vmatpush1.msra.mxu0 %v995
    %1044 = vmatprep.subr.mxu0 %v999
    %1045 = vmatpush1.msra.mxu0 %v998
    %1046 = vmatprep.subr.mxu0 %v1002
    %1047 = vmatpush1.msra.mxu0 %v1001
    %1048 = vmatprep.subr.mxu0 %v1005
    %1049 = vmatpush1.msra.mxu0 %v1004
    %1050 = vmatprep.subr.mxu0 %v1008
    %1051 = vmatpush1.msra.mxu0 %v1007
    %1052 = vmatprep.subr.mxu0 %v1011
    %1053 = vmatpush1.msra.mxu0 %v1010
    %1054 = vmatprep.subr.mxu0 %v1014
    %1055 = vmatpush1.msra.mxu0 %v1013
    %1056 = vmatprep.subr.mxu0 %v1017
    %1057 = vmatpush1.msra.mxu0 %v1016
    %1058 = vmatprep.subr.mxu0 %v1020
    %1059 = vmatpush1.msra.mxu0 %v1019
    %1060 = vmatprep.subr.mxu0 %v1023
    %1061 = vmatpush1.msra.mxu0 %v1022
    %1062 = vmatprep.subr.mxu0 %v1026
    %1063 = vmatpush1.msra.mxu0 %v1025
    %1064 = vmatprep.subr.mxu0 %v1029
    %1065 = vmatpush1.msra.mxu0 %v1028
    %1066 = vmatprep.subr.mxu0 %v1032
    %1067 = vmatpush1.msra.mxu0 %v1031
    %1068 = vmatprep.subr.mxu0 %v1035
    %1069 = vmatpush1.msra.mxu0 %v1034
    %1070 = vmatprep.subr.mxu0 %v1038
    %1071 = vmatpush1.msra.mxu0 %v1037
    %1072 = vmatprep.subr.mxu0 0.0
    %1073 = vmatpush1.msra.mxu0 0.0
    %1074 = vmatprep.subr.mxu0 0.0
    %1075 = vmatpush1.msra.mxu0 0.0
    %1076 = vmatprep.subr.mxu0 0.0
    %1077 = vmatpush1.msra.mxu0 0.0
    %1078 = vmatprep.subr.mxu0 0.0
    %1079 = vmatpush1.msra.mxu0 0.0
    %1080 = vmatprep.subr.mxu0 0.0
    %1081 = vmatpush1.msra.mxu0 0.0
    %1082 = vmatprep.subr.mxu0 0.0
    %1083 = vmatpush1.msra.mxu0 0.0
    %1084 = vmatprep.subr.mxu0 0.0
    %1085 = vmatpush1.msra.mxu0 0.0
    %1086 = vmatprep.subr.mxu0 0.0
    %1087 = vmatpush1.msra.mxu0 0.0
    %1088 = vmatprep.subr.mxu0 0.0
    %1089 = vmatpush1.msra.mxu0 0.0
    %1090 = vmatprep.subr.mxu0 0.0
    %1091 = vmatpush1.msra.mxu0 0.0
    %1092 = vmatprep.subr.mxu0 0.0
    %1093 = vmatpush1.msra.mxu0 0.0
    %1094 = vmatprep.subr.mxu0 0.0
    %1095 = vmatpush1.msra.mxu0 0.0
    %1096 = vmatprep.subr.mxu0 0.0
    %1097 = vmatpush1.msra.mxu0 0.0
    %1098 = vmatprep.subr.mxu0 0.0
    %1099 = vmatpush1.msra.mxu0 0.0
    %1100 = vmatprep.subr.mxu0 0.0
    %1101 = vmatpush1.msra.mxu0 0.0
    %1102 = vmatprep.subr.mxu0 0.0
    %1103 = vmatpush1.msra.mxu0 0.0
    %1104 = vmatprep.mubr.f32.mxu0 0.0
    %1105 = vmatmul.mubr.f32.gmra.mrb[0].mxu0 %v990
    %v1106 = vpop.f32.mrb[0].mxu0
    %v1107 = vadd.f32 0.0, %v1106
    %v1108 = vpop.f32.mrb[0].mxu0
    %v1109 = vadd.f32 0.0, %v1108
    %1110 = vmatprep.mubr.f32.mxu0 0.0
    %1111 = vmatmul.mubr.f32.gmra.mrb[0].mxu0 %v991
    %v1112 = vpop.f32.mrb[0].mxu0
    %v1113 = vadd.f32 0.0, %v1112
    %v1114 = vpop.f32.mrb[0].mxu0
    %v1115 = vadd.f32 0.0, %v1114
    %1116 = vdwg.mxu0
    %1117 = vmatprep.subr.mxu0 0.0
    %1118 = vmatpush1.msra.mxu0 %v994
    %1119 = vmatprep.subr.mxu0 0.0
    %1120 = vmatpush1.msra.mxu0 %v997
    %1121 = vmatprep.subr.mxu0 0.0
    %1122 = vmatpush1.msra.mxu0 %v1000
    %1123 = vmatprep.subr.mxu0 0.0
    %1124 = vmatpush1.msra.mxu0 %v1003
    %1125 = vmatprep.subr.mxu0 0.0
    %1126 = vmatpush1.msra.mxu0 %v1006
    %1127 = vmatprep.subr.mxu0 0.0
    %1128 = vmatpush1.msra.mxu0 %v1009
    %1129 = vmatprep.subr.mxu0 0.0
    %1130 = vmatpush1.msra.mxu0 %v1012
    %1131 = vmatprep.subr.mxu0 0.0
    %1132 = vmatpush1.msra.mxu0 %v1015
    %1133 = vmatprep.subr.mxu0 0.0
    %1134 = vmatpush1.msra.mxu0 %v1018
    %1135 = vmatprep.subr.mxu0 0.0
    %1136 = vmatpush1.msra.mxu0 %v1021
    %1137 = vmatprep.subr.mxu0 0.0
    %1138 = vmatpush1.msra.mxu0 %v1024
    %1139 = vmatprep.subr.mxu0 0.0
    %1140 = vmatpush1.msra.mxu0 %v1027
    %1141 = vmatprep.subr.mxu0 0.0
    %1142 = vmatpush1.msra.mxu0 %v1030
    %1143 = vmatprep.subr.mxu0 0.0
    %1144 = vmatpush1.msra.mxu0 %v1033
    %1145 = vmatprep.subr.mxu0 0.0
    %1146 = vmatpush1.msra.mxu0 %v1036
    %1147 = vmatprep.subr.mxu0 0.0
    %1148 = vmatpush1.msra.mxu0 %v1039
    %1149 = vmatprep.subr.mxu0 0.0
    %1150 = vmatpush1.msra.mxu0 0.0
    %1151 = vmatprep.subr.mxu0 0.0
    %1152 = vmatpush1.msra.mxu0 0.0
    %1153 = vmatprep.subr.mxu0 0.0
    %1154 = vmatpush1.msra.mxu0 0.0
    %1155 = vmatprep.subr.mxu0 0.0
    %1156 = vmatpush1.msra.mxu0 0.0
    %1157 = vmatprep.subr.mxu0 0.0
    %1158 = vmatpush1.msra.mxu0 0.0
    %1159 = vmatprep.subr.mxu0 0.0
    %1160 = vmatpush1.msra.mxu0 0.0
    %1161 = vmatprep.subr.mxu0 0.0
    %1162 = vmatpush1.msra.mxu0 0.0
    %1163 = vmatprep.subr.mxu0 0.0
    %1164 = vmatpush1.msra.mxu0 0.0
    %1165 = vmatprep.subr.mxu0 0.0
    %1166 = vmatpush1.msra.mxu0 0.0
    %1167 = vmatprep.subr.mxu0 0.0
    %1168 = vmatpush1.msra.mxu0 0.0
    %1169 = vmatprep.subr.mxu0 0.0
    %1170 = vmatpush1.msra.mxu0 0.0
    %1171 = vmatprep.subr.mxu0 0.0
    %1172 = vmatpush1.msra.mxu0 0.0
    %1173 = vmatprep.subr.mxu0 0.0
    %1174 = vmatpush1.msra.mxu0 0.0
    %1175 = vmatprep.subr.mxu0 0.0
    %1176 = vmatpush1.msra.mxu0 0.0
    %1177 = vmatprep.subr.mxu0 0.0
    %1178 = vmatpush1.msra.mxu0 0.0
    %1179 = vmatprep.subr.mxu0 0.0
    %1180 = vmatpush1.msra.mxu0 0.0
    %1181 = vmatprep.mubr.f32.mxu0 0.0
    %1182 = vmatmul.mubr.f32.gmra.mrb[0].mxu0 %v990
    %v1183 = vpop.f32.mrb[0].mxu0
    %v1184 = vadd.f32 0.0, %v1183
    %v1185 = vpop.f32.mrb[0].mxu0
    %1186 = vmatprep.mubr.f32.mxu0 0.0
    %1187 = vmatmul.mubr.f32.gmra.mrb[0].mxu0 %v991
    %v1188 = vpop.f32.mrb[0].mxu0
    %v1189 = vadd.f32 0.0, %v1188
    %v1190 = vpop.f32.mrb[0].mxu0
    %1191 = vdwg.mxu0
    %s1192 = scalar_lea.vmem [#allocation3], 96
    %v1193 = vld [vmem:[%s1192] sm:$0xff]
    %v1194 = vld [vmem:[%s1192 + $0x8] sm:$0xff]
    %v1195 = vld [vmem:[%s1192 + $0x10] sm:$0xff]
    %v1196 = vld [vmem:[%s1192 + $0x18] sm:$0xff]
    %v1197 = vld [vmem:[%s1192 + $0x20] sm:$0xff]
    %v1198 = vld [vmem:[%s1192 + $0x28] sm:$0xff]
    %v1199 = vadd.f32 %v1193, %v1107
    %v1200 = vadd.f32 %v1196, %v1113
    %v1201 = vxor.u32 %v1199, 2147483648
    %v1202 = vxor.u32 %v1200, 2147483648
    %v1203 = vmul.f32 %v1201, 1.442695
    %v1204 = vpow.pop %v1203
    %v1205 = vmul.f32 %v1202, 1.442695
    %v1206 = vpow.pop %v1205
    %v1207 = vadd.f32 %v1204, 1.0
    %v1208 = vadd.f32 %v1206, 1.0
    %v1209 = vrcp.pop %v1207
    %v1210 = vmul.f32 1.0, %v1209
    %v1211 = vrcp.pop %v1208
    %v1212 = vmul.f32 1.0, %v1211
    %v1213 = vadd.f32 %v1194, %v1109
    %v1214 = vadd.f32 %v1197, %v1115
    %v1215 = vxor.u32 %v1213, 2147483648
    %v1216 = vxor.u32 %v1214, 2147483648
    %v1217 = vmul.f32 %v1215, 1.442695
    %v1218 = vpow.pop %v1217
    %v1219 = vmul.f32 %v1216, 1.442695
    %v1220 = vpow.pop %v1219
    %v1221 = vadd.f32 %v1218, 1.0
    %v1222 = vadd.f32 %v1220, 1.0
    %v1223 = vrcp.pop %v1221
    %v1224 = vmul.f32 1.0, %v1223
    %v1225 = vrcp.pop %v1222
    %v1226 = vmul.f32 1.0, %v1225
    %v1227 = vmul.f32 %v1210, %v1184
    %v1228 = vmul.f32 %v1212, %v1189
    %v1229 = vadd.f32 %v1195, %v1227
    %v1230 = vadd.f32 %v1198, %v1228
    %v1231 = vtanh.pop %v1229
    %v1232 = vtanh.pop %v1230
    %v1233 = vsub.f32 1.0, %v1224
    %v1234 = vsub.f32 1.0, %v1226
    %v1235 = vmul.f32 %v1233, %v1231
    %v1236 = vmul.f32 %v1234, %v1232
    %v1237 = vmul.f32 %v1224, %v990
    %v1238 = vmul.f32 %v1226, %v991
    %v1239 = vadd.f32 %v1235, %v1237
    %v1240 = vadd.f32 %v1236, %v1238
    %1241 = vst [vmem:[#allocation2] sm:$0xff] %v1239
    %1242 = vst [vmem:[#allocation2 + $0x8] sm:$0xff] %v1240
    %s1243 = scalar_lea.vmem [#allocation10], 32
    %1244 = vst [vmem:[%s1243] sm:$0xff] %v1239
    %1245 = vst [vmem:[%s1243 + $0x8] sm:$0xff] %v1240
    %v1246 = vld [vmem:[#allocation2] sm:$0xff]
    %v1247 = vld [vmem:[#allocation2 + $0x8] sm:$0xff]
    %v1248 = vld [vmem:[#allocation9] sm:$0xff]
    %v1249 = vld [vmem:[#allocation9 + $0x8] sm:$0xff]
    %v1250 = vld [vmem:[#allocation9 + $0x10] sm:$0xff]
    %v1251 = vld [vmem:[#allocation9 + $0x18] sm:$0xff]
    %v1252 = vld [vmem:[#allocation9 + $0x20] sm:$0xff]
    %v1253 = vld [vmem:[#allocation9 + $0x28] sm:$0xff]
    %v1254 = vld [vmem:[#allocation9 + $0x30] sm:$0xff]
    %v1255 = vld [vmem:[#allocation9 + $0x38] sm:$0xff]
    %v1256 = vld [vmem:[#allocation9 + $0x40] sm:$0xff]
    %v1257 = vld [vmem:[#allocation9 + $0x48] sm:$0xff]
    %v1258 = vld [vmem:[#allocation9 + $0x50] sm:$0xff]
    %v1259 = vld [vmem:[#allocation9 + $0x58] sm:$0xff]
    %v1260 = vld [vmem:[#allocation9 + $0x60] sm:$0xff]
    %v1261 = vld [vmem:[#allocation9 + $0x68] sm:$0xff]
    %v1262 = vld [vmem:[#allocation9 + $0x70] sm:$0xff]
    %v1263 = vld [vmem:[#allocation9 + $0x78] sm:$0xff]
    %v1264 = vld [vmem:[#allocation9 + $0x80] sm:$0xff]
    %v1265 = vld [vmem:[#allocation9 + $0x88] sm:$0xff]
    %v1266 = vld [vmem:[#allocation9 + $0x90] sm:$0xff]
    %v1267 = vld [vmem:[#allocation9 + $0x98] sm:$0xff]
    %v1268 = vld [vmem:[#allocation9 + $0xa0] sm:$0xff]
    %v1269 = vld [vmem:[#allocation9 + $0xa8] sm:$0xff]
    %v1270 = vld [vmem:[#allocation9 + $0xb0] sm:$0xff]
    %v1271 = vld [vmem:[#allocation9 + $0xb8] sm:$0xff]
    %v1272 = vld [vmem:[#allocation9 + $0xc0] sm:$0xff]
    %v1273 = vld [vmem:[#allocation9 + $0xc8] sm:$0xff]
    %v1274 = vld [vmem:[#allocation9 + $0xd0] sm:$0xff]
    %v1275 = vld [vmem:[#allocation9 + $0xd8] sm:$0xff]
    %v1276 = vld [vmem:[#allocation9 + $0xe0] sm:$0xff]
    %v1277 = vld [vmem:[#allocation9 + $0xe8] sm:$0xff]
    %v1278 = vld [vmem:[#allocation9 + $0xf0] sm:$0xff]
    %v1279 = vld [vmem:[#allocation9 + $0xf8] sm:$0xff]
    %v1280 = vld [vmem:[#allocation9 + $0x100] sm:$0xff]
    %v1281 = vld [vmem:[#allocation9 + $0x108] sm:$0xff]
    %v1282 = vld [vmem:[#allocation9 + $0x110] sm:$0xff]
    %v1283 = vld [vmem:[#allocation9 + $0x118] sm:$0xff]
    %v1284 = vld [vmem:[#allocation9 + $0x120] sm:$0xff]
    %v1285 = vld [vmem:[#allocation9 + $0x128] sm:$0xff]
    %v1286 = vld [vmem:[#allocation9 + $0x130] sm:$0xff]
    %v1287 = vld [vmem:[#allocation9 + $0x138] sm:$0xff]
    %v1288 = vld [vmem:[#allocation9 + $0x140] sm:$0xff]
    %v1289 = vld [vmem:[#allocation9 + $0x148] sm:$0xff]
    %v1290 = vld [vmem:[#allocation9 + $0x150] sm:$0xff]
    %v1291 = vld [vmem:[#allocation9 + $0x158] sm:$0xff]
    %v1292 = vld [vmem:[#allocation9 + $0x160] sm:$0xff]
    %v1293 = vld [vmem:[#allocation9 + $0x168] sm:$0xff]
    %v1294 = vld [vmem:[#allocation9 + $0x170] sm:$0xff]
    %v1295 = vld [vmem:[#allocation9 + $0x178] sm:$0xff]
    %1296 = vmatprep.subr.mxu0 %v1249
    %1297 = vmatpush1.msra.mxu0 %v1248
    %1298 = vmatprep.subr.mxu0 %v1252
    %1299 = vmatpush1.msra.mxu0 %v1251
    %1300 = vmatprep.subr.mxu0 %v1255
    %1301 = vmatpush1.msra.mxu0 %v1254
    %1302 = vmatprep.subr.mxu0 %v1258
    %1303 = vmatpush1.msra.mxu0 %v1257
    %1304 = vmatprep.subr.mxu0 %v1261
    %1305 = vmatpush1.msra.mxu0 %v1260
    %1306 = vmatprep.subr.mxu0 %v1264
    %1307 = vmatpush1.msra.mxu0 %v1263
    %1308 = vmatprep.subr.mxu0 %v1267
    %1309 = vmatpush1.msra.mxu0 %v1266
    %1310 = vmatprep.subr.mxu0 %v1270
    %1311 = vmatpush1.msra.mxu0 %v1269
    %1312 = vmatprep.subr.mxu0 %v1273
    %1313 = vmatpush1.msra.mxu0 %v1272
    %1314 = vmatprep.subr.mxu0 %v1276
    %1315 = vmatpush1.msra.mxu0 %v1275
    %1316 = vmatprep.subr.mxu0 %v1279
    %1317 = vmatpush1.msra.mxu0 %v1278
    %1318 = vmatprep.subr.mxu0 %v1282
    %1319 = vmatpush1.msra.mxu0 %v1281
    %1320 = vmatprep.subr.mxu0 %v1285
    %1321 = vmatpush1.msra.mxu0 %v1284
    %1322 = vmatprep.subr.mxu0 %v1288
    %1323 = vmatpush1.msra.mxu0 %v1287
    %1324 = vmatprep.subr.mxu0 %v1291
    %1325 = vmatpush1.msra.mxu0 %v1290
    %1326 = vmatprep.subr.mxu0 %v1294
    %1327 = vmatpush1.msra.mxu0 %v1293
    %1328 = vmatprep.subr.mxu0 0.0
    %1329 = vmatpush1.msra.mxu0 0.0
    %1330 = vmatprep.subr.mxu0 0.0
    %1331 = vmatpush1.msra.mxu0 0.0
    %1332 = vmatprep.subr.mxu0 0.0
    %1333 = vmatpush1.msra.mxu0 0.0
    %1334 = vmatprep.subr.mxu0 0.0
    %1335 = vmatpush1.msra.mxu0 0.0
    %1336 = vmatprep.subr.mxu0 0.0
    %1337 = vmatpush1.msra.mxu0 0.0
    %1338 = vmatprep.subr.mxu0 0.0
    %1339 = vmatpush1.msra.mxu0 0.0
    %1340 = vmatprep.subr.mxu0 0.0
    %1341 = vmatpush1.msra.mxu0 0.0
    %1342 = vmatprep.subr.mxu0 0.0
    %1343 = vmatpush1.msra.mxu0 0.0
    %1344 = vmatprep.subr.mxu0 0.0
    %1345 = vmatpush1.msra.mxu0 0.0
    %1346 = vmatprep.subr.mxu0 0.0
    %1347 = vmatpush1.msra.mxu0 0.0
    %1348 = vmatprep.subr.mxu0 0.0
    %1349 = vmatpush1.msra.mxu0 0.0
    %1350 = vmatprep.subr.mxu0 0.0
    %1351 = vmatpush1.msra.mxu0 0.0
    %1352 = vmatprep.subr.mxu0 0.0
    %1353 = vmatpush1.msra.mxu0 0.0
    %1354 = vmatprep.subr.mxu0 0.0
    %1355 = vmatpush1.msra.mxu0 0.0
    %1356 = vmatprep.subr.mxu0 0.0
    %1357 = vmatpush1.msra.mxu0 0.0
    %1358 = vmatprep.subr.mxu0 0.0
    %1359 = vmatpush1.msra.mxu0 0.0
    %1360 = vmatprep.mubr.f32.mxu0 0.0
    %1361 = vmatmul.mubr.f32.gmra.mrb[0].mxu0 %v1246
    %v1362 = vpop.f32.mrb[0].mxu0
    %v1363 = vadd.f32 0.0, %v1362
    %v1364 = vpop.f32.mrb[0].mxu0
    %v1365 = vadd.f32 0.0, %v1364
    %1366 = vmatprep.mubr.f32.mxu0 0.0
    %1367 = vmatmul.mubr.f32.gmra.mrb[0].mxu0 %v1247
    %v1368 = vpop.f32.mrb[0].mxu0
    %v1369 = vadd.f32 0.0, %v1368
    %v1370 = vpop.f32.mrb[0].mxu0
    %v1371 = vadd.f32 0.0, %v1370
    %1372 = vdwg.mxu0
    %1373 = vmatprep.subr.mxu0 0.0
    %1374 = vmatpush1.msra.mxu0 %v1250
    %1375 = vmatprep.subr.mxu0 0.0
    %1376 = vmatpush1.msra.mxu0 %v1253
    %1377 = vmatprep.subr.mxu0 0.0
    %1378 = vmatpush1.msra.mxu0 %v1256
    %1379 = vmatprep.subr.mxu0 0.0
    %1380 = vmatpush1.msra.mxu0 %v1259
    %1381 = vmatprep.subr.mxu0 0.0
    %1382 = vmatpush1.msra.mxu0 %v1262
    %1383 = vmatprep.subr.mxu0 0.0
    %1384 = vmatpush1.msra.mxu0 %v1265
    %1385 = vmatprep.subr.mxu0 0.0
    %1386 = vmatpush1.msra.mxu0 %v1268
    %1387 = vmatprep.subr.mxu0 0.0
    %1388 = vmatpush1.msra.mxu0 %v1271
    %1389 = vmatprep.subr.mxu0 0.0
    %1390 = vmatpush1.msra.mxu0 %v1274
    %1391 = vmatprep.subr.mxu0 0.0
    %1392 = vmatpush1.msra.mxu0 %v1277
    %1393 = vmatprep.subr.mxu0 0.0
    %1394 = vmatpush1.msra.mxu0 %v1280
    %1395 = vmatprep.subr.mxu0 0.0
    %1396 = vmatpush1.msra.mxu0 %v1283
    %1397 = vmatprep.subr.mxu0 0.0
    %1398 = vmatpush1.msra.mxu0 %v1286
    %1399 = vmatprep.subr.mxu0 0.0
    %1400 = vmatpush1.msra.mxu0 %v1289
    %1401 = vmatprep.subr.mxu0 0.0
    %1402 = vmatpush1.msra.mxu0 %v1292
    %1403 = vmatprep.subr.mxu0 0.0
    %1404 = vmatpush1.msra.mxu0 %v1295
    %1405 = vmatprep.subr.mxu0 0.0
    %1406 = vmatpush1.msra.mxu0 0.0
    %1407 = vmatprep.subr.mxu0 0.0
    %1408 = vmatpush1.msra.mxu0 0.0
    %1409 = vmatprep.subr.mxu0 0.0
    %1410 = vmatpush1.msra.mxu0 0.0
    %1411 = vmatprep.subr.mxu0 0.0
    %1412 = vmatpush1.msra.mxu0 0.0
    %1413 = vmatprep.subr.mxu0 0.0
    %1414 = vmatpush1.msra.mxu0 0.0
    %1415 = vmatprep.subr.mxu0 0.0
    %1416 = vmatpush1.msra.mxu0 0.0
    %1417 = vmatprep.subr.mxu0 0.0
    %1418 = vmatpush1.msra.mxu0 0.0
    %1419 = vmatprep.subr.mxu0 0.0
    %1420 = vmatpush1.msra.mxu0 0.0
    %1421 = vmatprep.subr.mxu0 0.0
    %1422 = vmatpush1.msra.mxu0 0.0
    %1423 = vmatprep.subr.mxu0 0.0
    %1424 = vmatpush1.msra.mxu0 0.0
    %1425 = vmatprep.subr.mxu0 0.0
    %1426 = vmatpush1.msra.mxu0 0.0
    %1427 = vmatprep.subr.mxu0 0.0
    %1428 = vmatpush1.msra.mxu0 0.0
    %1429 = vmatprep.subr.mxu0 0.0
    %1430 = vmatpush1.msra.mxu0 0.0
    %1431 = vmatprep.subr.mxu0 0.0
    %1432 = vmatpush1.msra.mxu0 0.0
    %1433 = vmatprep.subr.mxu0 0.0
    %1434 = vmatpush1.msra.mxu0 0.0
    %1435 = vmatprep.subr.mxu0 0.0
    %1436 = vmatpush1.msra.mxu0 0.0
    %1437 = vmatprep.mubr.f32.mxu0 0.0
    %1438 = vmatmul.mubr.f32.gmra.mrb[0].mxu0 %v1246
    %v1439 = vpop.f32.mrb[0].mxu0
    %v1440 = vadd.f32 0.0, %v1439
    %v1441 = vpop.f32.mrb[0].mxu0
    %1442 = vmatprep.mubr.f32.mxu0 0.0
    %1443 = vmatmul.mubr.f32.gmra.mrb[0].mxu0 %v1247
    %v1444 = vpop.f32.mrb[0].mxu0
    %v1445 = vadd.f32 0.0, %v1444
    %v1446 = vpop.f32.mrb[0].mxu0
    %1447 = vdwg.mxu0
    %s1448 = scalar_lea.vmem [#allocation3], 144
    %v1449 = vld [vmem:[%s1448] sm:$0xff]
    %v1450 = vld [vmem:[%s1448 + $0x8] sm:$0xff]
    %v1451 = vld [vmem:[%s1448 + $0x10] sm:$0xff]
    %v1452 = vld [vmem:[%s1448 + $0x18] sm:$0xff]
    %v1453 = vld [vmem:[%s1448 + $0x20] sm:$0xff]
    %v1454 = vld [vmem:[%s1448 + $0x28] sm:$0xff]
    %v1455 = vadd.f32 %v1449, %v1363
    %v1456 = vadd.f32 %v1452, %v1369
    %v1457 = vxor.u32 %v1455, 2147483648
    %v1458 = vxor.u32 %v1456, 2147483648
    %v1459 = vmul.f32 %v1457, 1.442695
    %v1460 = vpow.pop %v1459
    %v1461 = vmul.f32 %v1458, 1.442695
    %v1462 = vpow.pop %v1461
    %v1463 = vadd.f32 %v1460, 1.0
    %v1464 = vadd.f32 %v1462, 1.0
    %v1465 = vrcp.pop %v1463
    %v1466 = vmul.f32 1.0, %v1465
    %v1467 = vrcp.pop %v1464
    %v1468 = vmul.f32 1.0, %v1467
    %v1469 = vadd.f32 %v1450, %v1365
    %v1470 = vadd.f32 %v1453, %v1371
    %v1471 = vxor.u32 %v1469, 2147483648
    %v1472 = vxor.u32 %v1470, 2147483648
    %v1473 = vmul.f32 %v1471, 1.442695
    %v1474 = vpow.pop %v1473
    %v1475 = vmul.f32 %v1472, 1.442695
    %v1476 = vpow.pop %v1475
    %v1477 = vadd.f32 %v1474, 1.0
    %v1478 = vadd.f32 %v1476, 1.0
    %v1479 = vrcp.pop %v1477
    %v1480 = vmul.f32 1.0, %v1479
    %v1481 = vrcp.pop %v1478
    %v1482 = vmul.f32 1.0, %v1481
    %v1483 = vmul.f32 %v1466, %v1440
    %v1484 = vmul.f32 %v1468, %v1445
    %v1485 = vadd.f32 %v1451, %v1483
    %v1486 = vadd.f32 %v1454, %v1484
    %v1487 = vtanh.pop %v1485
    %v1488 = vtanh.pop %v1486
    %v1489 = vsub.f32 1.0, %v1480
    %v1490 = vsub.f32 1.0, %v1482
    %v1491 = vmul.f32 %v1489, %v1487
    %v1492 = vmul.f32 %v1490, %v1488
    %v1493 = vmul.f32 %v1480, %v1246
    %v1494 = vmul.f32 %v1482, %v1247
    %v1495 = vadd.f32 %v1491, %v1493
    %v1496 = vadd.f32 %v1492, %v1494
    %1497 = vst [vmem:[#allocation2] sm:$0xff] %v1495
    %1498 = vst [vmem:[#allocation2 + $0x8] sm:$0xff] %v1496
    %s1499 = scalar_lea.vmem [#allocation10], 48
    %1500 = vst [vmem:[%s1499] sm:$0xff] %v1495
    %1501 = vst [vmem:[%s1499 + $0x8] sm:$0xff] %v1496
    %v1502 = vld [vmem:[#allocation2] sm:$0xff]
    %v1503 = vld [vmem:[#allocation2 + $0x8] sm:$0xff]
    %v1504 = vld [vmem:[#allocation9] sm:$0xff]
    %v1505 = vld [vmem:[#allocation9 + $0x8] sm:$0xff]
    %v1506 = vld [vmem:[#allocation9 + $0x10] sm:$0xff]
    %v1507 = vld [vmem:[#allocation9 + $0x18] sm:$0xff]
    %v1508 = vld [vmem:[#allocation9 + $0x20] sm:$0xff]
    %v1509 = vld [vmem:[#allocation9 + $0x28] sm:$0xff]
    %v1510 = vld [vmem:[#allocation9 + $0x30] sm:$0xff]
    %v1511 = vld [vmem:[#allocation9 + $0x38] sm:$0xff]
    %v1512 = vld [vmem:[#allocation9 + $0x40] sm:$0xff]
    %v1513 = vld [vmem:[#allocation9 + $0x48] sm:$0xff]
    %v1514 = vld [vmem:[#allocation9 + $0x50] sm:$0xff]
    %v1515 = vld [vmem:[#allocation9 + $0x58] sm:$0xff]
    %v1516 = vld [vmem:[#allocation9 + $0x60] sm:$0xff]
    %v1517 = vld [vmem:[#allocation9 + $0x68] sm:$0xff]
    %v1518 = vld [vmem:[#allocation9 + $0x70] sm:$0xff]
    %v1519 = vld [vmem:[#allocation9 + $0x78] sm:$0xff]
    %v1520 = vld [vmem:[#allocation9 + $0x80] sm:$0xff]
    %v1521 = vld [vmem:[#allocation9 + $0x88] sm:$0xff]
    %v1522 = vld [vmem:[#allocation9 + $0x90] sm:$0xff]
    %v1523 = vld [vmem:[#allocation9 + $0x98] sm:$0xff]
    %v1524 = vld [vmem:[#allocation9 + $0xa0] sm:$0xff]
    %v1525 = vld [vmem:[#allocation9 + $0xa8] sm:$0xff]
    %v1526 = vld [vmem:[#allocation9 + $0xb0] sm:$0xff]
    %v1527 = vld [vmem:[#allocation9 + $0xb8] sm:$0xff]
    %v1528 = vld [vmem:[#allocation9 + $0xc0] sm:$0xff]
    %v1529 = vld [vmem:[#allocation9 + $0xc8] sm:$0xff]
    %v1530 = vld [vmem:[#allocation9 + $0xd0] sm:$0xff]
    %v1531 = vld [vmem:[#allocation9 + $0xd8] sm:$0xff]
    %v1532 = vld [vmem:[#allocation9 + $0xe0] sm:$0xff]
    %v1533 = vld [vmem:[#allocation9 + $0xe8] sm:$0xff]
    %v1534 = vld [vmem:[#allocation9 + $0xf0] sm:$0xff]
    %v1535 = vld [vmem:[#allocation9 + $0xf8] sm:$0xff]
    %v1536 = vld [vmem:[#allocation9 + $0x100] sm:$0xff]
    %v1537 = vld [vmem:[#allocation9 + $0x108] sm:$0xff]
    %v1538 = vld [vmem:[#allocation9 + $0x110] sm:$0xff]
    %v1539 = vld [vmem:[#allocation9 + $0x118] sm:$0xff]
    %v1540 = vld [vmem:[#allocation9 + $0x120] sm:$0xff]
    %v1541 = vld [vmem:[#allocation9 + $0x128] sm:$0xff]
    %v1542 = vld [vmem:[#allocation9 + $0x130] sm:$0xff]
    %v1543 = vld [vmem:[#allocation9 + $0x138] sm:$0xff]
    %v1544 = vld [vmem:[#allocation9 + $0x140] sm:$0xff]
    %v1545 = vld [vmem:[#allocation9 + $0x148] sm:$0xff]
    %v1546 = vld [vmem:[#allocation9 + $0x150] sm:$0xff]
    %v1547 = vld [vmem:[#allocation9 + $0x158] sm:$0xff]
    %v1548 = vld [vmem:[#allocation9 + $0x160] sm:$0xff]
    %v1549 = vld [vmem:[#allocation9 + $0x168] sm:$0xff]
    %v1550 = vld [vmem:[#allocation9 + $0x170] sm:$0xff]
    %v1551 = vld [vmem:[#allocation9 + $0x178] sm:$0xff]
    %1552 = vmatprep.subr.mxu0 %v1505
    %1553 = vmatpush1.msra.mxu0 %v1504
    %1554 = vmatprep.subr.mxu0 %v1508
    %1555 = vmatpush1.msra.mxu0 %v1507
    %1556 = vmatprep.subr.mxu0 %v1511
    %1557 = vmatpush1.msra.mxu0 %v1510
    %1558 = vmatprep.subr.mxu0 %v1514
    %1559 = vmatpush1.msra.mxu0 %v1513
    %1560 = vmatprep.subr.mxu0 %v1517
    %1561 = vmatpush1.msra.mxu0 %v1516
    %1562 = vmatprep.subr.mxu0 %v1520
    %1563 = vmatpush1.msra.mxu0 %v1519
    %1564 = vmatprep.subr.mxu0 %v1523
    %1565 = vmatpush1.msra.mxu0 %v1522
    %1566 = vmatprep.subr.mxu0 %v1526
    %1567 = vmatpush1.msra.mxu0 %v1525
    %1568 = vmatprep.subr.mxu0 %v1529
    %1569 = vmatpush1.msra.mxu0 %v1528
    %1570 = vmatprep.subr.mxu0 %v1532
    %1571 = vmatpush1.msra.mxu0 %v1531
    %1572 = vmatprep.subr.mxu0 %v1535
    %1573 = vmatpush1.msra.mxu0 %v1534
    %1574 = vmatprep.subr.mxu0 %v1538
    %1575 = vmatpush1.msra.mxu0 %v1537
    %1576 = vmatprep.subr.mxu0 %v1541
    %1577 = vmatpush1.msra.mxu0 %v1540
    %1578 = vmatprep.subr.mxu0 %v1544
    %1579 = vmatpush1.msra.mxu0 %v1543
    %1580 = vmatprep.subr.mxu0 %v1547
    %1581 = vmatpush1.msra.mxu0 %v1546
    %1582 = vmatprep.subr.mxu0 %v1550
    %1583 = vmatpush1.msra.mxu0 %v1549
    %1584 = vmatprep.subr.mxu0 0.0
    %1585 = vmatpush1.msra.mxu0 0.0
    %1586 = vmatprep.subr.mxu0 0.0
    %1587 = vmatpush1.msra.mxu0 0.0
    %1588 = vmatprep.subr.mxu0 0.0
    %1589 = vmatpush1.msra.mxu0 0.0
    %1590 = vmatprep.subr.mxu0 0.0
    %1591 = vmatpush1.msra.mxu0 0.0
    %1592 = vmatprep.subr.mxu0 0.0
    %1593 = vmatpush1.msra.mxu0 0.0
    %1594 = vmatprep.subr.mxu0 0.0
    %1595 = vmatpush1.msra.mxu0 0.0
    %1596 = vmatprep.subr.mxu0 0.0
    %1597 = vmatpush1.msra.mxu0 0.0
    %1598 = vmatprep.subr.mxu0 0.0
    %1599 = vmatpush1.msra.mxu0 0.0
    %1600 = vmatprep.subr.mxu0 0.0
    %1601 = vmatpush1.msra.mxu0 0.0
    %1602 = vmatprep.subr.mxu0 0.0
    %1603 = vmatpush1.msra.mxu0 0.0
    %1604 = vmatprep.subr.mxu0 0.0
    %1605 = vmatpush1.msra.mxu0 0.0
    %1606 = vmatprep.subr.mxu0 0.0
    %1607 = vmatpush1.msra.mxu0 0.0
    %1608 = vmatprep.subr.mxu0 0.0
    %1609 = vmatpush1.msra.mxu0 0.0
    %1610 = vmatprep.subr.mxu0 0.0
    %1611 = vmatpush1.msra.mxu0 0.0
    %1612 = vmatprep.subr.mxu0 0.0
    %1613 = vmatpush1.msra.mxu0 0.0
    %1614 = vmatprep.subr.mxu0 0.0
    %1615 = vmatpush1.msra.mxu0 0.0
    %1616 = vmatprep.mubr.f32.mxu0 0.0
    %1617 = vmatmul.mubr.f32.gmra.mrb[0].mxu0 %v1502
    %v1618 = vpop.f32.mrb[0].mxu0
    %v1619 = vadd.f32 0.0, %v1618
    %v1620 = vpop.f32.mrb[0].mxu0
    %v1621 = vadd.f32 0.0, %v1620
    %1622 = vmatprep.mubr.f32.mxu0 0.0
    %1623 = vmatmul.mubr.f32.gmra.mrb[0].mxu0 %v1503
    %v1624 = vpop.f32.mrb[0].mxu0
    %v1625 = vadd.f32 0.0, %v1624
    %v1626 = vpop.f32.mrb[0].mxu0
    %v1627 = vadd.f32 0.0, %v1626
    %1628 = vdwg.mxu0
    %1629 = vmatprep.subr.mxu0 0.0
    %1630 = vmatpush1.msra.mxu0 %v1506
    %1631 = vmatprep.subr.mxu0 0.0
    %1632 = vmatpush1.msra.mxu0 %v1509
    %1633 = vmatprep.subr.mxu0 0.0
    %1634 = vmatpush1.msra.mxu0 %v1512
    %1635 = vmatprep.subr.mxu0 0.0
    %1636 = vmatpush1.msra.mxu0 %v1515
    %1637 = vmatprep.subr.mxu0 0.0
    %1638 = vmatpush1.msra.mxu0 %v1518
    %1639 = vmatprep.subr.mxu0 0.0
    %1640 = vmatpush1.msra.mxu0 %v1521
    %1641 = vmatprep.subr.mxu0 0.0
    %1642 = vmatpush1.msra.mxu0 %v1524
    %1643 = vmatprep.subr.mxu0 0.0
    %1644 = vmatpush1.msra.mxu0 %v1527
    %1645 = vmatprep.subr.mxu0 0.0
    %1646 = vmatpush1.msra.mxu0 %v1530
    %1647 = vmatprep.subr.mxu0 0.0
    %1648 = vmatpush1.msra.mxu0 %v1533
    %1649 = vmatprep.subr.mxu0 0.0
    %1650 = vmatpush1.msra.mxu0 %v1536
    %1651 = vmatprep.subr.mxu0 0.0
    %1652 = vmatpush1.msra.mxu0 %v1539
    %1653 = vmatprep.subr.mxu0 0.0
    %1654 = vmatpush1.msra.mxu0 %v1542
    %1655 = vmatprep.subr.mxu0 0.0
    %1656 = vmatpush1.msra.mxu0 %v1545
    %1657 = vmatprep.subr.mxu0 0.0
    %1658 = vmatpush1.msra.mxu0 %v1548
    %1659 = vmatprep.subr.mxu0 0.0
    %1660 = vmatpush1.msra.mxu0 %v1551
    %1661 = vmatprep.subr.mxu0 0.0
    %1662 = vmatpush1.msra.mxu0 0.0
    %1663 = vmatprep.subr.mxu0 0.0
    %1664 = vmatpush1.msra.mxu0 0.0
    %1665 = vmatprep.subr.mxu0 0.0
    %1666 = vmatpush1.msra.mxu0 0.0
    %1667 = vmatprep.subr.mxu0 0.0
    %1668 = vmatpush1.msra.mxu0 0.0
    %1669 = vmatprep.subr.mxu0 0.0
    %1670 = vmatpush1.msra.mxu0 0.0
    %1671 = vmatprep.subr.mxu0 0.0
    %1672 = vmatpush1.msra.mxu0 0.0
    %1673 = vmatprep.subr.mxu0 0.0
    %1674 = vmatpush1.msra.mxu0 0.0
    %1675 = vmatprep.subr.mxu0 0.0
    %1676 = vmatpush1.msra.mxu0 0.0
    %1677 = vmatprep.subr.mxu0 0.0
    %1678 = vmatpush1.msra.mxu0 0.0
    %1679 = vmatprep.subr.mxu0 0.0
    %1680 = vmatpush1.msra.mxu0 0.0
    %1681 = vmatprep.subr.mxu0 0.0
    %1682 = vmatpush1.msra.mxu0 0.0
    %1683 = vmatprep.subr.mxu0 0.0
    %1684 = vmatpush1.msra.mxu0 0.0
    %1685 = vmatprep.subr.mxu0 0.0
    %1686 = vmatpush1.msra.mxu0 0.0
    %1687 = vmatprep.subr.mxu0 0.0
    %1688 = vmatpush1.msra.mxu0 0.0
    %1689 = vmatprep.subr.mxu0 0.0
    %1690 = vmatpush1.msra.mxu0 0.0
    %1691 = vmatprep.subr.mxu0 0.0
    %1692 = vmatpush1.msra.mxu0 0.0
    %1693 = vmatprep.mubr.f32.mxu0 0.0
    %1694 = vmatmul.mubr.f32.gmra.mrb[0].mxu0 %v1502
    %v1695 = vpop.f32.mrb[0].mxu0
    %v1696 = vadd.f32 0.0, %v1695
    %v1697 = vpop.f32.mrb[0].mxu0
    %1698 = vmatprep.mubr.f32.mxu0 0.0
    %1699 = vmatmul.mubr.f32.gmra.mrb[0].mxu0 %v1503
    %v1700 = vpop.f32.mrb[0].mxu0
    %v1701 = vadd.f32 0.0, %v1700
    %v1702 = vpop.f32.mrb[0].mxu0
    %1703 = vdwg.mxu0
    %s1704 = scalar_lea.vmem [#allocation3], 192
    %v1705 = vld [vmem:[%s1704] sm:$0xff]
    %v1706 = vld [vmem:[%s1704 + $0x8] sm:$0xff]
    %v1707 = vld [vmem:[%s1704 + $0x10] sm:$0xff]
    %v1708 = vld [vmem:[%s1704 + $0x18] sm:$0xff]
    %v1709 = vld [vmem:[%s1704 + $0x20] sm:$0xff]
    %v1710 = vld [vmem:[%s1704 + $0x28] sm:$0xff]
    %v1711 = vadd.f32 %v1705, %v1619
    %v1712 = vadd.f32 %v1708, %v1625
    %v1713 = vxor.u32 %v1711, 2147483648
    %v1714 = vxor.u32 %v1712, 2147483648
    %v1715 = vmul.f32 %v1713, 1.442695
    %v1716 = vpow.pop %v1715
    %v1717 = vmul.f32 %v1714, 1.442695
    %v1718 = vpow.pop %v1717
    %v1719 = vadd.f32 %v1716, 1.0
    %v1720 = vadd.f32 %v1718, 1.0
    %v1721 = vrcp.pop %v1719
    %v1722 = vmul.f32 1.0, %v1721
    %v1723 = vrcp.pop %v1720
    %v1724 = vmul.f32 1.0, %v1723
    %v1725 = vadd.f32 %v1706, %v1621
    %v1726 = vadd.f32 %v1709, %v1627
    %v1727 = vxor.u32 %v1725, 2147483648
    %v1728 = vxor.u32 %v1726, 2147483648
    %v1729 = vmul.f32 %v1727, 1.442695
    %v1730 = vpow.pop %v1729
    %v1731 = vmul.f32 %v1728, 1.442695
    %v1732 = vpow.pop %v1731
    %v1733 = vadd.f32 %v1730, 1.0
    %v1734 = vadd.f32 %v1732, 1.0
    %v1735 = vrcp.pop %v1733
    %v1736 = vmul.f32 1.0, %v1735
    %v1737 = vrcp.pop %v1734
    %v1738 = vmul.f32 1.0, %v1737
    %v1739 = vmul.f32 %v1722, %v1696
    %v1740 = vmul.f32 %v1724, %v1701
    %v1741 = vadd.f32 %v1707, %v1739
    %v1742 = vadd.f32 %v1710, %v1740
    %v1743 = vtanh.pop %v1741
    %v1744 = vtanh.pop %v1742
    %v1745 = vsub.f32 1.0, %v1736
    %v1746 = vsub.f32 1.0, %v1738
    %v1747 = vmul.f32 %v1745, %v1743
    %v1748 = vmul.f32 %v1746, %v1744
    %v1749 = vmul.f32 %v1736, %v1502
    %v1750 = vmul.f32 %v1738, %v1503
    %v1751 = vadd.f32 %v1747, %v1749
    %v1752 = vadd.f32 %v1748, %v1750
    %1753 = vst [vmem:[#allocation2] sm:$0xff] %v1751
    %1754 = vst [vmem:[#allocation2 + $0x8] sm:$0xff] %v1752
    %s1755 = scalar_lea.vmem [#allocation10], 64
    %1756 = vst [vmem:[%s1755] sm:$0xff] %v1751
    %1757 = vst [vmem:[%s1755 + $0x8] sm:$0xff] %v1752
    %v1758 = vld [vmem:[#allocation2] sm:$0xff]
    %v1759 = vld [vmem:[#allocation2 + $0x8] sm:$0xff]
    %v1760 = vld [vmem:[#allocation9] sm:$0xff]
    %v1761 = vld [vmem:[#allocation9 + $0x8] sm:$0xff]
    %v1762 = vld [vmem:[#allocation9 + $0x10] sm:$0xff]
    %v1763 = vld [vmem:[#allocation9 + $0x18] sm:$0xff]
    %v1764 = vld [vmem:[#allocation9 + $0x20] sm:$0xff]
    %v1765 = vld [vmem:[#allocation9 + $0x28] sm:$0xff]
    %v1766 = vld [vmem:[#allocation9 + $0x30] sm:$0xff]
    %v1767 = vld [vmem:[#allocation9 + $0x38] sm:$0xff]
    %v1768 = vld [vmem:[#allocation9 + $0x40] sm:$0xff]
    %v1769 = vld [vmem:[#allocation9 + $0x48] sm:$0xff]
    %v1770 = vld [vmem:[#allocation9 + $0x50] sm:$0xff]
    %v1771 = vld [vmem:[#allocation9 + $0x58] sm:$0xff]
    %v1772 = vld [vmem:[#allocation9 + $0x60] sm:$0xff]
    %v1773 = vld [vmem:[#allocation9 + $0x68] sm:$0xff]
    %v1774 = vld [vmem:[#allocation9 + $0x70] sm:$0xff]
    %v1775 = vld [vmem:[#allocation9 + $0x78] sm:$0xff]
    %v1776 = vld [vmem:[#allocation9 + $0x80] sm:$0xff]
    %v1777 = vld [vmem:[#allocation9 + $0x88] sm:$0xff]
    %v1778 = vld [vmem:[#allocation9 + $0x90] sm:$0xff]
    %v1779 = vld [vmem:[#allocation9 + $0x98] sm:$0xff]
    %v1780 = vld [vmem:[#allocation9 + $0xa0] sm:$0xff]
    %v1781 = vld [vmem:[#allocation9 + $0xa8] sm:$0xff]
    %v1782 = vld [vmem:[#allocation9 + $0xb0] sm:$0xff]
    %v1783 = vld [vmem:[#allocation9 + $0xb8] sm:$0xff]
    %v1784 = vld [vmem:[#allocation9 + $0xc0] sm:$0xff]
    %v1785 = vld [vmem:[#allocation9 + $0xc8] sm:$0xff]
    %v1786 = vld [vmem:[#allocation9 + $0xd0] sm:$0xff]
    %v1787 = vld [vmem:[#allocation9 + $0xd8] sm:$0xff]
    %v1788 = vld [vmem:[#allocation9 + $0xe0] sm:$0xff]
    %v1789 = vld [vmem:[#allocation9 + $0xe8] sm:$0xff]
    %v1790 = vld [vmem:[#allocation9 + $0xf0] sm:$0xff]
    %v1791 = vld [vmem:[#allocation9 + $0xf8] sm:$0xff]
    %v1792 = vld [vmem:[#allocation9 + $0x100] sm:$0xff]
    %v1793 = vld [vmem:[#allocation9 + $0x108] sm:$0xff]
    %v1794 = vld [vmem:[#allocation9 + $0x110] sm:$0xff]
    %v1795 = vld [vmem:[#allocation9 + $0x118] sm:$0xff]
    %v1796 = vld [vmem:[#allocation9 + $0x120] sm:$0xff]
    %v1797 = vld [vmem:[#allocation9 + $0x128] sm:$0xff]
    %v1798 = vld [vmem:[#allocation9 + $0x130] sm:$0xff]
    %v1799 = vld [vmem:[#allocation9 + $0x138] sm:$0xff]
    %v1800 = vld [vmem:[#allocation9 + $0x140] sm:$0xff]
    %v1801 = vld [vmem:[#allocation9 + $0x148] sm:$0xff]
    %v1802 = vld [vmem:[#allocation9 + $0x150] sm:$0xff]
    %v1803 = vld [vmem:[#allocation9 + $0x158] sm:$0xff]
    %v1804 = vld [vmem:[#allocation9 + $0x160] sm:$0xff]
    %v1805 = vld [vmem:[#allocation9 + $0x168] sm:$0xff]
    %v1806 = vld [vmem:[#allocation9 + $0x170] sm:$0xff]
    %v1807 = vld [vmem:[#allocation9 + $0x178] sm:$0xff]
    %1808 = vmatprep.subr.mxu0 %v1761
    %1809 = vmatpush1.msra.mxu0 %v1760
    %1810 = vmatprep.subr.mxu0 %v1764
    %1811 = vmatpush1.msra.mxu0 %v1763
    %1812 = vmatprep.subr.mxu0 %v1767
    %1813 = vmatpush1.msra.mxu0 %v1766
    %1814 = vmatprep.subr.mxu0 %v1770
    %1815 = vmatpush1.msra.mxu0 %v1769
    %1816 = vmatprep.subr.mxu0 %v1773
    %1817 = vmatpush1.msra.mxu0 %v1772
    %1818 = vmatprep.subr.mxu0 %v1776
    %1819 = vmatpush1.msra.mxu0 %v1775
    %1820 = vmatprep.subr.mxu0 %v1779
    %1821 = vmatpush1.msra.mxu0 %v1778
    %1822 = vmatprep.subr.mxu0 %v1782
    %1823 = vmatpush1.msra.mxu0 %v1781
    %1824 = vmatprep.subr.mxu0 %v1785
    %1825 = vmatpush1.msra.mxu0 %v1784
    %1826 = vmatprep.subr.mxu0 %v1788
    %1827 = vmatpush1.msra.mxu0 %v1787
    %1828 = vmatprep.subr.mxu0 %v1791
    %1829 = vmatpush1.msra.mxu0 %v1790
    %1830 = vmatprep.subr.mxu0 %v1794
    %1831 = vmatpush1.msra.mxu0 %v1793
    %1832 = vmatprep.subr.mxu0 %v1797
    %1833 = vmatpush1.msra.mxu0 %v1796
    %1834 = vmatprep.subr.mxu0 %v1800
    %1835 = vmatpush1.msra.mxu0 %v1799
    %1836 = vmatprep.subr.mxu0 %v1803
    %1837 = vmatpush1.msra.mxu0 %v1802
    %1838 = vmatprep.subr.mxu0 %v1806
    %1839 = vmatpush1.msra.mxu0 %v1805
    %1840 = vmatprep.subr.mxu0 0.0
    %1841 = vmatpush1.msra.mxu0 0.0
    %1842 = vmatprep.subr.mxu0 0.0
    %1843 = vmatpush1.msra.mxu0 0.0
    %1844 = vmatprep.subr.mxu0 0.0
    %1845 = vmatpush1.msra.mxu0 0.0
    %1846 = vmatprep.subr.mxu0 0.0
    %1847 = vmatpush1.msra.mxu0 0.0
    %1848 = vmatprep.subr.mxu0 0.0
    %1849 = vmatpush1.msra.mxu0 0.0
    %1850 = vmatprep.subr.mxu0 0.0
    %1851 = vmatpush1.msra.mxu0 0.0
    %1852 = vmatprep.subr.mxu0 0.0
    %1853 = vmatpush1.msra.mxu0 0.0
    %1854 = vmatprep.subr.mxu0 0.0
    %1855 = vmatpush1.msra.mxu0 0.0
    %1856 = vmatprep.subr.mxu0 0.0
    %1857 = vmatpush1.msra.mxu0 0.0
    %1858 = vmatprep.subr.mxu0 0.0
    %1859 = vmatpush1.msra.mxu0 0.0
    %1860 = vmatprep.subr.mxu0 0.0
    %1861 = vmatpush1.msra.mxu0 0.0
    %1862 = vmatprep.subr.mxu0 0.0
    %1863 = vmatpush1.msra.mxu0 0.0
    %1864 = vmatprep.subr.mxu0 0.0
    %1865 = vmatpush1.msra.mxu0 0.0
    %1866 = vmatprep.subr.mxu0 0.0
    %1867 = vmatpush1.msra.mxu0 0.0
    %1868 = vmatprep.subr.mxu0 0.0
    %1869 = vmatpush1.msra.mxu0 0.0
    %1870 = vmatprep.subr.mxu0 0.0
    %1871 = vmatpush1.msra.mxu0 0.0
    %1872 = vmatprep.mubr.f32.mxu0 0.0
    %1873 = vmatmul.mubr.f32.gmra.mrb[0].mxu0 %v1758
    %v1874 = vpop.f32.mrb[0].mxu0
    %v1875 = vadd.f32 0.0, %v1874
    %v1876 = vpop.f32.mrb[0].mxu0
    %v1877 = vadd.f32 0.0, %v1876
    %1878 = vmatprep.mubr.f32.mxu0 0.0
    %1879 = vmatmul.mubr.f32.gmra.mrb[0].mxu0 %v1759
    %v1880 = vpop.f32.mrb[0].mxu0
    %v1881 = vadd.f32 0.0, %v1880
    %v1882 = vpop.f32.mrb[0].mxu0
    %v1883 = vadd.f32 0.0, %v1882
    %1884 = vdwg.mxu0
    %1885 = vmatprep.subr.mxu0 0.0
    %1886 = vmatpush1.msra.mxu0 %v1762
    %1887 = vmatprep.subr.mxu0 0.0
    %1888 = vmatpush1.msra.mxu0 %v1765
    %1889 = vmatprep.subr.mxu0 0.0
    %1890 = vmatpush1.msra.mxu0 %v1768
    %1891 = vmatprep.subr.mxu0 0.0
    %1892 = vmatpush1.msra.mxu0 %v1771
    %1893 = vmatprep.subr.mxu0 0.0
    %1894 = vmatpush1.msra.mxu0 %v1774
    %1895 = vmatprep.subr.mxu0 0.0
    %1896 = vmatpush1.msra.mxu0 %v1777
    %1897 = vmatprep.subr.mxu0 0.0
    %1898 = vmatpush1.msra.mxu0 %v1780
    %1899 = vmatprep.subr.mxu0 0.0
    %1900 = vmatpush1.msra.mxu0 %v1783
    %1901 = vmatprep.subr.mxu0 0.0
    %1902 = vmatpush1.msra.mxu0 %v1786
    %1903 = vmatprep.subr.mxu0 0.0
    %1904 = vmatpush1.msra.mxu0 %v1789
    %1905 = vmatprep.subr.mxu0 0.0
    %1906 = vmatpush1.msra.mxu0 %v1792
    %1907 = vmatprep.subr.mxu0 0.0
    %1908 = vmatpush1.msra.mxu0 %v1795
    %1909 = vmatprep.subr.mxu0 0.0
    %1910 = vmatpush1.msra.mxu0 %v1798
    %1911 = vmatprep.subr.mxu0 0.0
    %1912 = vmatpush1.msra.mxu0 %v1801
    %1913 = vmatprep.subr.mxu0 0.0
    %1914 = vmatpush1.msra.mxu0 %v1804
    %1915 = vmatprep.subr.mxu0 0.0
    %1916 = vmatpush1.msra.mxu0 %v1807
    %1917 = vmatprep.subr.mxu0 0.0
    %1918 = vmatpush1.msra.mxu0 0.0
    %1919 = vmatprep.subr.mxu0 0.0
    %1920 = vmatpush1.msra.mxu0 0.0
    %1921 = vmatprep.subr.mxu0 0.0
    %1922 = vmatpush1.msra.mxu0 0.0
    %1923 = vmatprep.subr.mxu0 0.0
    %1924 = vmatpush1.msra.mxu0 0.0
    %1925 = vmatprep.subr.mxu0 0.0
    %1926 = vmatpush1.msra.mxu0 0.0
    %1927 = vmatprep.subr.mxu0 0.0
    %1928 = vmatpush1.msra.mxu0 0.0
    %1929 = vmatprep.subr.mxu0 0.0
    %1930 = vmatpush1.msra.mxu0 0.0
    %1931 = vmatprep.subr.mxu0 0.0
    %1932 = vmatpush1.msra.mxu0 0.0
    %1933 = vmatprep.subr.mxu0 0.0
    %1934 = vmatpush1.msra.mxu0 0.0
    %1935 = vmatprep.subr.mxu0 0.0
    %1936 = vmatpush1.msra.mxu0 0.0
    %1937 = vmatprep.subr.mxu0 0.0
    %1938 = vmatpush1.msra.mxu0 0.0
    %1939 = vmatprep.subr.mxu0 0.0
    %1940 = vmatpush1.msra.mxu0 0.0
    %1941 = vmatprep.subr.mxu0 0.0
    %1942 = vmatpush1.msra.mxu0 0.0
    %1943 = vmatprep.subr.mxu0 0.0
    %1944 = vmatpush1.msra.mxu0 0.0
    %1945 = vmatprep.subr.mxu0 0.0
    %1946 = vmatpush1.msra.mxu0 0.0
    %1947 = vmatprep.subr.mxu0 0.0
    %1948 = vmatpush1.msra.mxu0 0.0
    %1949 = vmatprep.mubr.f32.mxu0 0.0
    %1950 = vmatmul.mubr.f32.gmra.mrb[0].mxu0 %v1758
    %v1951 = vpop.f32.mrb[0].mxu0
    %v1952 = vadd.f32 0.0, %v1951
    %v1953 = vpop.f32.mrb[0].mxu0
    %1954 = vmatprep.mubr.f32.mxu0 0.0
    %1955 = vmatmul.mubr.f32.gmra.mrb[0].mxu0 %v1759
    %v1956 = vpop.f32.mrb[0].mxu0
    %v1957 = vadd.f32 0.0, %v1956
    %v1958 = vpop.f32.mrb[0].mxu0
    %1959 = vdwg.mxu0
    %s1960 = scalar_lea.vmem [#allocation3], 240
    %v1961 = vld [vmem:[%s1960] sm:$0xff]
    %v1962 = vld [vmem:[%s1960 + $0x8] sm:$0xff]
    %v1963 = vld [vmem:[%s1960 + $0x10] sm:$0xff]
    %v1964 = vld [vmem:[%s1960 + $0x18] sm:$0xff]
    %v1965 = vld [vmem:[%s1960 + $0x20] sm:$0xff]
    %v1966 = vld [vmem:[%s1960 + $0x28] sm:$0xff]
    %v1967 = vadd.f32 %v1961, %v1875
    %v1968 = vadd.f32 %v1964, %v1881
    %v1969 = vxor.u32 %v1967, 2147483648
    %v1970 = vxor.u32 %v1968, 2147483648
    %v1971 = vmul.f32 %v1969, 1.442695
    %v1972 = vpow.pop %v1971
    %v1973 = vmul.f32 %v1970, 1.442695
    %v1974 = vpow.pop %v1973
    %v1975 = vadd.f32 %v1972, 1.0
    %v1976 = vadd.f32 %v1974, 1.0
    %v1977 = vrcp.pop %v1975
    %v1978 = vmul.f32 1.0, %v1977
    %v1979 = vrcp.pop %v1976
    %v1980 = vmul.f32 1.0, %v1979
    %v1981 = vadd.f32 %v1962, %v1877
    %v1982 = vadd.f32 %v1965, %v1883
    %v1983 = vxor.u32 %v1981, 2147483648
    %v1984 = vxor.u32 %v1982, 2147483648
    %v1985 = vmul.f32 %v1983, 1.442695
    %v1986 = vpow.pop %v1985
    %v1987 = vmul.f32 %v1984, 1.442695
    %v1988 = vpow.pop %v1987
    %v1989 = vadd.f32 %v1986, 1.0
    %v1990 = vadd.f32 %v1988, 1.0
    %v1991 = vrcp.pop %v1989
    %v1992 = vmul.f32 1.0, %v1991
    %v1993 = vrcp.pop %v1990
    %v1994 = vmul.f32 1.0, %v1993
    %v1995 = vmul.f32 %v1978, %v1952
    %v1996 = vmul.f32 %v1980, %v1957
    %v1997 = vadd.f32 %v1963, %v1995
    %v1998 = vadd.f32 %v1966, %v1996
    %v1999 = vtanh.pop %v1997
    %v2000 = vtanh.pop %v1998
    %v2001 = vsub.f32 1.0, %v1992
    %v2002 = vsub.f32 1.0, %v1994
    %v2003 = vmul.f32 %v2001, %v1999
    %v2004 = vmul.f32 %v2002, %v2000
    %v2005 = vmul.f32 %v1992, %v1758
    %v2006 = vmul.f32 %v1994, %v1759
    %v2007 = vadd.f32 %v2003, %v2005
    %v2008 = vadd.f32 %v2004, %v2006
    %2009 = vst [vmem:[#allocation2] sm:$0xff] %v2007
    %2010 = vst [vmem:[#allocation2 + $0x8] sm:$0xff] %v2008
    %s2011 = scalar_lea.vmem [#allocation10], 80
    %2012 = vst [vmem:[%s2011] sm:$0xff] %v2007
    %2013 = vst [vmem:[%s2011 + $0x8] sm:$0xff] %v2008
    %v2014 = vld [vmem:[#allocation2] sm:$0xff]
    %v2015 = vld [vmem:[#allocation2 + $0x8] sm:$0xff]
    %v2016 = vld [vmem:[#allocation9] sm:$0xff]
    %v2017 = vld [vmem:[#allocation9 + $0x8] sm:$0xff]
    %v2018 = vld [vmem:[#allocation9 + $0x10] sm:$0xff]
    %v2019 = vld [vmem:[#allocation9 + $0x18] sm:$0xff]
    %v2020 = vld [vmem:[#allocation9 + $0x20] sm:$0xff]
    %v2021 = vld [vmem:[#allocation9 + $0x28] sm:$0xff]
    %v2022 = vld [vmem:[#allocation9 + $0x30] sm:$0xff]
    %v2023 = vld [vmem:[#allocation9 + $0x38] sm:$0xff]
    %v2024 = vld [vmem:[#allocation9 + $0x40] sm:$0xff]
    %v2025 = vld [vmem:[#allocation9 + $0x48] sm:$0xff]
    %v2026 = vld [vmem:[#allocation9 + $0x50] sm:$0xff]
    %v2027 = vld [vmem:[#allocation9 + $0x58] sm:$0xff]
    %v2028 = vld [vmem:[#allocation9 + $0x60] sm:$0xff]
    %v2029 = vld [vmem:[#allocation9 + $0x68] sm:$0xff]
    %v2030 = vld [vmem:[#allocation9 + $0x70] sm:$0xff]
    %v2031 = vld [vmem:[#allocation9 + $0x78] sm:$0xff]
    %v2032 = vld [vmem:[#allocation9 + $0x80] sm:$0xff]
    %v2033 = vld [vmem:[#allocation9 + $0x88] sm:$0xff]
    %v2034 = vld [vmem:[#allocation9 + $0x90] sm:$0xff]
    %v2035 = vld [vmem:[#allocation9 + $0x98] sm:$0xff]
    %v2036 = vld [vmem:[#allocation9 + $0xa0] sm:$0xff]
    %v2037 = vld [vmem:[#allocation9 + $0xa8] sm:$0xff]
    %v2038 = vld [vmem:[#allocation9 + $0xb0] sm:$0xff]
    %v2039 = vld [vmem:[#allocation9 + $0xb8] sm:$0xff]
    %v2040 = vld [vmem:[#allocation9 + $0xc0] sm:$0xff]
    %v2041 = vld [vmem:[#allocation9 + $0xc8] sm:$0xff]
    %v2042 = vld [vmem:[#allocation9 + $0xd0] sm:$0xff]
    %v2043 = vld [vmem:[#allocation9 + $0xd8] sm:$0xff]
    %v2044 = vld [vmem:[#allocation9 + $0xe0] sm:$0xff]
    %v2045 = vld [vmem:[#allocation9 + $0xe8] sm:$0xff]
    %v2046 = vld [vmem:[#allocation9 + $0xf0] sm:$0xff]
    %v2047 = vld [vmem:[#allocation9 + $0xf8] sm:$0xff]
    %v2048 = vld [vmem:[#allocation9 + $0x100] sm:$0xff]
    %v2049 = vld [vmem:[#allocation9 + $0x108] sm:$0xff]
    %v2050 = vld [vmem:[#allocation9 + $0x110] sm:$0xff]
    %v2051 = vld [vmem:[#allocation9 + $0x118] sm:$0xff]
    %v2052 = vld [vmem:[#allocation9 + $0x120] sm:$0xff]
    %v2053 = vld [vmem:[#allocation9 + $0x128] sm:$0xff]
    %v2054 = vld [vmem:[#allocation9 + $0x130] sm:$0xff]
    %v2055 = vld [vmem:[#allocation9 + $0x138] sm:$0xff]
    %v2056 = vld [vmem:[#allocation9 + $0x140] sm:$0xff]
    %v2057 = vld [vmem:[#allocation9 + $0x148] sm:$0xff]
    %v2058 = vld [vmem:[#allocation9 + $0x150] sm:$0xff]
    %v2059 = vld [vmem:[#allocation9 + $0x158] sm:$0xff]
    %v2060 = vld [vmem:[#allocation9 + $0x160] sm:$0xff]
    %v2061 = vld [vmem:[#allocation9 + $0x168] sm:$0xff]
    %v2062 = vld [vmem:[#allocation9 + $0x170] sm:$0xff]
    %v2063 = vld [vmem:[#allocation9 + $0x178] sm:$0xff]
    %2064 = vmatprep.subr.mxu0 %v2017
    %2065 = vmatpush1.msra.mxu0 %v2016
    %2066 = vmatprep.subr.mxu0 %v2020
    %2067 = vmatpush1.msra.mxu0 %v2019
    %2068 = vmatprep.subr.mxu0 %v2023
    %2069 = vmatpush1.msra.mxu0 %v2022
    %2070 = vmatprep.subr.mxu0 %v2026
    %2071 = vmatpush1.msra.mxu0 %v2025
    %2072 = vmatprep.subr.mxu0 %v2029
    %2073 = vmatpush1.msra.mxu0 %v2028
    %2074 = vmatprep.subr.mxu0 %v2032
    %2075 = vmatpush1.msra.mxu0 %v2031
    %2076 = vmatprep.subr.mxu0 %v2035
    %2077 = vmatpush1.msra.mxu0 %v2034
    %2078 = vmatprep.subr.mxu0 %v2038
    %2079 = vmatpush1.msra.mxu0 %v2037
    %2080 = vmatprep.subr.mxu0 %v2041
    %2081 = vmatpush1.msra.mxu0 %v2040
    %2082 = vmatprep.subr.mxu0 %v2044
    %2083 = vmatpush1.msra.mxu0 %v2043
    %2084 = vmatprep.subr.mxu0 %v2047
    %2085 = vmatpush1.msra.mxu0 %v2046
    %2086 = vmatprep.subr.mxu0 %v2050
    %2087 = vmatpush1.msra.mxu0 %v2049
    %2088 = vmatprep.subr.mxu0 %v2053
    %2089 = vmatpush1.msra.mxu0 %v2052
    %2090 = vmatprep.subr.mxu0 %v2056
    %2091 = vmatpush1.msra.mxu0 %v2055
    %2092 = vmatprep.subr.mxu0 %v2059
    %2093 = vmatpush1.msra.mxu0 %v2058
    %2094 = vmatprep.subr.mxu0 %v2062
    %2095 = vmatpush1.msra.mxu0 %v2061
    %2096 = vmatprep.subr.mxu0 0.0
    %2097 = vmatpush1.msra.mxu0 0.0
    %2098 = vmatprep.subr.mxu0 0.0
    %2099 = vmatpush1.msra.mxu0 0.0
    %2100 = vmatprep.subr.mxu0 0.0
    %2101 = vmatpush1.msra.mxu0 0.0
    %2102 = vmatprep.subr.mxu0 0.0
    %2103 = vmatpush1.msra.mxu0 0.0
    %2104 = vmatprep.subr.mxu0 0.0
    %2105 = vmatpush1.msra.mxu0 0.0
    %2106 = vmatprep.subr.mxu0 0.0
    %2107 = vmatpush1.msra.mxu0 0.0
    %2108 = vmatprep.subr.mxu0 0.0
    %2109 = vmatpush1.msra.mxu0 0.0
    %2110 = vmatprep.subr.mxu0 0.0
    %2111 = vmatpush1.msra.mxu0 0.0
    %2112 = vmatprep.subr.mxu0 0.0
    %2113 = vmatpush1.msra.mxu0 0.0
    %2114 = vmatprep.subr.mxu0 0.0
    %2115 = vmatpush1.msra.mxu0 0.0
    %2116 = vmatprep.subr.mxu0 0.0
    %2117 = vmatpush1.msra.mxu0 0.0
    %2118 = vmatprep.subr.mxu0 0.0
    %2119 = vmatpush1.msra.mxu0 0.0
    %2120 = vmatprep.subr.mxu0 0.0
    %2121 = vmatpush1.msra.mxu0 0.0
    %2122 = vmatprep.subr.mxu0 0.0
    %2123 = vmatpush1.msra.mxu0 0.0
    %2124 = vmatprep.subr.mxu0 0.0
    %2125 = vmatpush1.msra.mxu0 0.0
    %2126 = vmatprep.subr.mxu0 0.0
    %2127 = vmatpush1.msra.mxu0 0.0
    %2128 = vmatprep.mubr.f32.mxu0 0.0
    %2129 = vmatmul.mubr.f32.gmra.mrb[0].mxu0 %v2014
    %v2130 = vpop.f32.mrb[0].mxu0
    %v2131 = vadd.f32 0.0, %v2130
    %v2132 = vpop.f32.mrb[0].mxu0
    %v2133 = vadd.f32 0.0, %v2132
    %2134 = vmatprep.mubr.f32.mxu0 0.0
    %2135 = vmatmul.mubr.f32.gmra.mrb[0].mxu0 %v2015
    %v2136 = vpop.f32.mrb[0].mxu0
    %v2137 = vadd.f32 0.0, %v2136
    %v2138 = vpop.f32.mrb[0].mxu0
    %v2139 = vadd.f32 0.0, %v2138
    %2140 = vdwg.mxu0
    %2141 = vmatprep.subr.mxu0 0.0
    %2142 = vmatpush1.msra.mxu0 %v2018
    %2143 = vmatprep.subr.mxu0 0.0
    %2144 = vmatpush1.msra.mxu0 %v2021
    %2145 = vmatprep.subr.mxu0 0.0
    %2146 = vmatpush1.msra.mxu0 %v2024
    %2147 = vmatprep.subr.mxu0 0.0
    %2148 = vmatpush1.msra.mxu0 %v2027
    %2149 = vmatprep.subr.mxu0 0.0
    %2150 = vmatpush1.msra.mxu0 %v2030
    %2151 = vmatprep.subr.mxu0 0.0
    %2152 = vmatpush1.msra.mxu0 %v2033
    %2153 = vmatprep.subr.mxu0 0.0
    %2154 = vmatpush1.msra.mxu0 %v2036
    %2155 = vmatprep.subr.mxu0 0.0
    %2156 = vmatpush1.msra.mxu0 %v2039
    %2157 = vmatprep.subr.mxu0 0.0
    %2158 = vmatpush1.msra.mxu0 %v2042
    %2159 = vmatprep.subr.mxu0 0.0
    %2160 = vmatpush1.msra.mxu0 %v2045
    %2161 = vmatprep.subr.mxu0 0.0
    %2162 = vmatpush1.msra.mxu0 %v2048
    %2163 = vmatprep.subr.mxu0 0.0
    %2164 = vmatpush1.msra.mxu0 %v2051
    %2165 = vmatprep.subr.mxu0 0.0
    %2166 = vmatpush1.msra.mxu0 %v2054
    %2167 = vmatprep.subr.mxu0 0.0
    %2168 = vmatpush1.msra.mxu0 %v2057
    %2169 = vmatprep.subr.mxu0 0.0
    %2170 = vmatpush1.msra.mxu0 %v2060
    %2171 = vmatprep.subr.mxu0 0.0
    %2172 = vmatpush1.msra.mxu0 %v2063
    %2173 = vmatprep.subr.mxu0 0.0
    %2174 = vmatpush1.msra.mxu0 0.0
    %2175 = vmatprep.subr.mxu0 0.0
    %2176 = vmatpush1.msra.mxu0 0.0
    %2177 = vmatprep.subr.mxu0 0.0
    %2178 = vmatpush1.msra.mxu0 0.0
    %2179 = vmatprep.subr.mxu0 0.0
    %2180 = vmatpush1.msra.mxu0 0.0
    %2181 = vmatprep.subr.mxu0 0.0
    %2182 = vmatpush1.msra.mxu0 0.0
    %2183 = vmatprep.subr.mxu0 0.0
    %2184 = vmatpush1.msra.mxu0 0.0
    %2185 = vmatprep.subr.mxu0 0.0
    %2186 = vmatpush1.msra.mxu0 0.0
    %2187 = vmatprep.subr.mxu0 0.0
    %2188 = vmatpush1.msra.mxu0 0.0
    %2189 = vmatprep.subr.mxu0 0.0
    %2190 = vmatpush1.msra.mxu0 0.0
    %2191 = vmatprep.subr.mxu0 0.0
    %2192 = vmatpush1.msra.mxu0 0.0
    %2193 = vmatprep.subr.mxu0 0.0
    %2194 = vmatpush1.msra.mxu0 0.0
    %2195 = vmatprep.subr.mxu0 0.0
    %2196 = vmatpush1.msra.mxu0 0.0
    %2197 = vmatprep.subr.mxu0 0.0
    %2198 = vmatpush1.msra.mxu0 0.0
    %2199 = vmatprep.subr.mxu0 0.0
    %2200 = vmatpush1.msra.mxu0 0.0
    %2201 = vmatprep.subr.mxu0 0.0
    %2202 = vmatpush1.msra.mxu0 0.0
    %2203 = vmatprep.subr.mxu0 0.0
    %2204 = vmatpush1.msra.mxu0 0.0
    %2205 = vmatprep.mubr.f32.mxu0 0.0
    %2206 = vmatmul.mubr.f32.gmra.mrb[0].mxu0 %v2014
    %v2207 = vpop.f32.mrb[0].mxu0
    %v2208 = vadd.f32 0.0, %v2207
    %v2209 = vpop.f32.mrb[0].mxu0
    %2210 = vmatprep.mubr.f32.mxu0 0.0
    %2211 = vmatmul.mubr.f32.gmra.mrb[0].mxu0 %v2015
    %v2212 = vpop.f32.mrb[0].mxu0
    %v2213 = vadd.f32 0.0, %v2212
    %v2214 = vpop.f32.mrb[0].mxu0
    %2215 = vdwg.mxu0
    %s2216 = scalar_lea.vmem [#allocation3], 288
    %v2217 = vld [vmem:[%s2216] sm:$0xff]
    %v2218 = vld [vmem:[%s2216 + $0x8] sm:$0xff]
    %v2219 = vld [vmem:[%s2216 + $0x10] sm:$0xff]
    %v2220 = vld [vmem:[%s2216 + $0x18] sm:$0xff]
    %v2221 = vld [vmem:[%s2216 + $0x20] sm:$0xff]
    %v2222 = vld [vmem:[%s2216 + $0x28] sm:$0xff]
    %v2223 = vadd.f32 %v2217, %v2131
    %v2224 = vadd.f32 %v2220, %v2137
    %v2225 = vxor.u32 %v2223, 2147483648
    %v2226 = vxor.u32 %v2224, 2147483648
    %v2227 = vmul.f32 %v2225, 1.442695
    %v2228 = vpow.pop %v2227
    %v2229 = vmul.f32 %v2226, 1.442695
    %v2230 = vpow.pop %v2229
    %v2231 = vadd.f32 %v2228, 1.0
    %v2232 = vadd.f32 %v2230, 1.0
    %v2233 = vrcp.pop %v2231
    %v2234 = vmul.f32 1.0, %v2233
    %v2235 = vrcp.pop %v2232
    %v2236 = vmul.f32 1.0, %v2235
    %v2237 = vadd.f32 %v2218, %v2133
    %v2238 = vadd.f32 %v2221, %v2139
    %v2239 = vxor.u32 %v2237, 2147483648
    %v2240 = vxor.u32 %v2238, 2147483648
    %v2241 = vmul.f32 %v2239, 1.442695
    %v2242 = vpow.pop %v2241
    %v2243 = vmul.f32 %v2240, 1.442695
    %v2244 = vpow.pop %v2243
    %v2245 = vadd.f32 %v2242, 1.0
    %v2246 = vadd.f32 %v2244, 1.0
    %v2247 = vrcp.pop %v2245
    %v2248 = vmul.f32 1.0, %v2247
    %v2249 = vrcp.pop %v2246
    %v2250 = vmul.f32 1.0, %v2249
    %v2251 = vmul.f32 %v2234, %v2208
    %v2252 = vmul.f32 %v2236, %v2213
    %v2253 = vadd.f32 %v2219, %v2251
    %v2254 = vadd.f32 %v2222, %v2252
    %v2255 = vtanh.pop %v2253
    %v2256 = vtanh.pop %v2254
    %v2257 = vsub.f32 1.0, %v2248
    %v2258 = vsub.f32 1.0, %v2250
    %v2259 = vmul.f32 %v2257, %v2255
    %v2260 = vmul.f32 %v2258, %v2256
    %v2261 = vmul.f32 %v2248, %v2014
    %v2262 = vmul.f32 %v2250, %v2015
    %v2263 = vadd.f32 %v2259, %v2261
    %v2264 = vadd.f32 %v2260, %v2262
    %2265 = vst [vmem:[#allocation2] sm:$0xff] %v2263
    %2266 = vst [vmem:[#allocation2 + $0x8] sm:$0xff] %v2264
    %s2267 = scalar_lea.vmem [#allocation10], 96
    %2268 = vst [vmem:[%s2267] sm:$0xff] %v2263
    %2269 = vst [vmem:[%s2267 + $0x8] sm:$0xff] %v2264
    %v2270 = vld [vmem:[#allocation2] sm:$0xff]
    %v2271 = vld [vmem:[#allocation2 + $0x8] sm:$0xff]
    %v2272 = vld [vmem:[#allocation9] sm:$0xff]
    %v2273 = vld [vmem:[#allocation9 + $0x8] sm:$0xff]
    %v2274 = vld [vmem:[#allocation9 + $0x10] sm:$0xff]
    %v2275 = vld [vmem:[#allocation9 + $0x18] sm:$0xff]
    %v2276 = vld [vmem:[#allocation9 + $0x20] sm:$0xff]
    %v2277 = vld [vmem:[#allocation9 + $0x28] sm:$0xff]
    %v2278 = vld [vmem:[#allocation9 + $0x30] sm:$0xff]
    %v2279 = vld [vmem:[#allocation9 + $0x38] sm:$0xff]
    %v2280 = vld [vmem:[#allocation9 + $0x40] sm:$0xff]
    %v2281 = vld [vmem:[#allocation9 + $0x48] sm:$0xff]
    %v2282 = vld [vmem:[#allocation9 + $0x50] sm:$0xff]
    %v2283 = vld [vmem:[#allocation9 + $0x58] sm:$0xff]
    %v2284 = vld [vmem:[#allocation9 + $0x60] sm:$0xff]
    %v2285 = vld [vmem:[#allocation9 + $0x68] sm:$0xff]
    %v2286 = vld [vmem:[#allocation9 + $0x70] sm:$0xff]
    %v2287 = vld [vmem:[#allocation9 + $0x78] sm:$0xff]
    %v2288 = vld [vmem:[#allocation9 + $0x80] sm:$0xff]
    %v2289 = vld [vmem:[#allocation9 + $0x88] sm:$0xff]
    %v2290 = vld [vmem:[#allocation9 + $0x90] sm:$0xff]
    %v2291 = vld [vmem:[#allocation9 + $0x98] sm:$0xff]
    %v2292 = vld [vmem:[#allocation9 + $0xa0] sm:$0xff]
    %v2293 = vld [vmem:[#allocation9 + $0xa8] sm:$0xff]
    %v2294 = vld [vmem:[#allocation9 + $0xb0] sm:$0xff]
    %v2295 = vld [vmem:[#allocation9 + $0xb8] sm:$0xff]
    %v2296 = vld [vmem:[#allocation9 + $0xc0] sm:$0xff]
    %v2297 = vld [vmem:[#allocation9 + $0xc8] sm:$0xff]
    %v2298 = vld [vmem:[#allocation9 + $0xd0] sm:$0xff]
    %v2299 = vld [vmem:[#allocation9 + $0xd8] sm:$0xff]
    %v2300 = vld [vmem:[#allocation9 + $0xe0] sm:$0xff]
    %v2301 = vld [vmem:[#allocation9 + $0xe8] sm:$0xff]
    %v2302 = vld [vmem:[#allocation9 + $0xf0] sm:$0xff]
    %v2303 = vld [vmem:[#allocation9 + $0xf8] sm:$0xff]
    %v2304 = vld [vmem:[#allocation9 + $0x100] sm:$0xff]
    %v2305 = vld [vmem:[#allocation9 + $0x108] sm:$0xff]
    %v2306 = vld [vmem:[#allocation9 + $0x110] sm:$0xff]
    %v2307 = vld [vmem:[#allocation9 + $0x118] sm:$0xff]
    %v2308 = vld [vmem:[#allocation9 + $0x120] sm:$0xff]
    %v2309 = vld [vmem:[#allocation9 + $0x128] sm:$0xff]
    %v2310 = vld [vmem:[#allocation9 + $0x130] sm:$0xff]
    %v2311 = vld [vmem:[#allocation9 + $0x138] sm:$0xff]
    %v2312 = vld [vmem:[#allocation9 + $0x140] sm:$0xff]
    %v2313 = vld [vmem:[#allocation9 + $0x148] sm:$0xff]
    %v2314 = vld [vmem:[#allocation9 + $0x150] sm:$0xff]
    %v2315 = vld [vmem:[#allocation9 + $0x158] sm:$0xff]
    %v2316 = vld [vmem:[#allocation9 + $0x160] sm:$0xff]
    %v2317 = vld [vmem:[#allocation9 + $0x168] sm:$0xff]
    %v2318 = vld [vmem:[#allocation9 + $0x170] sm:$0xff]
    %v2319 = vld [vmem:[#allocation9 + $0x178] sm:$0xff]
    %2320 = vmatprep.subr.mxu0 %v2273
    %2321 = vmatpush1.msra.mxu0 %v2272
    %2322 = vmatprep.subr.mxu0 %v2276
    %2323 = vmatpush1.msra.mxu0 %v2275
    %2324 = vmatprep.subr.mxu0 %v2279
    %2325 = vmatpush1.msra.mxu0 %v2278
    %2326 = vmatprep.subr.mxu0 %v2282
    %2327 = vmatpush1.msra.mxu0 %v2281
    %2328 = vmatprep.subr.mxu0 %v2285
    %2329 = vmatpush1.msra.mxu0 %v2284
    %2330 = vmatprep.subr.mxu0 %v2288
    %2331 = vmatpush1.msra.mxu0 %v2287
    %2332 = vmatprep.subr.mxu0 %v2291
    %2333 = vmatpush1.msra.mxu0 %v2290
    %2334 = vmatprep.subr.mxu0 %v2294
    %2335 = vmatpush1.msra.mxu0 %v2293
    %2336 = vmatprep.subr.mxu0 %v2297
    %2337 = vmatpush1.msra.mxu0 %v2296
    %2338 = vmatprep.subr.mxu0 %v2300
    %2339 = vmatpush1.msra.mxu0 %v2299
    %2340 = vmatprep.subr.mxu0 %v2303
    %2341 = vmatpush1.msra.mxu0 %v2302
    %2342 = vmatprep.subr.mxu0 %v2306
    %2343 = vmatpush1.msra.mxu0 %v2305
    %2344 = vmatprep.subr.mxu0 %v2309
    %2345 = vmatpush1.msra.mxu0 %v2308
    %2346 = vmatprep.subr.mxu0 %v2312
    %2347 = vmatpush1.msra.mxu0 %v2311
    %2348 = vmatprep.subr.mxu0 %v2315
    %2349 = vmatpush1.msra.mxu0 %v2314
    %2350 = vmatprep.subr.mxu0 %v2318
    %2351 = vmatpush1.msra.mxu0 %v2317
    %2352 = vmatprep.subr.mxu0 0.0
    %2353 = vmatpush1.msra.mxu0 0.0
    %2354 = vmatprep.subr.mxu0 0.0
    %2355 = vmatpush1.msra.mxu0 0.0
    %2356 = vmatprep.subr.mxu0 0.0
    %2357 = vmatpush1.msra.mxu0 0.0
    %2358 = vmatprep.subr.mxu0 0.0
    %2359 = vmatpush1.msra.mxu0 0.0
    %2360 = vmatprep.subr.mxu0 0.0
    %2361 = vmatpush1.msra.mxu0 0.0
    %2362 = vmatprep.subr.mxu0 0.0
    %2363 = vmatpush1.msra.mxu0 0.0
    %2364 = vmatprep.subr.mxu0 0.0
    %2365 = vmatpush1.msra.mxu0 0.0
    %2366 = vmatprep.subr.mxu0 0.0
    %2367 = vmatpush1.msra.mxu0 0.0
    %2368 = vmatprep.subr.mxu0 0.0
    %2369 = vmatpush1.msra.mxu0 0.0
    %2370 = vmatprep.subr.mxu0 0.0
    %2371 = vmatpush1.msra.mxu0 0.0
    %2372 = vmatprep.subr.mxu0 0.0
    %2373 = vmatpush1.msra.mxu0 0.0
    %2374 = vmatprep.subr.mxu0 0.0
    %2375 = vmatpush1.msra.mxu0 0.0
    %2376 = vmatprep.subr.mxu0 0.0
    %2377 = vmatpush1.msra.mxu0 0.0
    %2378 = vmatprep.subr.mxu0 0.0
    %2379 = vmatpush1.msra.mxu0 0.0
    %2380 = vmatprep.subr.mxu0 0.0
    %2381 = vmatpush1.msra.mxu0 0.0
    %2382 = vmatprep.subr.mxu0 0.0
    %2383 = vmatpush1.msra.mxu0 0.0
    %2384 = vmatprep.mubr.f32.mxu0 0.0
    %2385 = vmatmul.mubr.f32.gmra.mrb[0].mxu0 %v2270
    %v2386 = vpop.f32.mrb[0].mxu0
    %v2387 = vadd.f32 0.0, %v2386
    %v2388 = vpop.f32.mrb[0].mxu0
    %v2389 = vadd.f32 0.0, %v2388
    %2390 = vmatprep.mubr.f32.mxu0 0.0
    %2391 = vmatmul.mubr.f32.gmra.mrb[0].mxu0 %v2271
    %v2392 = vpop.f32.mrb[0].mxu0
    %v2393 = vadd.f32 0.0, %v2392
    %v2394 = vpop.f32.mrb[0].mxu0
    %v2395 = vadd.f32 0.0, %v2394
    %2396 = vdwg.mxu0
    %2397 = vmatprep.subr.mxu0 0.0
    %2398 = vmatpush1.msra.mxu0 %v2274
    %2399 = vmatprep.subr.mxu0 0.0
    %2400 = vmatpush1.msra.mxu0 %v2277
    %2401 = vmatprep.subr.mxu0 0.0
    %2402 = vmatpush1.msra.mxu0 %v2280
    %2403 = vmatprep.subr.mxu0 0.0
    %2404 = vmatpush1.msra.mxu0 %v2283
    %2405 = vmatprep.subr.mxu0 0.0
    %2406 = vmatpush1.msra.mxu0 %v2286
    %2407 = vmatprep.subr.mxu0 0.0
    %2408 = vmatpush1.msra.mxu0 %v2289
    %2409 = vmatprep.subr.mxu0 0.0
    %2410 = vmatpush1.msra.mxu0 %v2292
    %2411 = vmatprep.subr.mxu0 0.0
    %2412 = vmatpush1.msra.mxu0 %v2295
    %2413 = vmatprep.subr.mxu0 0.0
    %2414 = vmatpush1.msra.mxu0 %v2298
    %2415 = vmatprep.subr.mxu0 0.0
    %2416 = vmatpush1.msra.mxu0 %v2301
    %2417 = vmatprep.subr.mxu0 0.0
    %2418 = vmatpush1.msra.mxu0 %v2304
    %2419 = vmatprep.subr.mxu0 0.0
    %2420 = vmatpush1.msra.mxu0 %v2307
    %2421 = vmatprep.subr.mxu0 0.0
    %2422 = vmatpush1.msra.mxu0 %v2310
    %2423 = vmatprep.subr.mxu0 0.0
    %2424 = vmatpush1.msra.mxu0 %v2313
    %2425 = vmatprep.subr.mxu0 0.0
    %2426 = vmatpush1.msra.mxu0 %v2316
    %2427 = vmatprep.subr.mxu0 0.0
    %2428 = vmatpush1.msra.mxu0 %v2319
    %2429 = vmatprep.subr.mxu0 0.0
    %2430 = vmatpush1.msra.mxu0 0.0
    %2431 = vmatprep.subr.mxu0 0.0
    %2432 = vmatpush1.msra.mxu0 0.0
    %2433 = vmatprep.subr.mxu0 0.0
    %2434 = vmatpush1.msra.mxu0 0.0
    %2435 = vmatprep.subr.mxu0 0.0
    %2436 = vmatpush1.msra.mxu0 0.0
    %2437 = vmatprep.subr.mxu0 0.0
    %2438 = vmatpush1.msra.mxu0 0.0
    %2439 = vmatprep.subr.mxu0 0.0
    %2440 = vmatpush1.msra.mxu0 0.0
    %2441 = vmatprep.subr.mxu0 0.0
    %2442 = vmatpush1.msra.mxu0 0.0
    %2443 = vmatprep.subr.mxu0 0.0
    %2444 = vmatpush1.msra.mxu0 0.0
    %2445 = vmatprep.subr.mxu0 0.0
    %2446 = vmatpush1.msra.mxu0 0.0
    %2447 = vmatprep.subr.mxu0 0.0
    %2448 = vmatpush1.msra.mxu0 0.0
    %2449 = vmatprep.subr.mxu0 0.0
    %2450 = vmatpush1.msra.mxu0 0.0
    %2451 = vmatprep.subr.mxu0 0.0
    %2452 = vmatpush1.msra.mxu0 0.0
    %2453 = vmatprep.subr.mxu0 0.0
    %2454 = vmatpush1.msra.mxu0 0.0
    %2455 = vmatprep.subr.mxu0 0.0
    %2456 = vmatpush1.msra.mxu0 0.0
    %2457 = vmatprep.subr.mxu0 0.0
    %2458 = vmatpush1.msra.mxu0 0.0
    %2459 = vmatprep.subr.mxu0 0.0
    %2460 = vmatpush1.msra.mxu0 0.0
    %2461 = vmatprep.mubr.f32.mxu0 0.0
    %2462 = vmatmul.mubr.f32.gmra.mrb[0].mxu0 %v2270
    %v2463 = vpop.f32.mrb[0].mxu0
    %v2464 = vadd.f32 0.0, %v2463
    %v2465 = vpop.f32.mrb[0].mxu0
    %2466 = vmatprep.mubr.f32.mxu0 0.0
    %2467 = vmatmul.mubr.f32.gmra.mrb[0].mxu0 %v2271
    %v2468 = vpop.f32.mrb[0].mxu0
    %v2469 = vadd.f32 0.0, %v2468
    %v2470 = vpop.f32.mrb[0].mxu0
    %2471 = vdwg.mxu0
    %s2472 = scalar_lea.vmem [#allocation3], 336
    %v2473 = vld [vmem:[%s2472] sm:$0xff]
    %v2474 = vld [vmem:[%s2472 + $0x8] sm:$0xff]
    %v2475 = vld [vmem:[%s2472 + $0x10] sm:$0xff]
    %v2476 = vld [vmem:[%s2472 + $0x18] sm:$0xff]
    %v2477 = vld [vmem:[%s2472 + $0x20] sm:$0xff]
    %v2478 = vld [vmem:[%s2472 + $0x28] sm:$0xff]
    %v2479 = vadd.f32 %v2473, %v2387
    %v2480 = vadd.f32 %v2476, %v2393
    %v2481 = vxor.u32 %v2479, 2147483648
    %v2482 = vxor.u32 %v2480, 2147483648
    %v2483 = vmul.f32 %v2481, 1.442695
    %v2484 = vpow.pop %v2483
    %v2485 = vmul.f32 %v2482, 1.442695
    %v2486 = vpow.pop %v2485
    %v2487 = vadd.f32 %v2484, 1.0
    %v2488 = vadd.f32 %v2486, 1.0
    %v2489 = vrcp.pop %v2487
    %v2490 = vmul.f32 1.0, %v2489
    %v2491 = vrcp.pop %v2488
    %v2492 = vmul.f32 1.0, %v2491
    %v2493 = vadd.f32 %v2474, %v2389
    %v2494 = vadd.f32 %v2477, %v2395
    %v2495 = vxor.u32 %v2493, 2147483648
    %v2496 = vxor.u32 %v2494, 2147483648
    %v2497 = vmul.f32 %v2495, 1.442695
    %v2498 = vpow.pop %v2497
    %v2499 = vmul.f32 %v2496, 1.442695
    %v2500 = vpow.pop %v2499
    %v2501 = vadd.f32 %v2498, 1.0
    %v2502 = vadd.f32 %v2500, 1.0
    %v2503 = vrcp.pop %v2501
    %v2504 = vmul.f32 1.0, %v2503
    %v2505 = vrcp.pop %v2502
    %v2506 = vmul.f32 1.0, %v2505
    %v2507 = vmul.f32 %v2490, %v2464
    %v2508 = vmul.f32 %v2492, %v2469
    %v2509 = vadd.f32 %v2475, %v2507
    %v2510 = vadd.f32 %v2478, %v2508
    %v2511 = vtanh.pop %v2509
    %v2512 = vtanh.pop %v2510
    %v2513 = vsub.f32 1.0, %v2504
    %v2514 = vsub.f32 1.0, %v2506
    %v2515 = vmul.f32 %v2513, %v2511
    %v2516 = vmul.f32 %v2514, %v2512
    %v2517 = vmul.f32 %v2504, %v2270
    %v2518 = vmul.f32 %v2506, %v2271
    %v2519 = vadd.f32 %v2515, %v2517
    %v2520 = vadd.f32 %v2516, %v2518
    %2521 = vst [vmem:[#allocation2] sm:$0xff] %v2519
    %2522 = vst [vmem:[#allocation2 + $0x8] sm:$0xff] %v2520
    %s2523 = scalar_lea.vmem [#allocation10], 112
    %2524 = vst [vmem:[%s2523] sm:$0xff] %v2519
    %2525 = vst [vmem:[%s2523 + $0x8] sm:$0xff] %v2520
    // Predicated region
    $region30: #{gru4rec_forward.3} parent=1 // pred_check
      _
    $region31: #{gru4rec_forward.3} parent=1 // pred_check_branch
      %2527 = sbr.rel (0) target = $region33
    $region32: #{gru4rec_forward.3} parent=1 // pred_region
      %s2529 = ssub.s32 2048, 2048
      %2530 = vsyncadd [#allocation6], %s2529
      %s2531 = sshll.u32 [#allocation10], 4
      %s2532 = int_to_ptr.vmem [resolvable:$true] %s2531
      %2537 = dma.vmem_to_hbm [thread:$0]  %s2532, 2048, %s3, [#allocation6], 128, 128, 8
    $region33: #{gru4rec_forward.3} parent=1 // pred_fallthru
      _
    // Predicated region
    $region34: #{gru4rec_forward.3} parent=1 // pred_check
      _
    $region35: #{gru4rec_forward.3} parent=1 // pred_check_branch
      %2539 = sbr.rel (0) target = $region37
    $region36: #{gru4rec_forward.3} parent=1 // pred_region
      %2540 = dma.done [#allocation6], 2048
    $region37: #{gru4rec_forward.3} parent=1 // pred_fallthru
      _
    %2541 = vsyncpa [#allocation5], 1
    %2542 = vsyncpa [#allocation8], 1
    %2543 = vsyncpa [#allocation6], 1

</llo_original>
